<compile_context>
chip_gen: v6e
topology: v6e:2x2x1
jax: 0.10.0
libtpu: 0.0.40
codegen_flags: <defaults>
</compile_context>

<pallas_src>
import functools
import math

import jax
import jax.numpy as jnp
from jax import lax
from jax.experimental import pallas as pl
from jax.experimental.pallas import tpu as pltpu

EPS = 1e-5                      # PyTorch nn.LayerNorm default eps
NEG_BIG = -1e30                 # finite mask fill (avoids NaN on fully-masked rows)
COMPUTE_DTYPE = jnp.bfloat16    # MXU operand dtype; accumulation stays f32
INV_SQRT2 = 1.0 / math.sqrt(2.0)


# ----------------------------- in-kernel helpers -----------------------------

def _layernorm(x, w, b):
    # f32 row-wise LayerNorm; w, b are (1, C) rows (broadcast over rows).
    mu = jnp.mean(x, axis=-1, keepdims=True)
    var = jnp.mean((x - mu) ** 2, axis=-1, keepdims=True)
    return (x - mu) * lax.rsqrt(var + EPS) * w + b


def _softmax_last(s):
    s = s - jnp.max(s, axis=-1, keepdims=True)
    p = jnp.exp(s)
    # exact reciprocal: off the MXU critical path, tightens accuracy (review note)
    return p * pl.reciprocal(jnp.sum(p, axis=-1, keepdims=True), approx=False)


def _gelu_erf(h):
    # exact GELU (PyTorch nn.GELU default)
    return 0.5 * h * (1.0 + lax.erf(h * INV_SQRT2))


# --------------------------------- fused kernel -------------------------------

def _fused_block_kernel(num_heads, nk_chunk, hid_chunk,
                        x_ref, y_ref, amask_ref,
                        ln1_w, ln1_b, wqkv, wproj, bproj,
                        ln2_w, ln2_b, lny_w, lny_b, wq, wk, wv, wcproj, bcproj,
                        ln3_w, ln3_b, w1, b1, w2, b2,
                        o_ref, ctx_ref):
    Bt, Nq, C = x_ref.shape
    Nk = y_ref.shape[1]
    H = num_heads
    dh = C // H
    R = Bt * Nq
    scale = dh ** -0.5

    # Residual stream kept in f32 on-chip across all three branches.
    x = x_ref[...].reshape(R, C).astype(jnp.float32)

    # ---- branch 1: x = x + proj( MHA( norm1(x) ) ) ---------------------------
    xn = _layernorm(x, ln1_w[...], ln1_b[...]).astype(COMPUTE_DTYPE)
    # single bf16 cast right after the projection (no per-head casts)
    qkv = jnp.dot(xn, wqkv[...],
                  preferred_element_type=jnp.float32).astype(COMPUTE_DTYPE)
    q_sa, k_sa, v_sa = qkv[:, :C], qkv[:, C:2 * C], qkv[:, 2 * C:]
    for h in range(H):                                    # small static head loop
        lo = h * dh
        qh = q_sa[:, lo:lo + dh].reshape(Bt, Nq, dh)
        kh = k_sa[:, lo:lo + dh].reshape(Bt, Nq, dh)
        vh = v_sa[:, lo:lo + dh].reshape(Bt, Nq, dh)
        s = jnp.einsum('bqd,bkd->bqk', qh, kh,
                       preferred_element_type=jnp.float32) * scale
        p = _softmax_last(s).astype(COMPUTE_DTYPE)
        o = jnp.einsum('bqk,bkd->bqd', p, vh,
                       preferred_element_type=jnp.float32)
        # context lands at its static lane offset -> one K=C projection below
        ctx_ref[:, lo:lo + dh] = o.reshape(R, dh).astype(COMPUTE_DTYPE)
    x = x + jnp.dot(ctx_ref[...], wproj[...],
                    preferred_element_type=jnp.float32) + bproj[...]

    # ---- branch 2: y_ = norm_y(y); x = x + proj( masked MHA(norm2(x), y_, y_) )
    xn2 = _layernorm(x, ln2_w[...], ln2_b[...]).astype(COMPUTE_DTYPE)
    qx = jnp.dot(xn2, wq[...],
                 preferred_element_type=jnp.float32).astype(COMPUTE_DTYPE)

    n_kc = Nk // nk_chunk
    # flash-style online softmax over Nk chunks: only one chunk's k/v/scores live
    m_st = [jnp.full((Bt, Nq, 1), NEG_BIG, jnp.float32) for _ in range(H)]
    l_st = [jnp.zeros((Bt, Nq, 1), jnp.float32) for _ in range(H)]
    a_st = [jnp.zeros((Bt, Nq, dh), jnp.float32) for _ in range(H)]
    for c in range(n_kc):
        k0 = c * nk_chunk
        yc = y_ref[:, k0:k0 + nk_chunk, :].reshape(Bt * nk_chunk, C).astype(jnp.float32)
        ync = _layernorm(yc, lny_w[...], lny_b[...]).astype(COMPUTE_DTYPE)
        kc = jnp.dot(ync, wk[...],
                     preferred_element_type=jnp.float32).astype(COMPUTE_DTYPE)
        vc = jnp.dot(ync, wv[...],
                     preferred_element_type=jnp.float32).astype(COMPUTE_DTYPE)
        # additive mask chunk broadcast ONCE per chunk (hoisted out of head loop)
        mc = jnp.broadcast_to(amask_ref[:, k0:k0 + nk_chunk][None],
                              (Bt, Nq, nk_chunk))
        for h in range(H):
            lo = h * dh
            qh = qx[:, lo:lo + dh].reshape(Bt, Nq, dh)
            kh = kc[:, lo:lo + dh].reshape(Bt, nk_chunk, dh)
            vh = vc[:, lo:lo + dh].reshape(Bt, nk_chunk, dh)
            s = jnp.einsum('bqd,bkd->bqk', qh, kh,
                           preferred_element_type=jnp.float32) * scale + mc
            m_new = jnp.maximum(m_st[h], jnp.max(s, axis=-1, keepdims=True))
            alpha = jnp.exp(m_st[h] - m_new)
            p = jnp.exp(s - m_new)
            l_st[h] = alpha * l_st[h] + jnp.sum(p, axis=-1, keepdims=True)
            a_st[h] = alpha * a_st[h] + jnp.einsum(
                'bqk,bkd->bqd', p.astype(COMPUTE_DTYPE), vh,
                preferred_element_type=jnp.float32)
            m_st[h] = m_new
    for h in range(H):
        lo = h * dh
        o = a_st[h] * pl.reciprocal(l_st[h], approx=False)
        ctx_ref[:, lo:lo + dh] = o.reshape(R, dh).astype(COMPUTE_DTYPE)
    x = x + jnp.dot(ctx_ref[...], wcproj[...],
                    preferred_element_type=jnp.float32) + bcproj[...]

    # ---- branch 3: x = x + fc2( gelu( fc1( norm3(x) ) ) ), hidden-dim chunked ---
    xn3 = _layernorm(x, ln3_w[...], ln3_b[...]).astype(COMPUTE_DTYPE)
    HID = w1.shape[1]
    mlp = jnp.zeros((R, C), jnp.float32)
    for c in range(HID // hid_chunk):            # static chunks -> static slices
        lo = c * hid_chunk
        hblk = jnp.dot(xn3, w1[:, lo:lo + hid_chunk],
                       preferred_element_type=jnp.float32) + b1[:, lo:lo + hid_chunk]
        hblk = _gelu_erf(hblk)                   # GELU inside the chunk loop
        mlp = mlp + jnp.dot(hblk.astype(COMPUTE_DTYPE), w2[lo:lo + hid_chunk, :],
                            preferred_element_type=jnp.float32)
    x = x + mlp + b2[...]

    o_ref[...] = x.reshape(Bt, Nq, C).astype(o_ref.dtype)


# ------------------------------- call wrapper ----------------------------------

_WEIGHT_ORDER = ("ln1_w", "ln1_b", "wqkv", "wproj", "bproj",
                 "ln2_w", "ln2_b", "lny_w", "lny_b",
                 "wq", "wk", "wv", "wcproj", "bcproj",
                 "ln3_w", "ln3_b", "w1", "b1", "w2", "b2")


def prepare_params(params):
    """Pre-transpose weights to (in, out) and pre-cast to bf16 ONCE (outside jit).
    LayerNorm gamma/beta and biases stay f32 (added to f32 accumulators)."""
    t = lambda a: jnp.asarray(a, jnp.float32).T.astype(COMPUTE_DTYPE)
    row = lambda a: jnp.asarray(a, jnp.float32).reshape(1, -1)
    return dict(
        ln1_w=row(params["norm1_w"]), ln1_b=row(params["norm1_b"]),
        wqkv=t(params["attn_qkv_w"]), wproj=t(params["attn_proj_w"]),
        bproj=row(params["attn_proj_b"]),
        ln2_w=row(params["norm2_w"]), ln2_b=row(params["norm2_b"]),
        lny_w=row(params["norm_y_w"]), lny_b=row(params["norm_y_b"]),
        wq=t(params["ca_q_w"]), wk=t(params["ca_k_w"]), wv=t(params["ca_v_w"]),
        wcproj=t(params["ca_proj_w"]), bcproj=row(params["ca_proj_b"]),
        ln3_w=row(params["norm3_w"]), ln3_b=row(params["norm3_b"]),
        w1=t(params["mlp_fc1_w"]), b1=row(params["mlp_fc1_b"]),
        w2=t(params["mlp_fc2_w"]), b2=row(params["mlp_fc2_b"]),
    )


def _pick_chunk(total, target=512):
    """Largest divisor of `total` that is <= target (falls back to `total`)."""
    if total <= target:
        return total
    for c in range(target, max(target // 4, 1) - 1, -1):
        if total % c == 0:
            return c
    return total


def _vmem_capacity_bytes():
    try:
        cap = getattr(pltpu.get_tpu_info(), "vmem_capacity_bytes", None)
        if cap:
            return int(cap)
    except Exception:
        pass
    return 64 * 1024 * 1024     # conservative fallback (v7x per-TensorCore VMEM)


def _pick_sizes(B, Nq, Nk, C, H, in_itemsize, fixed_bytes, nk_chunk, hid_chunk):
    """Grid-/VMEM-aware batch-tile and vmem-limit selection."""
    cap = _vmem_capacity_bytes()
    budget = int(cap * 0.75)

    def step_bytes(bt):
        rq = bt * Nq
        io = 2 * in_itemsize * (2 * rq * C + bt * Nk * C)   # double-buffered x/out + y tiles
        f32 = 4 * (rq * C                                   # residual stream
                   + rq * (C + 2 * H)                       # online-softmax state
                   + rq * max(Nq, nk_chunk)                 # one head's score block
                   + rq * hid_chunk                         # MLP hidden chunk
                   + rq * C)                                # MLP accumulator
        bf16 = 2 * (rq * 3 * C                              # qkv
                    + 2 * rq * C                            # cross-attn q + ctx scratch
                    + 2 * bt * nk_chunk * C)                # per-chunk k/v
        return io + f32 + bf16

    def ok(bt):
        return fixed_bytes + step_bytes(bt) <= budget and bt * Nq <= 2048

    bt = 1
    for min_steps in (4, 2, 1):   # keep >=2 (ideally >=4) grid steps for v7x megacore
        cands = [c for c in range(1, B + 1)
                 if B % c == 0 and B // c >= min(min_steps, B) and (c == 1 or ok(c))]
        if cands:
            bt = max(cands)
            break
    vmem_limit = fixed_bytes + 2 * step_bytes(bt) + (16 << 20)
    vmem_limit = max(32 << 20, min(vmem_limit, int(cap * 0.9)))
    return bt, int(vmem_limit)


@functools.partial(jax.jit, static_argnames=("num_heads", "nk_chunk", "hid_chunk"))
def dino_decoder_block(x, y, mask, prepared, num_heads, nk_chunk=None, hid_chunk=None):
    """Pallas implementation of DinoDecoderBlock.forward(x, y, xpos, ypos, mask)
    with rope=None (positions unused) and dropout disabled (eval)."""
    B, Nq, C = x.shape
    Nk = y.shape[1]
    assert C % num_heads == 0, "dim must be divisible by num_heads"
    HID = prepared["w1"].shape[1]
    if nk_chunk is None:
        nk_chunk = _pick_chunk(Nk, 512)
    if hid_chunk is None:
        hid_chunk = _pick_chunk(HID, 512)
    assert Nk % nk_chunk == 0 and HID % hid_chunk == 0

    # Additive f32 mask bias prepared outside the kernel (no in-kernel compare/select).
    add_mask = jnp.where(mask.astype(bool), 0.0, NEG_BIG).astype(jnp.float32)

    weights = tuple(prepared[name] for name in _WEIGHT_ORDER)
    fixed_bytes = (sum(int(w.size) * w.dtype.itemsize for w in weights)
                   + int(add_mask.size) * 4)
    bt, vmem_limit = _pick_sizes(B, Nq, Nk, C, num_heads, x.dtype.itemsize,
                                 fixed_bytes, nk_chunk, hid_chunk)

    # Grid-invariant operands (weights + mask) are whole-array VMEM residents:
    # one copy for the whole kernel, never re-fetched or double-buffered.
    vmem_resident = lambda: pl.BlockSpec(memory_space=pltpu.MemorySpace.VMEM)
    in_specs = ([pl.BlockSpec((bt, Nq, C), lambda b: (b, 0, 0)),
                 pl.BlockSpec((bt, Nk, C), lambda b: (b, 0, 0)),
                 vmem_resident()]
                + [vmem_resident() for _ in weights])

    out_x = pl.pallas_call(
        functools.partial(_fused_block_kernel, num_heads, nk_chunk, hid_chunk),
        out_shape=jax.ShapeDtypeStruct((B, Nq, C), x.dtype),
        grid=(B // bt,),
        in_specs=in_specs,
        out_specs=pl.BlockSpec((bt, Nq, C), lambda b: (b, 0, 0)),
        scratch_shapes=[pltpu.VMEM((bt * Nq, C), COMPUTE_DTYPE)],   # head-context slab
        compiler_params=pltpu.CompilerParams(
            dimension_semantics=("parallel",),          # independent batch tiles
            vmem_limit_bytes=vmem_limit),
    )(x, y, add_mask, *weights)

    return out_x, y


# ------------------------------ pure-JAX reference -----------------------------

def reference(x, y, mask, params, num_heads):
    def ln(t, w, b):
        mu = t.mean(-1, keepdims=True)
        var = ((t - mu) ** 2).mean(-1, keepdims=True)
        return (t - mu) / jnp.sqrt(var + EPS) * w + b

    def mha(q, k, v, m=None):
        B, Nq, C = q.shape
        dh = C // num_heads
        qh = q.reshape(B, Nq, num_heads, dh).transpose(0, 2, 1, 3)
        kh = k.reshape(B, -1, num_heads, dh).transpose(0, 2, 1, 3)
        vh = v.reshape(B, -1, num_heads, dh).transpose(0, 2, 1, 3)
        s = jnp.einsum('bhqd,bhkd->bhqk', qh, kh) * (dh ** -0.5)
        if m is not None:
            s = jnp.where(m[None, None], s, -jnp.inf)
        p = jax.nn.softmax(s, axis=-1)
        return jnp.einsum('bhqk,bhkd->bhqd', p, vh).transpose(0, 2, 1, 3).reshape(B, Nq, C)

    C = x.shape[-1]
    xn = ln(x, params["norm1_w"], params["norm1_b"])
    qkv = xn @ params["attn_qkv_w"].T
    q, k, v = qkv[..., :C], qkv[..., C:2 * C], qkv[..., 2 * C:]
    x = x + (mha(q, k, v) @ params["attn_proj_w"].T + params["attn_proj_b"])

    yn = ln(y, params["norm_y_w"], params["norm_y_b"])
    xn2 = ln(x, params["norm2_w"], params["norm2_b"])
    q = xn2 @ params["ca_q_w"].T
    k = yn @ params["ca_k_w"].T
    v = yn @ params["ca_v_w"].T
    x = x + (mha(q, k, v, m=mask) @ params["ca_proj_w"].T + params["ca_proj_b"])

    xn3 = ln(x, params["norm3_w"], params["norm3_b"])
    h = xn3 @ params["mlp_fc1_w"].T + params["mlp_fc1_b"]
    h = 0.5 * h * (1.0 + lax.erf(h / jnp.sqrt(2.0)))
    x = x + (h @ params["mlp_fc2_w"].T + params["mlp_fc2_b"])
    return x, y


# ----------------------------------- main --------------------------------------

if __name__ == "__main__":
    # dim=32, num_heads=4, mlp_ratio=4 -> hidden=128
    B, Nq, Nk, C, H = 2, 16, 16, 32, 4
    HID = int(C * 4.0)

    key = jax.random.PRNGKey(0)
    ks = jax.random.split(key, 16)
    nrm = lambda k, shp: (0.02 * jax.random.normal(k, shp)).astype(jnp.float32)

    x = jax.random.normal(ks[0], (B, Nq, C), jnp.float32)
    y = jax.random.normal(ks[1], (B, Nk, C), jnp.float32)
    # sparse attention mask (Nq, Nk): causal-style, every row has >=1 visible key
    mask = jnp.tril(jnp.ones((Nq, Nk), dtype=bool))

    params = {
        "norm1_w": jnp.ones((C,), jnp.float32), "norm1_b": jnp.zeros((C,), jnp.float32),
        "norm2_w": jnp.ones((C,), jnp.float32), "norm2_b": jnp.zeros((C,), jnp.float32),
        "norm3_w": jnp.ones((C,), jnp.float32), "norm3_b": jnp.zeros((C,), jnp.float32),
        "norm_y_w": jnp.ones((C,), jnp.float32), "norm_y_b": jnp.zeros((C,), jnp.float32),
        # self-attention (croco Attention): fused qkv (qkv_bias=False), proj with bias
        "attn_qkv_w": nrm(ks[2], (3 * C, C)),
        "attn_proj_w": nrm(ks[3], (C, C)), "attn_proj_b": nrm(ks[4], (C,)),
        # sparse cross-attention: separate q/k/v (no bias), proj with bias
        "ca_q_w": nrm(ks[5], (C, C)), "ca_k_w": nrm(ks[6], (C, C)), "ca_v_w": nrm(ks[7], (C, C)),
        "ca_proj_w": nrm(ks[8], (C, C)), "ca_proj_b": nrm(ks[9], (C,)),
        # MLP
        "mlp_fc1_w": nrm(ks[10], (HID, C)), "mlp_fc1_b": nrm(ks[11], (HID,)),
        "mlp_fc2_w": nrm(ks[12], (C, HID)), "mlp_fc2_b": nrm(ks[13], (C,)),
    }
    # TODO(synk): rope is None in this config and dropout layers are identity at eval;
    # xpos/ypos are therefore unused, matching the PyTorch forward with rope=None.

    prepared = prepare_params(params)       # one-time transpose + bf16 cast

    # nk_chunk=8 / hid_chunk=64 force the multi-chunk online-softmax and chunked-MLP
    # paths to be exercised (and validated) even at these toy sizes.
    out_x, out_y = dino_decoder_block(x, y, mask, prepared, num_heads=H,
                                      nk_chunk=8, hid_chunk=64)
    jax.block_until_ready(out_x)

    ref_x, ref_y = reference(x, y, mask, params, H)
    # bf16 MXU matmuls (f32 accumulation) -> loosened tolerance vs f32 reference
    assert jnp.allclose(out_x, ref_x, atol=2e-2, rtol=2e-2), "mismatch vs reference"
    assert jnp.array_equal(out_y, y)
    print("KERNEL_OK")
</pallas_src>

<mosaic_0001>
module attributes {stable_mosaic.version = 11 : i64} {
  func.func @_fused_block_kernel(%arg0: i32, %arg1: memref<1x16x32xf32, #tpu.memory_space<vmem>>, %arg2: memref<1x16x32xf32, #tpu.memory_space<vmem>>, %arg3: memref<16x16xf32, #tpu.memory_space<vmem>>, %arg4: memref<1x32xf32, #tpu.memory_space<vmem>>, %arg5: memref<1x32xf32, #tpu.memory_space<vmem>>, %arg6: memref<32x96xbf16, #tpu.memory_space<vmem>>, %arg7: memref<32x32xbf16, #tpu.memory_space<vmem>>, %arg8: memref<1x32xf32, #tpu.memory_space<vmem>>, %arg9: memref<1x32xf32, #tpu.memory_space<vmem>>, %arg10: memref<1x32xf32, #tpu.memory_space<vmem>>, %arg11: memref<1x32xf32, #tpu.memory_space<vmem>>, %arg12: memref<1x32xf32, #tpu.memory_space<vmem>>, %arg13: memref<32x32xbf16, #tpu.memory_space<vmem>>, %arg14: memref<32x32xbf16, #tpu.memory_space<vmem>>, %arg15: memref<32x32xbf16, #tpu.memory_space<vmem>>, %arg16: memref<32x32xbf16, #tpu.memory_space<vmem>>, %arg17: memref<1x32xf32, #tpu.memory_space<vmem>>, %arg18: memref<1x32xf32, #tpu.memory_space<vmem>>, %arg19: memref<1x32xf32, #tpu.memory_space<vmem>>, %arg20: memref<32x128xbf16, #tpu.memory_space<vmem>>, %arg21: memref<1x128xf32, #tpu.memory_space<vmem>>, %arg22: memref<128x32xbf16, #tpu.memory_space<vmem>>, %arg23: memref<1x32xf32, #tpu.memory_space<vmem>>, %arg24: memref<1x16x32xf32, #tpu.memory_space<vmem>>, %arg25: memref<16x32xbf16, #tpu.memory_space<vmem>>) attributes {dimension_semantics = [#tpu.dimension_semantics<parallel>], iteration_bounds = array<i64: 2>, scalar_prefetch = 0 : i64, scratch_operands = 1 : i64, tpu.core_type = #tpu.core_type<tc>, window_params = [{transform_indices = @transform_0, window_bounds = array<i64: 1, 16, 32>}, {transform_indices = @transform_1, window_bounds = array<i64: 1, 16, 32>}, {pipeline_mode = #tpu.pipeline_mode<synchronous>, transform_indices = @transform_2, window_bounds = array<i64: 16, 16>}, {pipeline_mode = #tpu.pipeline_mode<synchronous>, transform_indices = @transform_3, window_bounds = array<i64: 1, 32>}, {pipeline_mode = #tpu.pipeline_mode<synchronous>, transform_indices = @transform_4, window_bounds = array<i64: 1, 32>}, {pipeline_mode = #tpu.pipeline_mode<synchronous>, transform_indices = @transform_5, window_bounds = array<i64: 32, 96>}, {pipeline_mode = #tpu.pipeline_mode<synchronous>, transform_indices = @transform_6, window_bounds = array<i64: 32, 32>}, {pipeline_mode = #tpu.pipeline_mode<synchronous>, transform_indices = @transform_7, window_bounds = array<i64: 1, 32>}, {pipeline_mode = #tpu.pipeline_mode<synchronous>, transform_indices = @transform_8, window_bounds = array<i64: 1, 32>}, {pipeline_mode = #tpu.pipeline_mode<synchronous>, transform_indices = @transform_9, window_bounds = array<i64: 1, 32>}, {pipeline_mode = #tpu.pipeline_mode<synchronous>, transform_indices = @transform_10, window_bounds = array<i64: 1, 32>}, {pipeline_mode = #tpu.pipeline_mode<synchronous>, transform_indices = @transform_11, window_bounds = array<i64: 1, 32>}, {pipeline_mode = #tpu.pipeline_mode<synchronous>, transform_indices = @transform_12, window_bounds = array<i64: 32, 32>}, {pipeline_mode = #tpu.pipeline_mode<synchronous>, transform_indices = @transform_13, window_bounds = array<i64: 32, 32>}, {pipeline_mode = #tpu.pipeline_mode<synchronous>, transform_indices = @transform_14, window_bounds = array<i64: 32, 32>}, {pipeline_mode = #tpu.pipeline_mode<synchronous>, transform_indices = @transform_15, window_bounds = array<i64: 32, 32>}, {pipeline_mode = #tpu.pipeline_mode<synchronous>, transform_indices = @transform_16, window_bounds = array<i64: 1, 32>}, {pipeline_mode = #tpu.pipeline_mode<synchronous>, transform_indices = @transform_17, window_bounds = array<i64: 1, 32>}, {pipeline_mode = #tpu.pipeline_mode<synchronous>, transform_indices = @transform_18, window_bounds = array<i64: 1, 32>}, {pipeline_mode = #tpu.pipeline_mode<synchronous>, transform_indices = @transform_19, window_bounds = array<i64: 32, 128>}, {pipeline_mode = #tpu.pipeline_mode<synchronous>, transform_indices = @transform_20, window_bounds = array<i64: 1, 128>}, {pipeline_mode = #tpu.pipeline_mode<synchronous>, transform_indices = @transform_21, window_bounds = array<i64: 128, 32>}, {pipeline_mode = #tpu.pipeline_mode<synchronous>, transform_indices = @transform_22, window_bounds = array<i64: 1, 32>}, {transform_indices = @transform_23, window_bounds = array<i64: 1, 16, 32>}]} {
    %c0 = arith.constant 0 : index
    %c0_0 = arith.constant 0 : index
    %c0_1 = arith.constant 0 : index
    %0 = vector.load %arg1[%c0, %c0_0, %c0_1] : memref<1x16x32xf32, #tpu.memory_space<vmem>>, vector<1x16x32xf32>
    %1 = vector.shape_cast %0 : vector<1x16x32xf32> to vector<16x32xf32>
    %c0_2 = arith.constant 0 : index
    %c0_3 = arith.constant 0 : index
    %2 = vector.load %arg4[%c0_2, %c0_3] : memref<1x32xf32, #tpu.memory_space<vmem>>, vector<1x32xf32>
    %c0_4 = arith.constant 0 : index
    %c0_5 = arith.constant 0 : index
    %3 = vector.load %arg5[%c0_4, %c0_5] : memref<1x32xf32, #tpu.memory_space<vmem>>, vector<1x32xf32>
    %cst = arith.constant dense<0.000000e+00> : vector<16xf32>
    %4 = vector.multi_reduction <add>, %1, %cst [1] : vector<16x32xf32> to vector<16xf32>
    %5 = vector.shape_cast %4 : vector<16xf32> to vector<16x1xf32>
    %cst_6 = arith.constant 3.200000e+01 : f32
    %6 = vector.broadcast %cst_6 : f32 to vector<16x1xf32>
    %7 = arith.divf %5, %6 : vector<16x1xf32>
    %8 = vector.broadcast %7 : vector<16x1xf32> to vector<16x32xf32>
    %9 = arith.subf %1, %8 : vector<16x32xf32>
    %10 = arith.mulf %9, %9 : vector<16x32xf32>
    %cst_7 = arith.constant dense<0.000000e+00> : vector<16xf32>
    %11 = vector.multi_reduction <add>, %10, %cst_7 [1] : vector<16x32xf32> to vector<16xf32>
    %12 = vector.shape_cast %11 : vector<16xf32> to vector<16x1xf32>
    %cst_8 = arith.constant 3.200000e+01 : f32
    %13 = vector.broadcast %cst_8 : f32 to vector<16x1xf32>
    %14 = arith.divf %12, %13 : vector<16x1xf32>
    %15 = vector.broadcast %7 : vector<16x1xf32> to vector<16x32xf32>
    %16 = arith.subf %1, %15 : vector<16x32xf32>
    %cst_9 = arith.constant 9.99999974E-6 : f32
    %17 = vector.broadcast %cst_9 : f32 to vector<16x1xf32>
    %18 = arith.addf %14, %17 : vector<16x1xf32>
    %19 = math.rsqrt %18 : vector<16x1xf32>
    %20 = vector.broadcast %19 : vector<16x1xf32> to vector<16x32xf32>
    %21 = arith.mulf %16, %20 : vector<16x32xf32>
    %22 = vector.broadcast %2 : vector<1x32xf32> to vector<16x32xf32>
    %23 = arith.mulf %21, %22 : vector<16x32xf32>
    %24 = vector.broadcast %3 : vector<1x32xf32> to vector<16x32xf32>
    %25 = arith.addf %23, %24 : vector<16x32xf32>
    %26 = arith.truncf %25 : vector<16x32xf32> to vector<16x32xbf16>
    %c0_10 = arith.constant 0 : index
    %c0_11 = arith.constant 0 : index
    %27 = vector.load %arg6[%c0_10, %c0_11] : memref<32x96xbf16, #tpu.memory_space<vmem>>, vector<32x96xbf16>
    %cst_12 = arith.constant dense<0.000000e+00> : vector<16x96xf32>
    %28 = tpu.matmul %26, %27, %cst_12 {dimension_numbers = #tpu.dot_dimension_numbers<[1], [0], [0], [1], [0, 0, 1, 1], [], []>} : vector<16x32xbf16>, vector<32x96xbf16>, vector<16x96xf32> -> vector<16x96xf32>
    %29 = arith.truncf %28 : vector<16x96xf32> to vector<16x96xbf16>
    %30 = vector.extract_strided_slice %29 {offsets = [0, 0], sizes = [16, 32], strides = [1, 1]} : vector<16x96xbf16> to vector<16x32xbf16>
    %31 = vector.extract_strided_slice %29 {offsets = [0, 32], sizes = [16, 32], strides = [1, 1]} : vector<16x96xbf16> to vector<16x32xbf16>
    %32 = vector.extract_strided_slice %29 {offsets = [0, 64], sizes = [16, 32], strides = [1, 1]} : vector<16x96xbf16> to vector<16x32xbf16>
    %33 = vector.extract_strided_slice %30 {offsets = [0, 0], sizes = [16, 8], strides = [1, 1]} : vector<16x32xbf16> to vector<16x8xbf16>
    %34 = vector.shape_cast %33 : vector<16x8xbf16> to vector<1x16x8xbf16>
    %35 = vector.extract_strided_slice %31 {offsets = [0, 0], sizes = [16, 8], strides = [1, 1]} : vector<16x32xbf16> to vector<16x8xbf16>
    %36 = vector.shape_cast %35 : vector<16x8xbf16> to vector<1x16x8xbf16>
    %37 = vector.extract_strided_slice %32 {offsets = [0, 0], sizes = [16, 8], strides = [1, 1]} : vector<16x32xbf16> to vector<16x8xbf16>
    %38 = vector.shape_cast %37 : vector<16x8xbf16> to vector<1x16x8xbf16>
    "tpu.trace_start"() <{level = 10 : i32, message = "bqd,bkd->bqk"}> : () -> ()
    %cst_13 = arith.constant dense<0.000000e+00> : vector<1x16x16xf32>
    %39 = tpu.matmul %34, %36, %cst_13 {dimension_numbers = #tpu.dot_dimension_numbers<[2], [2], [1], [1], [0, 0, 0, 1, 1, 1], [0], [0]>} : vector<1x16x8xbf16>, vector<1x16x8xbf16>, vector<1x16x16xf32> -> vector<1x16x16xf32>
    "tpu.trace_stop"() : () -> ()
    %cst_14 = arith.constant 0.353553385 : f32
    %40 = vector.broadcast %cst_14 : f32 to vector<1x16x16xf32>
    %41 = arith.mulf %39, %40 : vector<1x16x16xf32>
    %cst_15 = arith.constant dense<0xFF800000> : vector<1x16xf32>
    %42 = vector.multi_reduction <maximumf>, %41, %cst_15 [2] : vector<1x16x16xf32> to vector<1x16xf32>
    %43 = vector.shape_cast %42 : vector<1x16xf32> to vector<1x16x1xf32>
    %44 = vector.broadcast %43 : vector<1x16x1xf32> to vector<1x16x16xf32>
    %45 = arith.subf %41, %44 : vector<1x16x16xf32>
    %46 = math.exp %45 : vector<1x16x16xf32>
    %cst_16 = arith.constant dense<0.000000e+00> : vector<1x16xf32>
    %47 = vector.multi_reduction <add>, %46, %cst_16 [2] : vector<1x16x16xf32> to vector<1x16xf32>
    %48 = vector.shape_cast %47 : vector<1x16xf32> to vector<1x16x1xf32>
    %49 = tpu.reciprocal %48 : vector<1x16x1xf32> -> vector<1x16x1xf32>
    %50 = vector.broadcast %49 : vector<1x16x1xf32> to vector<1x16x16xf32>
    %51 = arith.mulf %46, %50 : vector<1x16x16xf32>
    %52 = arith.truncf %51 : vector<1x16x16xf32> to vector<1x16x16xbf16>
    "tpu.trace_start"() <{level = 10 : i32, message = "bqk,bkd->bqd"}> : () -> ()
    %cst_17 = arith.constant dense<0.000000e+00> : vector<1x16x8xf32>
    %53 = tpu.matmul %52, %38, %cst_17 {dimension_numbers = #tpu.dot_dimension_numbers<[2], [1], [1], [2], [0, 0, 0, 1, 1, 2], [0], [0]>} : vector<1x16x16xbf16>, vector<1x16x8xbf16>, vector<1x16x8xf32> -> vector<1x16x8xf32>
    "tpu.trace_stop"() : () -> ()
    %54 = vector.shape_cast %53 : vector<1x16x8xf32> to vector<16x8xf32>
    %55 = arith.truncf %54 : vector<16x8xf32> to vector<16x8xbf16>
    %c0_18 = arith.constant 0 : index
    %c0_19 = arith.constant 0 : index
    %56 = vector.load %arg25[%c0_18, %c0_19] : memref<16x32xbf16, #tpu.memory_space<vmem>>, vector<16x8xbf16>
    tpu.vector_store %arg25[%c0_18, %c0_19], %55 {strides = array<i32>} : memref<16x32xbf16, #tpu.memory_space<vmem>>, vector<16x8xbf16>,
    %57 = vector.extract_strided_slice %30 {offsets = [0, 8], sizes = [16, 8], strides = [1, 1]} : vector<16x32xbf16> to vector<16x8xbf16>
    %58 = vector.shape_cast %57 : vector<16x8xbf16> to vector<1x16x8xbf16>
    %59 = vector.extract_strided_slice %31 {offsets = [0, 8], sizes = [16, 8], strides = [1, 1]} : vector<16x32xbf16> to vector<16x8xbf16>
    %60 = vector.shape_cast %59 : vector<16x8xbf16> to vector<1x16x8xbf16>
    %61 = vector.extract_strided_slice %32 {offsets = [0, 8], sizes = [16, 8], strides = [1, 1]} : vector<16x32xbf16> to vector<16x8xbf16>
    %62 = vector.shape_cast %61 : vector<16x8xbf16> to vector<1x16x8xbf16>
    "tpu.trace_start"() <{level = 10 : i32, message = "bqd,bkd->bqk"}> : () -> ()
    %cst_20 = arith.constant dense<0.000000e+00> : vector<1x16x16xf32>
    %63 = tpu.matmul %58, %60, %cst_20 {dimension_numbers = #tpu.dot_dimension_numbers<[2], [2], [1], [1], [0, 0, 0, 1, 1, 1], [0], [0]>} : vector<1x16x8xbf16>, vector<1x16x8xbf16>, vector<1x16x16xf32> -> vector<1x16x16xf32>
    "tpu.trace_stop"() : () -> ()
    %cst_21 = arith.constant 0.353553385 : f32
    %64 = vector.broadcast %cst_21 : f32 to vector<1x16x16xf32>
    %65 = arith.mulf %63, %64 : vector<1x16x16xf32>
    %cst_22 = arith.constant dense<0xFF800000> : vector<1x16xf32>
    %66 = vector.multi_reduction <maximumf>, %65, %cst_22 [2] : vector<1x16x16xf32> to vector<1x16xf32>
    %67 = vector.shape_cast %66 : vector<1x16xf32> to vector<1x16x1xf32>
    %68 = vector.broadcast %67 : vector<1x16x1xf32> to vector<1x16x16xf32>
    %69 = arith.subf %65, %68 : vector<1x16x16xf32>
    %70 = math.exp %69 : vector<1x16x16xf32>
    %cst_23 = arith.constant dense<0.000000e+00> : vector<1x16xf32>
    %71 = vector.multi_reduction <add>, %70, %cst_23 [2] : vector<1x16x16xf32> to vector<1x16xf32>
    %72 = vector.shape_cast %71 : vector<1x16xf32> to vector<1x16x1xf32>
    %73 = tpu.reciprocal %72 : vector<1x16x1xf32> -> vector<1x16x1xf32>
    %74 = vector.broadcast %73 : vector<1x16x1xf32> to vector<1x16x16xf32>
    %75 = arith.mulf %70, %74 : vector<1x16x16xf32>
    %76 = arith.truncf %75 : vector<1x16x16xf32> to vector<1x16x16xbf16>
    "tpu.trace_start"() <{level = 10 : i32, message = "bqk,bkd->bqd"}> : () -> ()
    %cst_24 = arith.constant dense<0.000000e+00> : vector<1x16x8xf32>
    %77 = tpu.matmul %76, %62, %cst_24 {dimension_numbers = #tpu.dot_dimension_numbers<[2], [1], [1], [2], [0, 0, 0, 1, 1, 2], [0], [0]>} : vector<1x16x16xbf16>, vector<1x16x8xbf16>, vector<1x16x8xf32> -> vector<1x16x8xf32>
    "tpu.trace_stop"() : () -> ()
    %78 = vector.shape_cast %77 : vector<1x16x8xf32> to vector<16x8xf32>
    %79 = arith.truncf %78 : vector<16x8xf32> to vector<16x8xbf16>
    %c0_25 = arith.constant 0 : index
    %c8 = arith.constant 8 : index
    %80 = vector.load %arg25[%c0_25, %c8] : memref<16x32xbf16, #tpu.memory_space<vmem>>, vector<16x8xbf16>
    tpu.vector_store %arg25[%c0_25, %c8], %79 {strides = array<i32>} : memref<16x32xbf16, #tpu.memory_space<vmem>>, vector<16x8xbf16>,
    %81 = vector.extract_strided_slice %30 {offsets = [0, 16], sizes = [16, 8], strides = [1, 1]} : vector<16x32xbf16> to vector<16x8xbf16>
    %82 = vector.shape_cast %81 : vector<16x8xbf16> to vector<1x16x8xbf16>
    %83 = vector.extract_strided_slice %31 {offsets = [0, 16], sizes = [16, 8], strides = [1, 1]} : vector<16x32xbf16> to vector<16x8xbf16>
    %84 = vector.shape_cast %83 : vector<16x8xbf16> to vector<1x16x8xbf16>
    %85 = vector.extract_strided_slice %32 {offsets = [0, 16], sizes = [16, 8], strides = [1, 1]} : vector<16x32xbf16> to vector<16x8xbf16>
    %86 = vector.shape_cast %85 : vector<16x8xbf16> to vector<1x16x8xbf16>
    "tpu.trace_start"() <{level = 10 : i32, message = "bqd,bkd->bqk"}> : () -> ()
    %cst_26 = arith.constant dense<0.000000e+00> : vector<1x16x16xf32>
    %87 = tpu.matmul %82, %84, %cst_26 {dimension_numbers = #tpu.dot_dimension_numbers<[2], [2], [1], [1], [0, 0, 0, 1, 1, 1], [0], [0]>} : vector<1x16x8xbf16>, vector<1x16x8xbf16>, vector<1x16x16xf32> -> vector<1x16x16xf32>
    "tpu.trace_stop"() : () -> ()
    %cst_27 = arith.constant 0.353553385 : f32
    %88 = vector.broadcast %cst_27 : f32 to vector<1x16x16xf32>
    %89 = arith.mulf %87, %88 : vector<1x16x16xf32>
    %cst_28 = arith.constant dense<0xFF800000> : vector<1x16xf32>
    %90 = vector.multi_reduction <maximumf>, %89, %cst_28 [2] : vector<1x16x16xf32> to vector<1x16xf32>
    %91 = vector.shape_cast %90 : vector<1x16xf32> to vector<1x16x1xf32>
    %92 = vector.broadcast %91 : vector<1x16x1xf32> to vector<1x16x16xf32>
    %93 = arith.subf %89, %92 : vector<1x16x16xf32>
    %94 = math.exp %93 : vector<1x16x16xf32>
    %cst_29 = arith.constant dense<0.000000e+00> : vector<1x16xf32>
    %95 = vector.multi_reduction <add>, %94, %cst_29 [2] : vector<1x16x16xf32> to vector<1x16xf32>
    %96 = vector.shape_cast %95 : vector<1x16xf32> to vector<1x16x1xf32>
    %97 = tpu.reciprocal %96 : vector<1x16x1xf32> -> vector<1x16x1xf32>
    %98 = vector.broadcast %97 : vector<1x16x1xf32> to vector<1x16x16xf32>
    %99 = arith.mulf %94, %98 : vector<1x16x16xf32>
    %100 = arith.truncf %99 : vector<1x16x16xf32> to vector<1x16x16xbf16>
    "tpu.trace_start"() <{level = 10 : i32, message = "bqk,bkd->bqd"}> : () -> ()
    %cst_30 = arith.constant dense<0.000000e+00> : vector<1x16x8xf32>
    %101 = tpu.matmul %100, %86, %cst_30 {dimension_numbers = #tpu.dot_dimension_numbers<[2], [1], [1], [2], [0, 0, 0, 1, 1, 2], [0], [0]>} : vector<1x16x16xbf16>, vector<1x16x8xbf16>, vector<1x16x8xf32> -> vector<1x16x8xf32>
    "tpu.trace_stop"() : () -> ()
    %102 = vector.shape_cast %101 : vector<1x16x8xf32> to vector<16x8xf32>
    %103 = arith.truncf %102 : vector<16x8xf32> to vector<16x8xbf16>
    %c0_31 = arith.constant 0 : index
    %c16 = arith.constant 16 : index
    %104 = vector.load %arg25[%c0_31, %c16] : memref<16x32xbf16, #tpu.memory_space<vmem>>, vector<16x8xbf16>
    tpu.vector_store %arg25[%c0_31, %c16], %103 {strides = array<i32>} : memref<16x32xbf16, #tpu.memory_space<vmem>>, vector<16x8xbf16>,
    %105 = vector.extract_strided_slice %30 {offsets = [0, 24], sizes = [16, 8], strides = [1, 1]} : vector<16x32xbf16> to vector<16x8xbf16>
    %106 = vector.shape_cast %105 : vector<16x8xbf16> to vector<1x16x8xbf16>
    %107 = vector.extract_strided_slice %31 {offsets = [0, 24], sizes = [16, 8], strides = [1, 1]} : vector<16x32xbf16> to vector<16x8xbf16>
    %108 = vector.shape_cast %107 : vector<16x8xbf16> to vector<1x16x8xbf16>
    %109 = vector.extract_strided_slice %32 {offsets = [0, 24], sizes = [16, 8], strides = [1, 1]} : vector<16x32xbf16> to vector<16x8xbf16>
    %110 = vector.shape_cast %109 : vector<16x8xbf16> to vector<1x16x8xbf16>
    "tpu.trace_start"() <{level = 10 : i32, message = "bqd,bkd->bqk"}> : () -> ()
    %cst_32 = arith.constant dense<0.000000e+00> : vector<1x16x16xf32>
    %111 = tpu.matmul %106, %108, %cst_32 {dimension_numbers = #tpu.dot_dimension_numbers<[2], [2], [1], [1], [0, 0, 0, 1, 1, 1], [0], [0]>} : vector<1x16x8xbf16>, vector<1x16x8xbf16>, vector<1x16x16xf32> -> vector<1x16x16xf32>
    "tpu.trace_stop"() : () -> ()
    %cst_33 = arith.constant 0.353553385 : f32
    %112 = vector.broadcast %cst_33 : f32 to vector<1x16x16xf32>
    %113 = arith.mulf %111, %112 : vector<1x16x16xf32>
    %cst_34 = arith.constant dense<0xFF800000> : vector<1x16xf32>
    %114 = vector.multi_reduction <maximumf>, %113, %cst_34 [2] : vector<1x16x16xf32> to vector<1x16xf32>
    %115 = vector.shape_cast %114 : vector<1x16xf32> to vector<1x16x1xf32>
    %116 = vector.broadcast %115 : vector<1x16x1xf32> to vector<1x16x16xf32>
    %117 = arith.subf %113, %116 : vector<1x16x16xf32>
    %118 = math.exp %117 : vector<1x16x16xf32>
    %cst_35 = arith.constant dense<0.000000e+00> : vector<1x16xf32>
    %119 = vector.multi_reduction <add>, %118, %cst_35 [2] : vector<1x16x16xf32> to vector<1x16xf32>
    %120 = vector.shape_cast %119 : vector<1x16xf32> to vector<1x16x1xf32>
    %121 = tpu.reciprocal %120 : vector<1x16x1xf32> -> vector<1x16x1xf32>
    %122 = vector.broadcast %121 : vector<1x16x1xf32> to vector<1x16x16xf32>
    %123 = arith.mulf %118, %122 : vector<1x16x16xf32>
    %124 = arith.truncf %123 : vector<1x16x16xf32> to vector<1x16x16xbf16>
    "tpu.trace_start"() <{level = 10 : i32, message = "bqk,bkd->bqd"}> : () -> ()
    %cst_36 = arith.constant dense<0.000000e+00> : vector<1x16x8xf32>
    %125 = tpu.matmul %124, %110, %cst_36 {dimension_numbers = #tpu.dot_dimension_numbers<[2], [1], [1], [2], [0, 0, 0, 1, 1, 2], [0], [0]>} : vector<1x16x16xbf16>, vector<1x16x8xbf16>, vector<1x16x8xf32> -> vector<1x16x8xf32>
    "tpu.trace_stop"() : () -> ()
    %126 = vector.shape_cast %125 : vector<1x16x8xf32> to vector<16x8xf32>
    %127 = arith.truncf %126 : vector<16x8xf32> to vector<16x8xbf16>
    %c0_37 = arith.constant 0 : index
    %c24 = arith.constant 24 : index
    %128 = vector.load %arg25[%c0_37, %c24] : memref<16x32xbf16, #tpu.memory_space<vmem>>, vector<16x8xbf16>
    tpu.vector_store %arg25[%c0_37, %c24], %127 {strides = array<i32>} : memref<16x32xbf16, #tpu.memory_space<vmem>>, vector<16x8xbf16>,
    %c0_38 = arith.constant 0 : index
    %c0_39 = arith.constant 0 : index
    %129 = vector.load %arg25[%c0_38, %c0_39] : memref<16x32xbf16, #tpu.memory_space<vmem>>, vector<16x32xbf16>
    %c0_40 = arith.constant 0 : index
    %c0_41 = arith.constant 0 : index
    %130 = vector.load %arg7[%c0_40, %c0_41] : memref<32x32xbf16, #tpu.memory_space<vmem>>, vector<32x32xbf16>
    %cst_42 = arith.constant dense<0.000000e+00> : vector<16x32xf32>
    %131 = tpu.matmul %129, %130, %cst_42 {dimension_numbers = #tpu.dot_dimension_numbers<[1], [0], [0], [1], [0, 0, 1, 1], [], []>} : vector<16x32xbf16>, vector<32x32xbf16>, vector<16x32xf32> -> vector<16x32xf32>
    %132 = arith.addf %1, %131 : vector<16x32xf32>
    %c0_43 = arith.constant 0 : index
    %c0_44 = arith.constant 0 : index
    %133 = vector.load %arg8[%c0_43, %c0_44] : memref<1x32xf32, #tpu.memory_space<vmem>>, vector<1x32xf32>
    %134 = vector.broadcast %133 : vector<1x32xf32> to vector<16x32xf32>
    %135 = arith.addf %132, %134 : vector<16x32xf32>
    %c0_45 = arith.constant 0 : index
    %c0_46 = arith.constant 0 : index
    %136 = vector.load %arg9[%c0_45, %c0_46] : memref<1x32xf32, #tpu.memory_space<vmem>>, vector<1x32xf32>
    %c0_47 = arith.constant 0 : index
    %c0_48 = arith.constant 0 : index
    %137 = vector.load %arg10[%c0_47, %c0_48] : memref<1x32xf32, #tpu.memory_space<vmem>>, vector<1x32xf32>
    %cst_49 = arith.constant dense<0.000000e+00> : vector<16xf32>
    %138 = vector.multi_reduction <add>, %135, %cst_49 [1] : vector<16x32xf32> to vector<16xf32>
    %139 = vector.shape_cast %138 : vector<16xf32> to vector<16x1xf32>
    %cst_50 = arith.constant 3.200000e+01 : f32
    %140 = vector.broadcast %cst_50 : f32 to vector<16x1xf32>
    %141 = arith.divf %139, %140 : vector<16x1xf32>
    %142 = vector.broadcast %141 : vector<16x1xf32> to vector<16x32xf32>
    %143 = arith.subf %135, %142 : vector<16x32xf32>
    %144 = arith.mulf %143, %143 : vector<16x32xf32>
    %cst_51 = arith.constant dense<0.000000e+00> : vector<16xf32>
    %145 = vector.multi_reduction <add>, %144, %cst_51 [1] : vector<16x32xf32> to vector<16xf32>
    %146 = vector.shape_cast %145 : vector<16xf32> to vector<16x1xf32>
    %cst_52 = arith.constant 3.200000e+01 : f32
    %147 = vector.broadcast %cst_52 : f32 to vector<16x1xf32>
    %148 = arith.divf %146, %147 : vector<16x1xf32>
    %149 = vector.broadcast %141 : vector<16x1xf32> to vector<16x32xf32>
    %150 = arith.subf %135, %149 : vector<16x32xf32>
    %cst_53 = arith.constant 9.99999974E-6 : f32
    %151 = vector.broadcast %cst_53 : f32 to vector<16x1xf32>
    %152 = arith.addf %148, %151 : vector<16x1xf32>
    %153 = math.rsqrt %152 : vector<16x1xf32>
    %154 = vector.broadcast %153 : vector<16x1xf32> to vector<16x32xf32>
    %155 = arith.mulf %150, %154 : vector<16x32xf32>
    %156 = vector.broadcast %136 : vector<1x32xf32> to vector<16x32xf32>
    %157 = arith.mulf %155, %156 : vector<16x32xf32>
    %158 = vector.broadcast %137 : vector<1x32xf32> to vector<16x32xf32>
    %159 = arith.addf %157, %158 : vector<16x32xf32>
    %160 = arith.truncf %159 : vector<16x32xf32> to vector<16x32xbf16>
    %c0_54 = arith.constant 0 : index
    %c0_55 = arith.constant 0 : index
    %161 = vector.load %arg13[%c0_54, %c0_55] : memref<32x32xbf16, #tpu.memory_space<vmem>>, vector<32x32xbf16>
    %cst_56 = arith.constant dense<0.000000e+00> : vector<16x32xf32>
    %162 = tpu.matmul %160, %161, %cst_56 {dimension_numbers = #tpu.dot_dimension_numbers<[1], [0], [0], [1], [0, 0, 1, 1], [], []>} : vector<16x32xbf16>, vector<32x32xbf16>, vector<16x32xf32> -> vector<16x32xf32>
    %163 = arith.truncf %162 : vector<16x32xf32> to vector<16x32xbf16>
    %cst_57 = arith.constant -1.000000e+30 : f32
    %164 = vector.broadcast %cst_57 : f32 to vector<1x16x1xf32>
    %cst_58 = arith.constant -1.000000e+30 : f32
    %165 = vector.broadcast %cst_58 : f32 to vector<1x16x1xf32>
    %cst_59 = arith.constant -1.000000e+30 : f32
    %166 = vector.broadcast %cst_59 : f32 to vector<1x16x1xf32>
    %cst_60 = arith.constant -1.000000e+30 : f32
    %167 = vector.broadcast %cst_60 : f32 to vector<1x16x1xf32>
    %cst_61 = arith.constant 0.000000e+00 : f32
    %168 = vector.broadcast %cst_61 : f32 to vector<1x16x1xf32>
    %cst_62 = arith.constant 0.000000e+00 : f32
    %169 = vector.broadcast %cst_62 : f32 to vector<1x16x1xf32>
    %cst_63 = arith.constant 0.000000e+00 : f32
    %170 = vector.broadcast %cst_63 : f32 to vector<1x16x1xf32>
    %cst_64 = arith.constant 0.000000e+00 : f32
    %171 = vector.broadcast %cst_64 : f32 to vector<1x16x1xf32>
    %cst_65 = arith.constant 0.000000e+00 : f32
    %172 = vector.broadcast %cst_65 : f32 to vector<1x16x8xf32>
    %cst_66 = arith.constant 0.000000e+00 : f32
    %173 = vector.broadcast %cst_66 : f32 to vector<1x16x8xf32>
    %cst_67 = arith.constant 0.000000e+00 : f32
    %174 = vector.broadcast %cst_67 : f32 to vector<1x16x8xf32>
    %cst_68 = arith.constant 0.000000e+00 : f32
    %175 = vector.broadcast %cst_68 : f32 to vector<1x16x8xf32>
    %c0_69 = arith.constant 0 : index
    %c0_70 = arith.constant 0 : index
    %c0_71 = arith.constant 0 : index
    %176 = vector.load %arg2[%c0_69, %c0_70, %c0_71] : memref<1x16x32xf32, #tpu.memory_space<vmem>>, vector<1x8x32xf32>
    %177 = vector.shape_cast %176 : vector<1x8x32xf32> to vector<8x32xf32>
    %c0_72 = arith.constant 0 : index
    %c0_73 = arith.constant 0 : index
    %178 = vector.load %arg11[%c0_72, %c0_73] : memref<1x32xf32, #tpu.memory_space<vmem>>, vector<1x32xf32>
    %c0_74 = arith.constant 0 : index
    %c0_75 = arith.constant 0 : index
    %179 = vector.load %arg12[%c0_74, %c0_75] : memref<1x32xf32, #tpu.memory_space<vmem>>, vector<1x32xf32>
    %cst_76 = arith.constant dense<0.000000e+00> : vector<8xf32>
    %180 = vector.multi_reduction <add>, %177, %cst_76 [1] : vector<8x32xf32> to vector<8xf32>
    %181 = vector.shape_cast %180 : vector<8xf32> to vector<8x1xf32>
    %cst_77 = arith.constant 3.200000e+01 : f32
    %182 = vector.broadcast %cst_77 : f32 to vector<8x1xf32>
    %183 = arith.divf %181, %182 : vector<8x1xf32>
    %184 = vector.broadcast %183 : vector<8x1xf32> to vector<8x32xf32>
    %185 = arith.subf %177, %184 : vector<8x32xf32>
    %186 = arith.mulf %185, %185 : vector<8x32xf32>
    %cst_78 = arith.constant dense<0.000000e+00> : vector<8xf32>
    %187 = vector.multi_reduction <add>, %186, %cst_78 [1] : vector<8x32xf32> to vector<8xf32>
    %188 = vector.shape_cast %187 : vector<8xf32> to vector<8x1xf32>
    %cst_79 = arith.constant 3.200000e+01 : f32
    %189 = vector.broadcast %cst_79 : f32 to vector<8x1xf32>
    %190 = arith.divf %188, %189 : vector<8x1xf32>
    %191 = vector.broadcast %183 : vector<8x1xf32> to vector<8x32xf32>
    %192 = arith.subf %177, %191 : vector<8x32xf32>
    %cst_80 = arith.constant 9.99999974E-6 : f32
    %193 = vector.broadcast %cst_80 : f32 to vector<8x1xf32>
    %194 = arith.addf %190, %193 : vector<8x1xf32>
    %195 = math.rsqrt %194 : vector<8x1xf32>
    %196 = vector.broadcast %195 : vector<8x1xf32> to vector<8x32xf32>
    %197 = arith.mulf %192, %196 : vector<8x32xf32>
    %198 = vector.broadcast %178 : vector<1x32xf32> to vector<8x32xf32>
    %199 = arith.mulf %197, %198 : vector<8x32xf32>
    %200 = vector.broadcast %179 : vector<1x32xf32> to vector<8x32xf32>
    %201 = arith.addf %199, %200 : vector<8x32xf32>
    %202 = arith.truncf %201 : vector<8x32xf32> to vector<8x32xbf16>
    %c0_81 = arith.constant 0 : index
    %c0_82 = arith.constant 0 : index
    %203 = vector.load %arg14[%c0_81, %c0_82] : memref<32x32xbf16, #tpu.memory_space<vmem>>, vector<32x32xbf16>
    %cst_83 = arith.constant dense<0.000000e+00> : vector<8x32xf32>
    %204 = tpu.matmul %202, %203, %cst_83 {dimension_numbers = #tpu.dot_dimension_numbers<[1], [0], [0], [1], [0, 0, 1, 1], [], []>} : vector<8x32xbf16>, vector<32x32xbf16>, vector<8x32xf32> -> vector<8x32xf32>
    %205 = arith.truncf %204 : vector<8x32xf32> to vector<8x32xbf16>
    %c0_84 = arith.constant 0 : index
    %c0_85 = arith.constant 0 : index
    %206 = vector.load %arg15[%c0_84, %c0_85] : memref<32x32xbf16, #tpu.memory_space<vmem>>, vector<32x32xbf16>
    %cst_86 = arith.constant dense<0.000000e+00> : vector<8x32xf32>
    %207 = tpu.matmul %202, %206, %cst_86 {dimension_numbers = #tpu.dot_dimension_numbers<[1], [0], [0], [1], [0, 0, 1, 1], [], []>} : vector<8x32xbf16>, vector<32x32xbf16>, vector<8x32xf32> -> vector<8x32xf32>
    %208 = arith.truncf %207 : vector<8x32xf32> to vector<8x32xbf16>
    %c0_87 = arith.constant 0 : index
    %c0_88 = arith.constant 0 : index
    %209 = vector.load %arg3[%c0_87, %c0_88] : memref<16x16xf32, #tpu.memory_space<vmem>>, vector<16x8xf32>
    %210 = vector.shape_cast %209 : vector<16x8xf32> to vector<1x16x8xf32>
    %211 = vector.extract_strided_slice %163 {offsets = [0, 0], sizes = [16, 8], strides = [1, 1]} : vector<16x32xbf16> to vector<16x8xbf16>
    %212 = vector.shape_cast %211 : vector<16x8xbf16> to vector<1x16x8xbf16>
    %213 = vector.extract_strided_slice %205 {offsets = [0, 0], sizes = [8, 8], strides = [1, 1]} : vector<8x32xbf16> to vector<8x8xbf16>
    %214 = vector.shape_cast %213 : vector<8x8xbf16> to vector<1x8x8xbf16>
    %215 = vector.extract_strided_slice %208 {offsets = [0, 0], sizes = [8, 8], strides = [1, 1]} : vector<8x32xbf16> to vector<8x8xbf16>
    %216 = vector.shape_cast %215 : vector<8x8xbf16> to vector<1x8x8xbf16>
    "tpu.trace_start"() <{level = 10 : i32, message = "bqd,bkd->bqk"}> : () -> ()
    %cst_89 = arith.constant dense<0.000000e+00> : vector<1x16x8xf32>
    %217 = tpu.matmul %212, %214, %cst_89 {dimension_numbers = #tpu.dot_dimension_numbers<[2], [2], [1], [1], [0, 0, 0, 1, 1, 1], [0], [0]>} : vector<1x16x8xbf16>, vector<1x8x8xbf16>, vector<1x16x8xf32> -> vector<1x16x8xf32>
    "tpu.trace_stop"() : () -> ()
    %cst_90 = arith.constant 0.353553385 : f32
    %218 = vector.broadcast %cst_90 : f32 to vector<1x16x8xf32>
    %219 = arith.mulf %217, %218 : vector<1x16x8xf32>
    %220 = arith.addf %219, %210 : vector<1x16x8xf32>
    %cst_91 = arith.constant dense<0xFF800000> : vector<1x16xf32>
    %221 = vector.multi_reduction <maximumf>, %220, %cst_91 [2] : vector<1x16x8xf32> to vector<1x16xf32>
    %222 = vector.shape_cast %221 : vector<1x16xf32> to vector<1x16x1xf32>
    %223 = arith.maximumf %164, %222 : vector<1x16x1xf32>
    %224 = arith.subf %164, %223 : vector<1x16x1xf32>
    %225 = math.exp %224 : vector<1x16x1xf32>
    %226 = vector.broadcast %223 : vector<1x16x1xf32> to vector<1x16x8xf32>
    %227 = arith.subf %220, %226 : vector<1x16x8xf32>
    %228 = math.exp %227 : vector<1x16x8xf32>
    %229 = arith.mulf %225, %168 : vector<1x16x1xf32>
    %cst_92 = arith.constant dense<0.000000e+00> : vector<1x16xf32>
    %230 = vector.multi_reduction <add>, %228, %cst_92 [2] : vector<1x16x8xf32> to vector<1x16xf32>
    %231 = vector.shape_cast %230 : vector<1x16xf32> to vector<1x16x1xf32>
    %232 = arith.addf %229, %231 : vector<1x16x1xf32>
    %233 = vector.broadcast %225 : vector<1x16x1xf32> to vector<1x16x8xf32>
    %234 = arith.mulf %233, %172 : vector<1x16x8xf32>
    %235 = arith.truncf %228 : vector<1x16x8xf32> to vector<1x16x8xbf16>
    "tpu.trace_start"() <{level = 10 : i32, message = "bqk,bkd->bqd"}> : () -> ()
    %cst_93 = arith.constant dense<0.000000e+00> : vector<1x16x8xf32>
    %236 = tpu.matmul %235, %216, %cst_93 {dimension_numbers = #tpu.dot_dimension_numbers<[2], [1], [1], [2], [0, 0, 0, 1, 1, 2], [0], [0]>} : vector<1x16x8xbf16>, vector<1x8x8xbf16>, vector<1x16x8xf32> -> vector<1x16x8xf32>
    "tpu.trace_stop"() : () -> ()
    %237 = arith.addf %234, %236 : vector<1x16x8xf32>
    %238 = vector.extract_strided_slice %163 {offsets = [0, 8], sizes = [16, 8], strides = [1, 1]} : vector<16x32xbf16> to vector<16x8xbf16>
    %239 = vector.shape_cast %238 : vector<16x8xbf16> to vector<1x16x8xbf16>
    %240 = vector.extract_strided_slice %205 {offsets = [0, 8], sizes = [8, 8], strides = [1, 1]} : vector<8x32xbf16> to vector<8x8xbf16>
    %241 = vector.shape_cast %240 : vector<8x8xbf16> to vector<1x8x8xbf16>
    %242 = vector.extract_strided_slice %208 {offsets = [0, 8], sizes = [8, 8], strides = [1, 1]} : vector<8x32xbf16> to vector<8x8xbf16>
    %243 = vector.shape_cast %242 : vector<8x8xbf16> to vector<1x8x8xbf16>
    "tpu.trace_start"() <{level = 10 : i32, message = "bqd,bkd->bqk"}> : () -> ()
    %cst_94 = arith.constant dense<0.000000e+00> : vector<1x16x8xf32>
    %244 = tpu.matmul %239, %241, %cst_94 {dimension_numbers = #tpu.dot_dimension_numbers<[2], [2], [1], [1], [0, 0, 0, 1, 1, 1], [0], [0]>} : vector<1x16x8xbf16>, vector<1x8x8xbf16>, vector<1x16x8xf32> -> vector<1x16x8xf32>
    "tpu.trace_stop"() : () -> ()
    %cst_95 = arith.constant 0.353553385 : f32
    %245 = vector.broadcast %cst_95 : f32 to vector<1x16x8xf32>
    %246 = arith.mulf %244, %245 : vector<1x16x8xf32>
    %247 = arith.addf %246, %210 : vector<1x16x8xf32>
    %cst_96 = arith.constant dense<0xFF800000> : vector<1x16xf32>
    %248 = vector.multi_reduction <maximumf>, %247, %cst_96 [2] : vector<1x16x8xf32> to vector<1x16xf32>
    %249 = vector.shape_cast %248 : vector<1x16xf32> to vector<1x16x1xf32>
    %250 = arith.maximumf %165, %249 : vector<1x16x1xf32>
    %251 = arith.subf %165, %250 : vector<1x16x1xf32>
    %252 = math.exp %251 : vector<1x16x1xf32>
    %253 = vector.broadcast %250 : vector<1x16x1xf32> to vector<1x16x8xf32>
    %254 = arith.subf %247, %253 : vector<1x16x8xf32>
    %255 = math.exp %254 : vector<1x16x8xf32>
    %256 = arith.mulf %252, %169 : vector<1x16x1xf32>
    %cst_97 = arith.constant dense<0.000000e+00> : vector<1x16xf32>
    %257 = vector.multi_reduction <add>, %255, %cst_97 [2] : vector<1x16x8xf32> to vector<1x16xf32>
    %258 = vector.shape_cast %257 : vector<1x16xf32> to vector<1x16x1xf32>
    %259 = arith.addf %256, %258 : vector<1x16x1xf32>
    %260 = vector.broadcast %252 : vector<1x16x1xf32> to vector<1x16x8xf32>
    %261 = arith.mulf %260, %173 : vector<1x16x8xf32>
    %262 = arith.truncf %255 : vector<1x16x8xf32> to vector<1x16x8xbf16>
    "tpu.trace_start"() <{level = 10 : i32, message = "bqk,bkd->bqd"}> : () -> ()
    %cst_98 = arith.constant dense<0.000000e+00> : vector<1x16x8xf32>
    %263 = tpu.matmul %262, %243, %cst_98 {dimension_numbers = #tpu.dot_dimension_numbers<[2], [1], [1], [2], [0, 0, 0, 1, 1, 2], [0], [0]>} : vector<1x16x8xbf16>, vector<1x8x8xbf16>, vector<1x16x8xf32> -> vector<1x16x8xf32>
    "tpu.trace_stop"() : () -> ()
    %264 = arith.addf %261, %263 : vector<1x16x8xf32>
    %265 = vector.extract_strided_slice %163 {offsets = [0, 16], sizes = [16, 8], strides = [1, 1]} : vector<16x32xbf16> to vector<16x8xbf16>
    %266 = vector.shape_cast %265 : vector<16x8xbf16> to vector<1x16x8xbf16>
    %267 = vector.extract_strided_slice %205 {offsets = [0, 16], sizes = [8, 8], strides = [1, 1]} : vector<8x32xbf16> to vector<8x8xbf16>
    %268 = vector.shape_cast %267 : vector<8x8xbf16> to vector<1x8x8xbf16>
    %269 = vector.extract_strided_slice %208 {offsets = [0, 16], sizes = [8, 8], strides = [1, 1]} : vector<8x32xbf16> to vector<8x8xbf16>
    %270 = vector.shape_cast %269 : vector<8x8xbf16> to vector<1x8x8xbf16>
    "tpu.trace_start"() <{level = 10 : i32, message = "bqd,bkd->bqk"}> : () -> ()
    %cst_99 = arith.constant dense<0.000000e+00> : vector<1x16x8xf32>
    %271 = tpu.matmul %266, %268, %cst_99 {dimension_numbers = #tpu.dot_dimension_numbers<[2], [2], [1], [1], [0, 0, 0, 1, 1, 1], [0], [0]>} : vector<1x16x8xbf16>, vector<1x8x8xbf16>, vector<1x16x8xf32> -> vector<1x16x8xf32>
    "tpu.trace_stop"() : () -> ()
    %cst_100 = arith.constant 0.353553385 : f32
    %272 = vector.broadcast %cst_100 : f32 to vector<1x16x8xf32>
    %273 = arith.mulf %271, %272 : vector<1x16x8xf32>
    %274 = arith.addf %273, %210 : vector<1x16x8xf32>
    %cst_101 = arith.constant dense<0xFF800000> : vector<1x16xf32>
    %275 = vector.multi_reduction <maximumf>, %274, %cst_101 [2] : vector<1x16x8xf32> to vector<1x16xf32>
    %276 = vector.shape_cast %275 : vector<1x16xf32> to vector<1x16x1xf32>
    %277 = arith.maximumf %166, %276 : vector<1x16x1xf32>
    %278 = arith.subf %166, %277 : vector<1x16x1xf32>
    %279 = math.exp %278 : vector<1x16x1xf32>
    %280 = vector.broadcast %277 : vector<1x16x1xf32> to vector<1x16x8xf32>
    %281 = arith.subf %274, %280 : vector<1x16x8xf32>
    %282 = math.exp %281 : vector<1x16x8xf32>
    %283 = arith.mulf %279, %170 : vector<1x16x1xf32>
    %cst_102 = arith.constant dense<0.000000e+00> : vector<1x16xf32>
    %284 = vector.multi_reduction <add>, %282, %cst_102 [2] : vector<1x16x8xf32> to vector<1x16xf32>
    %285 = vector.shape_cast %284 : vector<1x16xf32> to vector<1x16x1xf32>
    %286 = arith.addf %283, %285 : vector<1x16x1xf32>
    %287 = vector.broadcast %279 : vector<1x16x1xf32> to vector<1x16x8xf32>
    %288 = arith.mulf %287, %174 : vector<1x16x8xf32>
    %289 = arith.truncf %282 : vector<1x16x8xf32> to vector<1x16x8xbf16>
    "tpu.trace_start"() <{level = 10 : i32, message = "bqk,bkd->bqd"}> : () -> ()
    %cst_103 = arith.constant dense<0.000000e+00> : vector<1x16x8xf32>
    %290 = tpu.matmul %289, %270, %cst_103 {dimension_numbers = #tpu.dot_dimension_numbers<[2], [1], [1], [2], [0, 0, 0, 1, 1, 2], [0], [0]>} : vector<1x16x8xbf16>, vector<1x8x8xbf16>, vector<1x16x8xf32> -> vector<1x16x8xf32>
    "tpu.trace_stop"() : () -> ()
    %291 = arith.addf %288, %290 : vector<1x16x8xf32>
    %292 = vector.extract_strided_slice %163 {offsets = [0, 24], sizes = [16, 8], strides = [1, 1]} : vector<16x32xbf16> to vector<16x8xbf16>
    %293 = vector.shape_cast %292 : vector<16x8xbf16> to vector<1x16x8xbf16>
    %294 = vector.extract_strided_slice %205 {offsets = [0, 24], sizes = [8, 8], strides = [1, 1]} : vector<8x32xbf16> to vector<8x8xbf16>
    %295 = vector.shape_cast %294 : vector<8x8xbf16> to vector<1x8x8xbf16>
    %296 = vector.extract_strided_slice %208 {offsets = [0, 24], sizes = [8, 8], strides = [1, 1]} : vector<8x32xbf16> to vector<8x8xbf16>
    %297 = vector.shape_cast %296 : vector<8x8xbf16> to vector<1x8x8xbf16>
    "tpu.trace_start"() <{level = 10 : i32, message = "bqd,bkd->bqk"}> : () -> ()
    %cst_104 = arith.constant dense<0.000000e+00> : vector<1x16x8xf32>
    %298 = tpu.matmul %293, %295, %cst_104 {dimension_numbers = #tpu.dot_dimension_numbers<[2], [2], [1], [1], [0, 0, 0, 1, 1, 1], [0], [0]>} : vector<1x16x8xbf16>, vector<1x8x8xbf16>, vector<1x16x8xf32> -> vector<1x16x8xf32>
    "tpu.trace_stop"() : () -> ()
    %cst_105 = arith.constant 0.353553385 : f32
    %299 = vector.broadcast %cst_105 : f32 to vector<1x16x8xf32>
    %300 = arith.mulf %298, %299 : vector<1x16x8xf32>
    %301 = arith.addf %300, %210 : vector<1x16x8xf32>
    %cst_106 = arith.constant dense<0xFF800000> : vector<1x16xf32>
    %302 = vector.multi_reduction <maximumf>, %301, %cst_106 [2] : vector<1x16x8xf32> to vector<1x16xf32>
    %303 = vector.shape_cast %302 : vector<1x16xf32> to vector<1x16x1xf32>
    %304 = arith.maximumf %167, %303 : vector<1x16x1xf32>
    %305 = arith.subf %167, %304 : vector<1x16x1xf32>
    %306 = math.exp %305 : vector<1x16x1xf32>
    %307 = vector.broadcast %304 : vector<1x16x1xf32> to vector<1x16x8xf32>
    %308 = arith.subf %301, %307 : vector<1x16x8xf32>
    %309 = math.exp %308 : vector<1x16x8xf32>
    %310 = arith.mulf %306, %171 : vector<1x16x1xf32>
    %cst_107 = arith.constant dense<0.000000e+00> : vector<1x16xf32>
    %311 = vector.multi_reduction <add>, %309, %cst_107 [2] : vector<1x16x8xf32> to vector<1x16xf32>
    %312 = vector.shape_cast %311 : vector<1x16xf32> to vector<1x16x1xf32>
    %313 = arith.addf %310, %312 : vector<1x16x1xf32>
    %314 = vector.broadcast %306 : vector<1x16x1xf32> to vector<1x16x8xf32>
    %315 = arith.mulf %314, %175 : vector<1x16x8xf32>
    %316 = arith.truncf %309 : vector<1x16x8xf32> to vector<1x16x8xbf16>
    "tpu.trace_start"() <{level = 10 : i32, message = "bqk,bkd->bqd"}> : () -> ()
    %cst_108 = arith.constant dense<0.000000e+00> : vector<1x16x8xf32>
    %317 = tpu.matmul %316, %297, %cst_108 {dimension_numbers = #tpu.dot_dimension_numbers<[2], [1], [1], [2], [0, 0, 0, 1, 1, 2], [0], [0]>} : vector<1x16x8xbf16>, vector<1x8x8xbf16>, vector<1x16x8xf32> -> vector<1x16x8xf32>
    "tpu.trace_stop"() : () -> ()
    %318 = arith.addf %315, %317 : vector<1x16x8xf32>
    %c0_109 = arith.constant 0 : index
    %c8_110 = arith.constant 8 : index
    %c0_111 = arith.constant 0 : index
    %319 = vector.load %arg2[%c0_109, %c8_110, %c0_111] : memref<1x16x32xf32, #tpu.memory_space<vmem>>, vector<1x8x32xf32>
    %320 = vector.shape_cast %319 : vector<1x8x32xf32> to vector<8x32xf32>
    %c0_112 = arith.constant 0 : index
    %c0_113 = arith.constant 0 : index
    %321 = vector.load %arg11[%c0_112, %c0_113] : memref<1x32xf32, #tpu.memory_space<vmem>>, vector<1x32xf32>
    %c0_114 = arith.constant 0 : index
    %c0_115 = arith.constant 0 : index
    %322 = vector.load %arg12[%c0_114, %c0_115] : memref<1x32xf32, #tpu.memory_space<vmem>>, vector<1x32xf32>
    %cst_116 = arith.constant dense<0.000000e+00> : vector<8xf32>
    %323 = vector.multi_reduction <add>, %320, %cst_116 [1] : vector<8x32xf32> to vector<8xf32>
    %324 = vector.shape_cast %323 : vector<8xf32> to vector<8x1xf32>
    %cst_117 = arith.constant 3.200000e+01 : f32
    %325 = vector.broadcast %cst_117 : f32 to vector<8x1xf32>
    %326 = arith.divf %324, %325 : vector<8x1xf32>
    %327 = vector.broadcast %326 : vector<8x1xf32> to vector<8x32xf32>
    %328 = arith.subf %320, %327 : vector<8x32xf32>
    %329 = arith.mulf %328, %328 : vector<8x32xf32>
    %cst_118 = arith.constant dense<0.000000e+00> : vector<8xf32>
    %330 = vector.multi_reduction <add>, %329, %cst_118 [1] : vector<8x32xf32> to vector<8xf32>
    %331 = vector.shape_cast %330 : vector<8xf32> to vector<8x1xf32>
    %cst_119 = arith.constant 3.200000e+01 : f32
    %332 = vector.broadcast %cst_119 : f32 to vector<8x1xf32>
    %333 = arith.divf %331, %332 : vector<8x1xf32>
    %334 = vector.broadcast %326 : vector<8x1xf32> to vector<8x32xf32>
    %335 = arith.subf %320, %334 : vector<8x32xf32>
    %cst_120 = arith.constant 9.99999974E-6 : f32
    %336 = vector.broadcast %cst_120 : f32 to vector<8x1xf32>
    %337 = arith.addf %333, %336 : vector<8x1xf32>
    %338 = math.rsqrt %337 : vector<8x1xf32>
    %339 = vector.broadcast %338 : vector<8x1xf32> to vector<8x32xf32>
    %340 = arith.mulf %335, %339 : vector<8x32xf32>
    %341 = vector.broadcast %321 : vector<1x32xf32> to vector<8x32xf32>
    %342 = arith.mulf %340, %341 : vector<8x32xf32>
    %343 = vector.broadcast %322 : vector<1x32xf32> to vector<8x32xf32>
    %344 = arith.addf %342, %343 : vector<8x32xf32>
    %345 = arith.truncf %344 : vector<8x32xf32> to vector<8x32xbf16>
    %c0_121 = arith.constant 0 : index
    %c0_122 = arith.constant 0 : index
    %346 = vector.load %arg14[%c0_121, %c0_122] : memref<32x32xbf16, #tpu.memory_space<vmem>>, vector<32x32xbf16>
    %cst_123 = arith.constant dense<0.000000e+00> : vector<8x32xf32>
    %347 = tpu.matmul %345, %346, %cst_123 {dimension_numbers = #tpu.dot_dimension_numbers<[1], [0], [0], [1], [0, 0, 1, 1], [], []>} : vector<8x32xbf16>, vector<32x32xbf16>, vector<8x32xf32> -> vector<8x32xf32>
    %348 = arith.truncf %347 : vector<8x32xf32> to vector<8x32xbf16>
    %c0_124 = arith.constant 0 : index
    %c0_125 = arith.constant 0 : index
    %349 = vector.load %arg15[%c0_124, %c0_125] : memref<32x32xbf16, #tpu.memory_space<vmem>>, vector<32x32xbf16>
    %cst_126 = arith.constant dense<0.000000e+00> : vector<8x32xf32>
    %350 = tpu.matmul %345, %349, %cst_126 {dimension_numbers = #tpu.dot_dimension_numbers<[1], [0], [0], [1], [0, 0, 1, 1], [], []>} : vector<8x32xbf16>, vector<32x32xbf16>, vector<8x32xf32> -> vector<8x32xf32>
    %351 = arith.truncf %350 : vector<8x32xf32> to vector<8x32xbf16>
    %c0_127 = arith.constant 0 : index
    %c8_128 = arith.constant 8 : index
    %352 = vector.load %arg3[%c0_127, %c8_128] : memref<16x16xf32, #tpu.memory_space<vmem>>, vector<16x8xf32>
    %353 = vector.shape_cast %352 : vector<16x8xf32> to vector<1x16x8xf32>
    %354 = vector.extract_strided_slice %163 {offsets = [0, 0], sizes = [16, 8], strides = [1, 1]} : vector<16x32xbf16> to vector<16x8xbf16>
    %355 = vector.shape_cast %354 : vector<16x8xbf16> to vector<1x16x8xbf16>
    %356 = vector.extract_strided_slice %348 {offsets = [0, 0], sizes = [8, 8], strides = [1, 1]} : vector<8x32xbf16> to vector<8x8xbf16>
    %357 = vector.shape_cast %356 : vector<8x8xbf16> to vector<1x8x8xbf16>
    %358 = vector.extract_strided_slice %351 {offsets = [0, 0], sizes = [8, 8], strides = [1, 1]} : vector<8x32xbf16> to vector<8x8xbf16>
    %359 = vector.shape_cast %358 : vector<8x8xbf16> to vector<1x8x8xbf16>
    "tpu.trace_start"() <{level = 10 : i32, message = "bqd,bkd->bqk"}> : () -> ()
    %cst_129 = arith.constant dense<0.000000e+00> : vector<1x16x8xf32>
    %360 = tpu.matmul %355, %357, %cst_129 {dimension_numbers = #tpu.dot_dimension_numbers<[2], [2], [1], [1], [0, 0, 0, 1, 1, 1], [0], [0]>} : vector<1x16x8xbf16>, vector<1x8x8xbf16>, vector<1x16x8xf32> -> vector<1x16x8xf32>
    "tpu.trace_stop"() : () -> ()
    %cst_130 = arith.constant 0.353553385 : f32
    %361 = vector.broadcast %cst_130 : f32 to vector<1x16x8xf32>
    %362 = arith.mulf %360, %361 : vector<1x16x8xf32>
    %363 = arith.addf %362, %353 : vector<1x16x8xf32>
    %cst_131 = arith.constant dense<0xFF800000> : vector<1x16xf32>
    %364 = vector.multi_reduction <maximumf>, %363, %cst_131 [2] : vector<1x16x8xf32> to vector<1x16xf32>
    %365 = vector.shape_cast %364 : vector<1x16xf32> to vector<1x16x1xf32>
    %366 = arith.maximumf %223, %365 : vector<1x16x1xf32>
    %367 = arith.subf %223, %366 : vector<1x16x1xf32>
    %368 = math.exp %367 : vector<1x16x1xf32>
    %369 = vector.broadcast %366 : vector<1x16x1xf32> to vector<1x16x8xf32>
    %370 = arith.subf %363, %369 : vector<1x16x8xf32>
    %371 = math.exp %370 : vector<1x16x8xf32>
    %372 = arith.mulf %368, %232 : vector<1x16x1xf32>
    %cst_132 = arith.constant dense<0.000000e+00> : vector<1x16xf32>
    %373 = vector.multi_reduction <add>, %371, %cst_132 [2] : vector<1x16x8xf32> to vector<1x16xf32>
    %374 = vector.shape_cast %373 : vector<1x16xf32> to vector<1x16x1xf32>
    %375 = arith.addf %372, %374 : vector<1x16x1xf32>
    %376 = vector.broadcast %368 : vector<1x16x1xf32> to vector<1x16x8xf32>
    %377 = arith.mulf %376, %237 : vector<1x16x8xf32>
    %378 = arith.truncf %371 : vector<1x16x8xf32> to vector<1x16x8xbf16>
    "tpu.trace_start"() <{level = 10 : i32, message = "bqk,bkd->bqd"}> : () -> ()
    %cst_133 = arith.constant dense<0.000000e+00> : vector<1x16x8xf32>
    %379 = tpu.matmul %378, %359, %cst_133 {dimension_numbers = #tpu.dot_dimension_numbers<[2], [1], [1], [2], [0, 0, 0, 1, 1, 2], [0], [0]>} : vector<1x16x8xbf16>, vector<1x8x8xbf16>, vector<1x16x8xf32> -> vector<1x16x8xf32>
    "tpu.trace_stop"() : () -> ()
    %380 = arith.addf %377, %379 : vector<1x16x8xf32>
    %381 = vector.extract_strided_slice %163 {offsets = [0, 8], sizes = [16, 8], strides = [1, 1]} : vector<16x32xbf16> to vector<16x8xbf16>
    %382 = vector.shape_cast %381 : vector<16x8xbf16> to vector<1x16x8xbf16>
    %383 = vector.extract_strided_slice %348 {offsets = [0, 8], sizes = [8, 8], strides = [1, 1]} : vector<8x32xbf16> to vector<8x8xbf16>
    %384 = vector.shape_cast %383 : vector<8x8xbf16> to vector<1x8x8xbf16>
    %385 = vector.extract_strided_slice %351 {offsets = [0, 8], sizes = [8, 8], strides = [1, 1]} : vector<8x32xbf16> to vector<8x8xbf16>
    %386 = vector.shape_cast %385 : vector<8x8xbf16> to vector<1x8x8xbf16>
    "tpu.trace_start"() <{level = 10 : i32, message = "bqd,bkd->bqk"}> : () -> ()
    %cst_134 = arith.constant dense<0.000000e+00> : vector<1x16x8xf32>
    %387 = tpu.matmul %382, %384, %cst_134 {dimension_numbers = #tpu.dot_dimension_numbers<[2], [2], [1], [1], [0, 0, 0, 1, 1, 1], [0], [0]>} : vector<1x16x8xbf16>, vector<1x8x8xbf16>, vector<1x16x8xf32> -> vector<1x16x8xf32>
    "tpu.trace_stop"() : () -> ()
    %cst_135 = arith.constant 0.353553385 : f32
    %388 = vector.broadcast %cst_135 : f32 to vector<1x16x8xf32>
    %389 = arith.mulf %387, %388 : vector<1x16x8xf32>
    %390 = arith.addf %389, %353 : vector<1x16x8xf32>
    %cst_136 = arith.constant dense<0xFF800000> : vector<1x16xf32>
    %391 = vector.multi_reduction <maximumf>, %390, %cst_136 [2] : vector<1x16x8xf32> to vector<1x16xf32>
    %392 = vector.shape_cast %391 : vector<1x16xf32> to vector<1x16x1xf32>
    %393 = arith.maximumf %250, %392 : vector<1x16x1xf32>
    %394 = arith.subf %250, %393 : vector<1x16x1xf32>
    %395 = math.exp %394 : vector<1x16x1xf32>
    %396 = vector.broadcast %393 : vector<1x16x1xf32> to vector<1x16x8xf32>
    %397 = arith.subf %390, %396 : vector<1x16x8xf32>
    %398 = math.exp %397 : vector<1x16x8xf32>
    %399 = arith.mulf %395, %259 : vector<1x16x1xf32>
    %cst_137 = arith.constant dense<0.000000e+00> : vector<1x16xf32>
    %400 = vector.multi_reduction <add>, %398, %cst_137 [2] : vector<1x16x8xf32> to vector<1x16xf32>
    %401 = vector.shape_cast %400 : vector<1x16xf32> to vector<1x16x1xf32>
    %402 = arith.addf %399, %401 : vector<1x16x1xf32>
    %403 = vector.broadcast %395 : vector<1x16x1xf32> to vector<1x16x8xf32>
    %404 = arith.mulf %403, %264 : vector<1x16x8xf32>
    %405 = arith.truncf %398 : vector<1x16x8xf32> to vector<1x16x8xbf16>
    "tpu.trace_start"() <{level = 10 : i32, message = "bqk,bkd->bqd"}> : () -> ()
    %cst_138 = arith.constant dense<0.000000e+00> : vector<1x16x8xf32>
    %406 = tpu.matmul %405, %386, %cst_138 {dimension_numbers = #tpu.dot_dimension_numbers<[2], [1], [1], [2], [0, 0, 0, 1, 1, 2], [0], [0]>} : vector<1x16x8xbf16>, vector<1x8x8xbf16>, vector<1x16x8xf32> -> vector<1x16x8xf32>
    "tpu.trace_stop"() : () -> ()
    %407 = arith.addf %404, %406 : vector<1x16x8xf32>
    %408 = vector.extract_strided_slice %163 {offsets = [0, 16], sizes = [16, 8], strides = [1, 1]} : vector<16x32xbf16> to vector<16x8xbf16>
    %409 = vector.shape_cast %408 : vector<16x8xbf16> to vector<1x16x8xbf16>
    %410 = vector.extract_strided_slice %348 {offsets = [0, 16], sizes = [8, 8], strides = [1, 1]} : vector<8x32xbf16> to vector<8x8xbf16>
    %411 = vector.shape_cast %410 : vector<8x8xbf16> to vector<1x8x8xbf16>
    %412 = vector.extract_strided_slice %351 {offsets = [0, 16], sizes = [8, 8], strides = [1, 1]} : vector<8x32xbf16> to vector<8x8xbf16>
    %413 = vector.shape_cast %412 : vector<8x8xbf16> to vector<1x8x8xbf16>
    "tpu.trace_start"() <{level = 10 : i32, message = "bqd,bkd->bqk"}> : () -> ()
    %cst_139 = arith.constant dense<0.000000e+00> : vector<1x16x8xf32>
    %414 = tpu.matmul %409, %411, %cst_139 {dimension_numbers = #tpu.dot_dimension_numbers<[2], [2], [1], [1], [0, 0, 0, 1, 1, 1], [0], [0]>} : vector<1x16x8xbf16>, vector<1x8x8xbf16>, vector<1x16x8xf32> -> vector<1x16x8xf32>
    "tpu.trace_stop"() : () -> ()
    %cst_140 = arith.constant 0.353553385 : f32
    %415 = vector.broadcast %cst_140 : f32 to vector<1x16x8xf32>
    %416 = arith.mulf %414, %415 : vector<1x16x8xf32>
    %417 = arith.addf %416, %353 : vector<1x16x8xf32>
    %cst_141 = arith.constant dense<0xFF800000> : vector<1x16xf32>
    %418 = vector.multi_reduction <maximumf>, %417, %cst_141 [2] : vector<1x16x8xf32> to vector<1x16xf32>
    %419 = vector.shape_cast %418 : vector<1x16xf32> to vector<1x16x1xf32>
    %420 = arith.maximumf %277, %419 : vector<1x16x1xf32>
    %421 = arith.subf %277, %420 : vector<1x16x1xf32>
    %422 = math.exp %421 : vector<1x16x1xf32>
    %423 = vector.broadcast %420 : vector<1x16x1xf32> to vector<1x16x8xf32>
    %424 = arith.subf %417, %423 : vector<1x16x8xf32>
    %425 = math.exp %424 : vector<1x16x8xf32>
    %426 = arith.mulf %422, %286 : vector<1x16x1xf32>
    %cst_142 = arith.constant dense<0.000000e+00> : vector<1x16xf32>
    %427 = vector.multi_reduction <add>, %425, %cst_142 [2] : vector<1x16x8xf32> to vector<1x16xf32>
    %428 = vector.shape_cast %427 : vector<1x16xf32> to vector<1x16x1xf32>
    %429 = arith.addf %426, %428 : vector<1x16x1xf32>
    %430 = vector.broadcast %422 : vector<1x16x1xf32> to vector<1x16x8xf32>
    %431 = arith.mulf %430, %291 : vector<1x16x8xf32>
    %432 = arith.truncf %425 : vector<1x16x8xf32> to vector<1x16x8xbf16>
    "tpu.trace_start"() <{level = 10 : i32, message = "bqk,bkd->bqd"}> : () -> ()
    %cst_143 = arith.constant dense<0.000000e+00> : vector<1x16x8xf32>
    %433 = tpu.matmul %432, %413, %cst_143 {dimension_numbers = #tpu.dot_dimension_numbers<[2], [1], [1], [2], [0, 0, 0, 1, 1, 2], [0], [0]>} : vector<1x16x8xbf16>, vector<1x8x8xbf16>, vector<1x16x8xf32> -> vector<1x16x8xf32>
    "tpu.trace_stop"() : () -> ()
    %434 = arith.addf %431, %433 : vector<1x16x8xf32>
    %435 = vector.extract_strided_slice %163 {offsets = [0, 24], sizes = [16, 8], strides = [1, 1]} : vector<16x32xbf16> to vector<16x8xbf16>
    %436 = vector.shape_cast %435 : vector<16x8xbf16> to vector<1x16x8xbf16>
    %437 = vector.extract_strided_slice %348 {offsets = [0, 24], sizes = [8, 8], strides = [1, 1]} : vector<8x32xbf16> to vector<8x8xbf16>
    %438 = vector.shape_cast %437 : vector<8x8xbf16> to vector<1x8x8xbf16>
    %439 = vector.extract_strided_slice %351 {offsets = [0, 24], sizes = [8, 8], strides = [1, 1]} : vector<8x32xbf16> to vector<8x8xbf16>
    %440 = vector.shape_cast %439 : vector<8x8xbf16> to vector<1x8x8xbf16>
    "tpu.trace_start"() <{level = 10 : i32, message = "bqd,bkd->bqk"}> : () -> ()
    %cst_144 = arith.constant dense<0.000000e+00> : vector<1x16x8xf32>
    %441 = tpu.matmul %436, %438, %cst_144 {dimension_numbers = #tpu.dot_dimension_numbers<[2], [2], [1], [1], [0, 0, 0, 1, 1, 1], [0], [0]>} : vector<1x16x8xbf16>, vector<1x8x8xbf16>, vector<1x16x8xf32> -> vector<1x16x8xf32>
    "tpu.trace_stop"() : () -> ()
    %cst_145 = arith.constant 0.353553385 : f32
    %442 = vector.broadcast %cst_145 : f32 to vector<1x16x8xf32>
    %443 = arith.mulf %441, %442 : vector<1x16x8xf32>
    %444 = arith.addf %443, %353 : vector<1x16x8xf32>
    %cst_146 = arith.constant dense<0xFF800000> : vector<1x16xf32>
    %445 = vector.multi_reduction <maximumf>, %444, %cst_146 [2] : vector<1x16x8xf32> to vector<1x16xf32>
    %446 = vector.shape_cast %445 : vector<1x16xf32> to vector<1x16x1xf32>
    %447 = arith.maximumf %304, %446 : vector<1x16x1xf32>
    %448 = arith.subf %304, %447 : vector<1x16x1xf32>
    %449 = math.exp %448 : vector<1x16x1xf32>
    %450 = vector.broadcast %447 : vector<1x16x1xf32> to vector<1x16x8xf32>
    %451 = arith.subf %444, %450 : vector<1x16x8xf32>
    %452 = math.exp %451 : vector<1x16x8xf32>
    %453 = arith.mulf %449, %313 : vector<1x16x1xf32>
    %cst_147 = arith.constant dense<0.000000e+00> : vector<1x16xf32>
    %454 = vector.multi_reduction <add>, %452, %cst_147 [2] : vector<1x16x8xf32> to vector<1x16xf32>
    %455 = vector.shape_cast %454 : vector<1x16xf32> to vector<1x16x1xf32>
    %456 = arith.addf %453, %455 : vector<1x16x1xf32>
    %457 = vector.broadcast %449 : vector<1x16x1xf32> to vector<1x16x8xf32>
    %458 = arith.mulf %457, %318 : vector<1x16x8xf32>
    %459 = arith.truncf %452 : vector<1x16x8xf32> to vector<1x16x8xbf16>
    "tpu.trace_start"() <{level = 10 : i32, message = "bqk,bkd->bqd"}> : () -> ()
    %cst_148 = arith.constant dense<0.000000e+00> : vector<1x16x8xf32>
    %460 = tpu.matmul %459, %440, %cst_148 {dimension_numbers = #tpu.dot_dimension_numbers<[2], [1], [1], [2], [0, 0, 0, 1, 1, 2], [0], [0]>} : vector<1x16x8xbf16>, vector<1x8x8xbf16>, vector<1x16x8xf32> -> vector<1x16x8xf32>
    "tpu.trace_stop"() : () -> ()
    %461 = arith.addf %458, %460 : vector<1x16x8xf32>
    %462 = tpu.reciprocal %375 : vector<1x16x1xf32> -> vector<1x16x1xf32>
    %463 = vector.broadcast %462 : vector<1x16x1xf32> to vector<1x16x8xf32>
    %464 = arith.mulf %380, %463 : vector<1x16x8xf32>
    %465 = vector.shape_cast %464 : vector<1x16x8xf32> to vector<16x8xf32>
    %466 = arith.truncf %465 : vector<16x8xf32> to vector<16x8xbf16>
    %c0_149 = arith.constant 0 : index
    %c0_150 = arith.constant 0 : index
    %467 = vector.load %arg25[%c0_149, %c0_150] : memref<16x32xbf16, #tpu.memory_space<vmem>>, vector<16x8xbf16>
    tpu.vector_store %arg25[%c0_149, %c0_150], %466 {strides = array<i32>} : memref<16x32xbf16, #tpu.memory_space<vmem>>, vector<16x8xbf16>,
    %468 = tpu.reciprocal %402 : vector<1x16x1xf32> -> vector<1x16x1xf32>
    %469 = vector.broadcast %468 : vector<1x16x1xf32> to vector<1x16x8xf32>
    %470 = arith.mulf %407, %469 : vector<1x16x8xf32>
    %471 = vector.shape_cast %470 : vector<1x16x8xf32> to vector<16x8xf32>
    %472 = arith.truncf %471 : vector<16x8xf32> to vector<16x8xbf16>
    %c0_151 = arith.constant 0 : index
    %c8_152 = arith.constant 8 : index
    %473 = vector.load %arg25[%c0_151, %c8_152] : memref<16x32xbf16, #tpu.memory_space<vmem>>, vector<16x8xbf16>
    tpu.vector_store %arg25[%c0_151, %c8_152], %472 {strides = array<i32>} : memref<16x32xbf16, #tpu.memory_space<vmem>>, vector<16x8xbf16>,
    %474 = tpu.reciprocal %429 : vector<1x16x1xf32> -> vector<1x16x1xf32>
    %475 = vector.broadcast %474 : vector<1x16x1xf32> to vector<1x16x8xf32>
    %476 = arith.mulf %434, %475 : vector<1x16x8xf32>
    %477 = vector.shape_cast %476 : vector<1x16x8xf32> to vector<16x8xf32>
    %478 = arith.truncf %477 : vector<16x8xf32> to vector<16x8xbf16>
    %c0_153 = arith.constant 0 : index
    %c16_154 = arith.constant 16 : index
    %479 = vector.load %arg25[%c0_153, %c16_154] : memref<16x32xbf16, #tpu.memory_space<vmem>>, vector<16x8xbf16>
    tpu.vector_store %arg25[%c0_153, %c16_154], %478 {strides = array<i32>} : memref<16x32xbf16, #tpu.memory_space<vmem>>, vector<16x8xbf16>,
    %480 = tpu.reciprocal %456 : vector<1x16x1xf32> -> vector<1x16x1xf32>
    %481 = vector.broadcast %480 : vector<1x16x1xf32> to vector<1x16x8xf32>
    %482 = arith.mulf %461, %481 : vector<1x16x8xf32>
    %483 = vector.shape_cast %482 : vector<1x16x8xf32> to vector<16x8xf32>
    %484 = arith.truncf %483 : vector<16x8xf32> to vector<16x8xbf16>
    %c0_155 = arith.constant 0 : index
    %c24_156 = arith.constant 24 : index
    %485 = vector.load %arg25[%c0_155, %c24_156] : memref<16x32xbf16, #tpu.memory_space<vmem>>, vector<16x8xbf16>
    tpu.vector_store %arg25[%c0_155, %c24_156], %484 {strides = array<i32>} : memref<16x32xbf16, #tpu.memory_space<vmem>>, vector<16x8xbf16>,
    %c0_157 = arith.constant 0 : index
    %c0_158 = arith.constant 0 : index
    %486 = vector.load %arg25[%c0_157, %c0_158] : memref<16x32xbf16, #tpu.memory_space<vmem>>, vector<16x32xbf16>
    %c0_159 = arith.constant 0 : index
    %c0_160 = arith.constant 0 : index
    %487 = vector.load %arg16[%c0_159, %c0_160] : memref<32x32xbf16, #tpu.memory_space<vmem>>, vector<32x32xbf16>
    %cst_161 = arith.constant dense<0.000000e+00> : vector<16x32xf32>
    %488 = tpu.matmul %486, %487, %cst_161 {dimension_numbers = #tpu.dot_dimension_numbers<[1], [0], [0], [1], [0, 0, 1, 1], [], []>} : vector<16x32xbf16>, vector<32x32xbf16>, vector<16x32xf32> -> vector<16x32xf32>
    %489 = arith.addf %135, %488 : vector<16x32xf32>
    %c0_162 = arith.constant 0 : index
    %c0_163 = arith.constant 0 : index
    %490 = vector.load %arg17[%c0_162, %c0_163] : memref<1x32xf32, #tpu.memory_space<vmem>>, vector<1x32xf32>
    %491 = vector.broadcast %490 : vector<1x32xf32> to vector<16x32xf32>
    %492 = arith.addf %489, %491 : vector<16x32xf32>
    %c0_164 = arith.constant 0 : index
    %c0_165 = arith.constant 0 : index
    %493 = vector.load %arg18[%c0_164, %c0_165] : memref<1x32xf32, #tpu.memory_space<vmem>>, vector<1x32xf32>
    %c0_166 = arith.constant 0 : index
    %c0_167 = arith.constant 0 : index
    %494 = vector.load %arg19[%c0_166, %c0_167] : memref<1x32xf32, #tpu.memory_space<vmem>>, vector<1x32xf32>
    %cst_168 = arith.constant dense<0.000000e+00> : vector<16xf32>
    %495 = vector.multi_reduction <add>, %492, %cst_168 [1] : vector<16x32xf32> to vector<16xf32>
    %496 = vector.shape_cast %495 : vector<16xf32> to vector<16x1xf32>
    %cst_169 = arith.constant 3.200000e+01 : f32
    %497 = vector.broadcast %cst_169 : f32 to vector<16x1xf32>
    %498 = arith.divf %496, %497 : vector<16x1xf32>
    %499 = vector.broadcast %498 : vector<16x1xf32> to vector<16x32xf32>
    %500 = arith.subf %492, %499 : vector<16x32xf32>
    %501 = arith.mulf %500, %500 : vector<16x32xf32>
    %cst_170 = arith.constant dense<0.000000e+00> : vector<16xf32>
    %502 = vector.multi_reduction <add>, %501, %cst_170 [1] : vector<16x32xf32> to vector<16xf32>
    %503 = vector.shape_cast %502 : vector<16xf32> to vector<16x1xf32>
    %cst_171 = arith.constant 3.200000e+01 : f32
    %504 = vector.broadcast %cst_171 : f32 to vector<16x1xf32>
    %505 = arith.divf %503, %504 : vector<16x1xf32>
    %506 = vector.broadcast %498 : vector<16x1xf32> to vector<16x32xf32>
    %507 = arith.subf %492, %506 : vector<16x32xf32>
    %cst_172 = arith.constant 9.99999974E-6 : f32
    %508 = vector.broadcast %cst_172 : f32 to vector<16x1xf32>
    %509 = arith.addf %505, %508 : vector<16x1xf32>
    %510 = math.rsqrt %509 : vector<16x1xf32>
    %511 = vector.broadcast %510 : vector<16x1xf32> to vector<16x32xf32>
    %512 = arith.mulf %507, %511 : vector<16x32xf32>
    %513 = vector.broadcast %493 : vector<1x32xf32> to vector<16x32xf32>
    %514 = arith.mulf %512, %513 : vector<16x32xf32>
    %515 = vector.broadcast %494 : vector<1x32xf32> to vector<16x32xf32>
    %516 = arith.addf %514, %515 : vector<16x32xf32>
    %517 = arith.truncf %516 : vector<16x32xf32> to vector<16x32xbf16>
    %cst_173 = arith.constant 0.000000e+00 : f32
    %518 = vector.broadcast %cst_173 : f32 to vector<16x32xf32>
    %c0_174 = arith.constant 0 : index
    %c0_175 = arith.constant 0 : index
    %519 = vector.load %arg20[%c0_174, %c0_175] : memref<32x128xbf16, #tpu.memory_space<vmem>>, vector<32x64xbf16>
    %cst_176 = arith.constant dense<0.000000e+00> : vector<16x64xf32>
    %520 = tpu.matmul %517, %519, %cst_176 {dimension_numbers = #tpu.dot_dimension_numbers<[1], [0], [0], [1], [0, 0, 1, 1], [], []>} : vector<16x32xbf16>, vector<32x64xbf16>, vector<16x64xf32> -> vector<16x64xf32>
    %c0_177 = arith.constant 0 : index
    %c0_178 = arith.constant 0 : index
    %521 = vector.load %arg21[%c0_177, %c0_178] : memref<1x128xf32, #tpu.memory_space<vmem>>, vector<1x64xf32>
    %522 = vector.broadcast %521 : vector<1x64xf32> to vector<16x64xf32>
    %523 = arith.addf %520, %522 : vector<16x64xf32>
    %cst_179 = arith.constant 5.000000e-01 : f32
    %524 = vector.broadcast %cst_179 : f32 to vector<16x64xf32>
    %525 = arith.mulf %524, %523 : vector<16x64xf32>
    %cst_180 = arith.constant 0.707106769 : f32
    %526 = vector.broadcast %cst_180 : f32 to vector<16x64xf32>
    %527 = arith.mulf %523, %526 : vector<16x64xf32>
    %528 = math.erf %527 : vector<16x64xf32>
    %cst_181 = arith.constant 1.000000e+00 : f32
    %529 = vector.broadcast %cst_181 : f32 to vector<16x64xf32>
    %530 = arith.addf %529, %528 : vector<16x64xf32>
    %531 = arith.mulf %525, %530 : vector<16x64xf32>
    %532 = arith.truncf %531 : vector<16x64xf32> to vector<16x64xbf16>
    %c0_182 = arith.constant 0 : index
    %c0_183 = arith.constant 0 : index
    %533 = vector.load %arg22[%c0_182, %c0_183] : memref<128x32xbf16, #tpu.memory_space<vmem>>, vector<64x32xbf16>
    %cst_184 = arith.constant dense<0.000000e+00> : vector<16x32xf32>
    %534 = tpu.matmul %532, %533, %cst_184 {dimension_numbers = #tpu.dot_dimension_numbers<[1], [0], [0], [1], [0, 0, 1, 1], [], []>} : vector<16x64xbf16>, vector<64x32xbf16>, vector<16x32xf32> -> vector<16x32xf32>
    %535 = arith.addf %518, %534 : vector<16x32xf32>
    %c0_185 = arith.constant 0 : index
    %c64 = arith.constant 64 : index
    %536 = vector.load %arg20[%c0_185, %c64] : memref<32x128xbf16, #tpu.memory_space<vmem>>, vector<32x64xbf16>
    %cst_186 = arith.constant dense<0.000000e+00> : vector<16x64xf32>
    %537 = tpu.matmul %517, %536, %cst_186 {dimension_numbers = #tpu.dot_dimension_numbers<[1], [0], [0], [1], [0, 0, 1, 1], [], []>} : vector<16x32xbf16>, vector<32x64xbf16>, vector<16x64xf32> -> vector<16x64xf32>
    %c0_187 = arith.constant 0 : index
    %c64_188 = arith.constant 64 : index
    %538 = vector.load %arg21[%c0_187, %c64_188] : memref<1x128xf32, #tpu.memory_space<vmem>>, vector<1x64xf32>
    %539 = vector.broadcast %538 : vector<1x64xf32> to vector<16x64xf32>
    %540 = arith.addf %537, %539 : vector<16x64xf32>
    %cst_189 = arith.constant 5.000000e-01 : f32
    %541 = vector.broadcast %cst_189 : f32 to vector<16x64xf32>
    %542 = arith.mulf %541, %540 : vector<16x64xf32>
    %cst_190 = arith.constant 0.707106769 : f32
    %543 = vector.broadcast %cst_190 : f32 to vector<16x64xf32>
    %544 = arith.mulf %540, %543 : vector<16x64xf32>
    %545 = math.erf %544 : vector<16x64xf32>
    %cst_191 = arith.constant 1.000000e+00 : f32
    %546 = vector.broadcast %cst_191 : f32 to vector<16x64xf32>
    %547 = arith.addf %546, %545 : vector<16x64xf32>
    %548 = arith.mulf %542, %547 : vector<16x64xf32>
    %549 = arith.truncf %548 : vector<16x64xf32> to vector<16x64xbf16>
    %c64_192 = arith.constant 64 : index
    %c0_193 = arith.constant 0 : index
    %550 = vector.load %arg22[%c64_192, %c0_193] : memref<128x32xbf16, #tpu.memory_space<vmem>>, vector<64x32xbf16>
    %cst_194 = arith.constant dense<0.000000e+00> : vector<16x32xf32>
    %551 = tpu.matmul %549, %550, %cst_194 {dimension_numbers = #tpu.dot_dimension_numbers<[1], [0], [0], [1], [0, 0, 1, 1], [], []>} : vector<16x64xbf16>, vector<64x32xbf16>, vector<16x32xf32> -> vector<16x32xf32>
    %552 = arith.addf %535, %551 : vector<16x32xf32>
    %553 = arith.addf %492, %552 : vector<16x32xf32>
    %c0_195 = arith.constant 0 : index
    %c0_196 = arith.constant 0 : index
    %554 = vector.load %arg23[%c0_195, %c0_196] : memref<1x32xf32, #tpu.memory_space<vmem>>, vector<1x32xf32>
    %555 = vector.broadcast %554 : vector<1x32xf32> to vector<16x32xf32>
    %556 = arith.addf %553, %555 : vector<16x32xf32>
    %557 = vector.shape_cast %556 : vector<16x32xf32> to vector<1x16x32xf32>
    %c0_197 = arith.constant 0 : index
    %c0_198 = arith.constant 0 : index
    %c0_199 = arith.constant 0 : index
    %558 = vector.load %arg24[%c0_197, %c0_198, %c0_199] : memref<1x16x32xf32, #tpu.memory_space<vmem>>, vector<1x16x32xf32>
    tpu.vector_store %arg24[%c0_197, %c0_198, %c0_199], %557 {strides = array<i32>} : memref<1x16x32xf32, #tpu.memory_space<vmem>>, vector<1x16x32xf32>,
    return
  }
  func.func @transform_0(%arg0: i32) -> (i32, i32, i32) {
    %c0_i32 = arith.constant 0 : i32
    %c0_i32_0 = arith.constant 0 : i32
    %c0_i32_1 = arith.constant 0 : i32
    return %arg0, %c0_i32, %c0_i32_0 : i32, i32, i32
  }
  func.func @transform_1(%arg0: i32) -> (i32, i32, i32) {
    %c0_i32 = arith.constant 0 : i32
    %c0_i32_0 = arith.constant 0 : i32
    %c0_i32_1 = arith.constant 0 : i32
    return %arg0, %c0_i32, %c0_i32_0 : i32, i32, i32
  }
  func.func @transform_2(%arg0: i32) -> (i32, i32) {
    %c0_i32 = arith.constant 0 : i32
    %c0_i32_0 = arith.constant 0 : i32
    %c0_i32_1 = arith.constant 0 : i32
    return %c0_i32, %c0_i32_0 : i32, i32
  }
  func.func @transform_3(%arg0: i32) -> (i32, i32) {
    %c0_i32 = arith.constant 0 : i32
    %c0_i32_0 = arith.constant 0 : i32
    %c0_i32_1 = arith.constant 0 : i32
    return %c0_i32, %c0_i32_0 : i32, i32
  }
  func.func @transform_4(%arg0: i32) -> (i32, i32) {
    %c0_i32 = arith.constant 0 : i32
    %c0_i32_0 = arith.constant 0 : i32
    %c0_i32_1 = arith.constant 0 : i32
    return %c0_i32, %c0_i32_0 : i32, i32
  }
  func.func @transform_5(%arg0: i32) -> (i32, i32) {
    %c0_i32 = arith.constant 0 : i32
    %c0_i32_0 = arith.constant 0 : i32
    %c0_i32_1 = arith.constant 0 : i32
    return %c0_i32, %c0_i32_0 : i32, i32
  }
  func.func @transform_6(%arg0: i32) -> (i32, i32) {
    %c0_i32 = arith.constant 0 : i32
    %c0_i32_0 = arith.constant 0 : i32
    %c0_i32_1 = arith.constant 0 : i32
    return %c0_i32, %c0_i32_0 : i32, i32
  }
  func.func @transform_7(%arg0: i32) -> (i32, i32) {
    %c0_i32 = arith.constant 0 : i32
    %c0_i32_0 = arith.constant 0 : i32
    %c0_i32_1 = arith.constant 0 : i32
    return %c0_i32, %c0_i32_0 : i32, i32
  }
  func.func @transform_8(%arg0: i32) -> (i32, i32) {
    %c0_i32 = arith.constant 0 : i32
    %c0_i32_0 = arith.constant 0 : i32
    %c0_i32_1 = arith.constant 0 : i32
    return %c0_i32, %c0_i32_0 : i32, i32
  }
  func.func @transform_9(%arg0: i32) -> (i32, i32) {
    %c0_i32 = arith.constant 0 : i32
    %c0_i32_0 = arith.constant 0 : i32
    %c0_i32_1 = arith.constant 0 : i32
    return %c0_i32, %c0_i32_0 : i32, i32
  }
  func.func @transform_10(%arg0: i32) -> (i32, i32) {
    %c0_i32 = arith.constant 0 : i32
    %c0_i32_0 = arith.constant 0 : i32
    %c0_i32_1 = arith.constant 0 : i32
    return %c0_i32, %c0_i32_0 : i32, i32
  }
  func.func @transform_11(%arg0: i32) -> (i32, i32) {
    %c0_i32 = arith.constant 0 : i32
    %c0_i32_0 = arith.constant 0 : i32
    %c0_i32_1 = arith.constant 0 : i32
    return %c0_i32, %c0_i32_0 : i32, i32
  }
  func.func @transform_12(%arg0: i32) -> (i32, i32) {
    %c0_i32 = arith.constant 0 : i32
    %c0_i32_0 = arith.constant 0 : i32
    %c0_i32_1 = arith.constant 0 : i32
    return %c0_i32, %c0_i32_0 : i32, i32
  }
  func.func @transform_13(%arg0: i32) -> (i32, i32) {
    %c0_i32 = arith.constant 0 : i32
    %c0_i32_0 = arith.constant 0 : i32
    %c0_i32_1 = arith.constant 0 : i32
    return %c0_i32, %c0_i32_0 : i32, i32
  }
  func.func @transform_14(%arg0: i32) -> (i32, i32) {
    %c0_i32 = arith.constant 0 : i32
    %c0_i32_0 = arith.constant 0 : i32
    %c0_i32_1 = arith.constant 0 : i32
    return %c0_i32, %c0_i32_0 : i32, i32
  }
  func.func @transform_15(%arg0: i32) -> (i32, i32) {
    %c0_i32 = arith.constant 0 : i32
    %c0_i32_0 = arith.constant 0 : i32
    %c0_i32_1 = arith.constant 0 : i32
    return %c0_i32, %c0_i32_0 : i32, i32
  }
  func.func @transform_16(%arg0: i32) -> (i32, i32) {
    %c0_i32 = arith.constant 0 : i32
    %c0_i32_0 = arith.constant 0 : i32
    %c0_i32_1 = arith.constant 0 : i32
    return %c0_i32, %c0_i32_0 : i32, i32
  }
  func.func @transform_17(%arg0: i32) -> (i32, i32) {
    %c0_i32 = arith.constant 0 : i32
    %c0_i32_0 = arith.constant 0 : i32
    %c0_i32_1 = arith.constant 0 : i32
    return %c0_i32, %c0_i32_0 : i32, i32
  }
  func.func @transform_18(%arg0: i32) -> (i32, i32) {
    %c0_i32 = arith.constant 0 : i32
    %c0_i32_0 = arith.constant 0 : i32
    %c0_i32_1 = arith.constant 0 : i32
    return %c0_i32, %c0_i32_0 : i32, i32
  }
  func.func @transform_19(%arg0: i32) -> (i32, i32) {
    %c0_i32 = arith.constant 0 : i32
    %c0_i32_0 = arith.constant 0 : i32
    %c0_i32_1 = arith.constant 0 : i32
    return %c0_i32, %c0_i32_0 : i32, i32
  }
  func.func @transform_20(%arg0: i32) -> (i32, i32) {
    %c0_i32 = arith.constant 0 : i32
    %c0_i32_0 = arith.constant 0 : i32
    %c0_i32_1 = arith.constant 0 : i32
    return %c0_i32, %c0_i32_0 : i32, i32
  }
  func.func @transform_21(%arg0: i32) -> (i32, i32) {
    %c0_i32 = arith.constant 0 : i32
    %c0_i32_0 = arith.constant 0 : i32
    %c0_i32_1 = arith.constant 0 : i32
    return %c0_i32, %c0_i32_0 : i32, i32
  }
  func.func @transform_22(%arg0: i32) -> (i32, i32) {
    %c0_i32 = arith.constant 0 : i32
    %c0_i32_0 = arith.constant 0 : i32
    %c0_i32_1 = arith.constant 0 : i32
    return %c0_i32, %c0_i32_0 : i32, i32
  }
  func.func @transform_23(%arg0: i32) -> (i32, i32, i32) {
    %c0_i32 = arith.constant 0 : i32
    %c0_i32_0 = arith.constant 0 : i32
    %c0_i32_1 = arith.constant 0 : i32
    return %arg0, %c0_i32, %c0_i32_0 : i32, i32, i32
  }
}

</mosaic_0001>

<llo_original>
// kernel: dino_decoder_block.1
$region0: #{dino_decoder_block.1}
  #allocation0 [shape = 'u32[]', space=smem, size = 0x4, offset = 0x4, fixed_abs, tag = 'smem constant byte address 0x4 - core index']
  #allocation1 [shape = 'u32[144,128]{1,0:T(1,128)}', space=vmem, size = 0x12000, scoped, tag = 'internal scratch']
  #allocation2 [shape = 'bf16[16,32]{1,0:T(8,128)(2,1)}', space=vmem, size = 0x1000, scoped, tag = 'scratch operand']
  %s0 = inlined_call_operand.vmem [shape: f32[2,16,32], index: 0, kind: input, shape index: {}]
  %s1 = inlined_call_operand.vmem [shape: f32[2,16,32], index: 1, kind: input, shape index: {}]
  %s2 = inlined_call_operand.vmem [shape: f32[16,16], index: 2, kind: input, shape index: {}]
  %s3 = inlined_call_operand.hbm [shape: f32[1,32], index: 3, kind: input, shape index: {}]
  %s4 = inlined_call_operand.hbm [shape: f32[1,32], index: 4, kind: input, shape index: {}]
  %s5 = inlined_call_operand.vmem [shape: bf16[32,96], index: 5, kind: input, shape index: {}]
  %s6 = inlined_call_operand.vmem [shape: bf16[32,32], index: 6, kind: input, shape index: {}]
  %s7 = inlined_call_operand.hbm [shape: f32[1,32], index: 7, kind: input, shape index: {}]
  %s8 = inlined_call_operand.hbm [shape: f32[1,32], index: 8, kind: input, shape index: {}]
  %s9 = inlined_call_operand.hbm [shape: f32[1,32], index: 9, kind: input, shape index: {}]
  %s10 = inlined_call_operand.hbm [shape: f32[1,32], index: 10, kind: input, shape index: {}]
  %s11 = inlined_call_operand.hbm [shape: f32[1,32], index: 11, kind: input, shape index: {}]
  %s12 = inlined_call_operand.hbm [shape: bf16[32,32], index: 12, kind: input, shape index: {}]
  %s13 = inlined_call_operand.hbm [shape: bf16[32,32], index: 13, kind: input, shape index: {}]
  %s14 = inlined_call_operand.hbm [shape: bf16[32,32], index: 14, kind: input, shape index: {}]
  %s15 = inlined_call_operand.vmem [shape: bf16[32,32], index: 15, kind: input, shape index: {}]
  %s16 = inlined_call_operand.hbm [shape: f32[1,32], index: 16, kind: input, shape index: {}]
  %s17 = inlined_call_operand.hbm [shape: f32[1,32], index: 17, kind: input, shape index: {}]
  %s18 = inlined_call_operand.hbm [shape: f32[1,32], index: 18, kind: input, shape index: {}]
  %s19 = inlined_call_operand.hbm [shape: bf16[32,128], index: 19, kind: input, shape index: {}]
  %s20 = inlined_call_operand.vmem [shape: f32[1,128], index: 20, kind: input, shape index: {}]
  %s21 = inlined_call_operand.vmem [shape: bf16[128,32], index: 21, kind: input, shape index: {}]
  %s22 = inlined_call_operand.vmem [shape: f32[1,32], index: 22, kind: input, shape index: {}]
  %s23 = inlined_call_operand.hbm [shape: f32[2,16,32], index: 23, kind: output, shape index: {}]
  %s24 = sld [smem:[#allocation0]]
  $region181: #{dino_decoder_block.1} parent=0
    _
  %s26 = ssub.s32 1, %s24
  %s27 = scalar_select 0, %s26, %s24
  $region1: #{dino_decoder_block.1} parent=0
    #allocation3 [shape = 'u8[512]{0}', space=vmem, size = 0x400, scoped, tag = 'input window, operand 3, single buffered']
    #allocation4 [shape = 's32[2]{0}', space=sflag, size = 0x8, scoped, tag = 'scoped memory for dino_decoder_block.1']
    #allocation5 [shape = 's32[2]{0}', space=sflag, size = 0x8, scoped, tag = 'scoped memory for dino_decoder_block.1']
    #allocation6 [shape = 'u8[512]{0}', space=vmem, size = 0x400, scoped, tag = 'input window, operand 4, single buffered']
    #allocation7 [shape = 's32[1]{0}', space=sflag, size = 0x4, scoped, tag = 'scoped memory for dino_decoder_block.1']
    #allocation8 [shape = 'u8[512]{0}', space=vmem, size = 0x400, scoped, tag = 'input window, operand 7, single buffered']
    #allocation9 [shape = 'u8[512]{0}', space=vmem, size = 0x400, scoped, tag = 'input window, operand 8, single buffered']
    #allocation10 [shape = 's32[1]{0}', space=sflag, size = 0x4, scoped, tag = 'scoped memory for dino_decoder_block.1']
    #allocation11 [shape = 'u8[512]{0}', space=vmem, size = 0x400, scoped, tag = 'input window, operand 9, single buffered']
    #allocation12 [shape = 'u8[512]{0}', space=vmem, size = 0x400, scoped, tag = 'input window, operand 10, single buffered']
    #allocation13 [shape = 's32[1]{0}', space=sflag, size = 0x4, scoped, tag = 'scoped memory for dino_decoder_block.1']
    #allocation14 [shape = 'u8[512]{0}', space=vmem, size = 0x400, scoped, tag = 'input window, operand 11, single buffered']
    #allocation15 [shape = 'u8[8192]{0}', space=vmem, size = 0x2000, scoped, tag = 'input window, operand 12, single buffered']
    #allocation16 [shape = 's32[1]{0}', space=sflag, size = 0x4, scoped, tag = 'scoped memory for dino_decoder_block.1']
    #allocation17 [shape = 'u8[8192]{0}', space=vmem, size = 0x2000, scoped, tag = 'input window, operand 13, single buffered']
    #allocation18 [shape = 'u8[8192]{0}', space=vmem, size = 0x2000, scoped, tag = 'input window, operand 14, single buffered']
    #allocation19 [shape = 's32[1]{0}', space=sflag, size = 0x4, scoped, tag = 'scoped memory for dino_decoder_block.1']
    #allocation20 [shape = 'u8[512]{0}', space=vmem, size = 0x400, scoped, tag = 'input window, operand 16, single buffered']
    #allocation21 [shape = 'u8[512]{0}', space=vmem, size = 0x400, scoped, tag = 'input window, operand 17, single buffered']
    #allocation22 [shape = 's32[1]{0}', space=sflag, size = 0x4, scoped, tag = 'scoped memory for dino_decoder_block.1']
    #allocation23 [shape = 'u8[512]{0}', space=vmem, size = 0x400, scoped, tag = 'input window, operand 18, single buffered']
    #allocation24 [shape = 'u8[8192]{0}', space=vmem, size = 0x2000, scoped, tag = 'input window, operand 19, single buffered']
    #allocation25 [shape = 's32[1]{0}', space=sflag, size = 0x4, scoped, tag = 'scoped memory for dino_decoder_block.1']
    #allocation26 [shape = 'u8[16384]{0}', space=vmem, size = 0x4000, scoped, tag = 'output window, operand 0']
    %28 = vsyncpa [#allocation4], 0
    %29 = vsyncpa [#allocation7], 0
    %30 = vsyncpa [#allocation10], 0
    %31 = vsyncpa [#allocation13], 0
    %32 = vsyncpa [#allocation16], 0
    %33 = vsyncpa [#allocation19], 0
    %34 = vsyncpa [#allocation22], 0
    %35 = vsyncpa [#allocation25], 0
    %36 = vsyncpa [#allocation5], 0
    %s37 = scalar_lea.sflag [#allocation5], 1
    %38 = vsyncpa %s37, 0
    loop: start=0, step=1, limit=4
    $region2: #{dino_decoder_block.1} parent=1 // loop_pre_header
      _
    $region3: #{dino_decoder_block.1} parent=1 // loop_header
      %s40 = sphi 0, %s44
      %p41 = scmp.ge.s32.totalorder %s40, 4
      %s50 = sphi 0, %s52
      %s53 = sphi 0, %s50
      %s54 = sphi 0, %s53
      %s70 = sphi 0, %s54
      %s76 = sphi 0, %s78
      %s79 = sphi 0, %s76
      %s80 = sphi 0, %s79
      %s96 = sphi 0, %s80
      %s100 = sphi 0, %s100
      %s102 = sphi 0, %s100
      %s103 = sphi 0, %s102
      %s117 = sphi 0, %s103
      %s121 = sphi 0, %s121
      %s123 = sphi 0, %s121
      %s124 = sphi 0, %s123
      %s138 = sphi 0, %s124
      %s142 = sphi 0, %s142
      %s144 = sphi 0, %s142
      %s145 = sphi 0, %s144
      %s159 = sphi 0, %s145
      %s163 = sphi 0, %s163
      %s165 = sphi 0, %s163
      %s166 = sphi 0, %s165
      %s180 = sphi 0, %s166
      %s184 = sphi 0, %s184
      %s186 = sphi 0, %s184
      %s187 = sphi 0, %s186
      %s201 = sphi 0, %s187
      %s205 = sphi 0, %s205
      %s207 = sphi 0, %s205
      %s208 = sphi 0, %s207
      %s222 = sphi 0, %s208
      %s226 = sphi 0, %s226
      %s228 = sphi 0, %s226
      %s229 = sphi 0, %s228
      %s243 = sphi 0, %s229
      %s247 = sphi 0, %s247
      %s249 = sphi 0, %s247
      %s250 = sphi 0, %s249
      %s264 = sphi 0, %s250
      %s268 = sphi 0, %s268
      %s270 = sphi 0, %s268
      %s271 = sphi 0, %s270
      %s285 = sphi 0, %s271
      %s289 = sphi 0, %s289
      %s291 = sphi 0, %s289
      %s292 = sphi 0, %s291
      %s306 = sphi 0, %s292
      %s310 = sphi 0, %s310
      %s312 = sphi 0, %s310
      %s313 = sphi 0, %s312
      %s327 = sphi 0, %s313
      %s331 = sphi 0, %s331
      %s333 = sphi 0, %s331
      %s334 = sphi 0, %s333
      %s348 = sphi 0, %s334
      %s352 = sphi 0, %s352
      %s354 = sphi 0, %s352
      %s355 = sphi 0, %s354
      %s369 = sphi 0, %s355
      %s373 = sphi 0, %s373
      %s375 = sphi 0, %s373
      %s376 = sphi 0, %s375
      %s390 = sphi 0, %s376
      %s394 = sphi 0, %s394
      %s396 = sphi 0, %s394
      %s397 = sphi 0, %s396
      %s411 = sphi 0, %s397
      %s415 = sphi 0, %s415
      %s417 = sphi 0, %s415
      %s418 = sphi 0, %s417
      %s432 = sphi 0, %s418
      %s436 = sphi 0, %s436
      %s438 = sphi 0, %s436
      %s439 = sphi 0, %s438
      %s453 = sphi 0, %s439
      %s457 = sphi 0, %s457
      %s459 = sphi 0, %s457
      %s460 = sphi 0, %s459
      %s474 = sphi 0, %s460
      %s478 = sphi 0, %s478
      %s480 = sphi 0, %s478
      %s481 = sphi 0, %s480
      %s495 = sphi 0, %s481
      %s499 = sphi 0, %s499
      %s501 = sphi 0, %s499
      %s502 = sphi 0, %s501
      %s516 = sphi 0, %s502
      %s520 = sphi 0, %s520
      %s522 = sphi 0, %s520
      %s523 = sphi 0, %s522
      %s537 = sphi 0, %s523
      %s543 = sphi 0, %s545
      %s546 = sphi 0, %s543
      %s547 = sphi 0, %s546
      %s563 = sphi 0, %s547
    $region4: #{dino_decoder_block.1} parent=1 // loop_header_branch
      %43 = sbr.rel (%p41) target = $region8
    $region5: #{dino_decoder_block.1} parent=1 // loop_body
      %s45 = ssub.s32 %s40, 1
      %s46 = ssub.s32 %s40, 2
      %s47 = sadd.s32 %s40, 1
      %s48 = ssub.s32 %s40, %s47
      %p49 = scmp.eq.s32.totalorder %s48, 0
      %s51 = sadd.s32 %s50, 1
      %s52 = scalar_select %p49, %s50, %s51
      %p55 = pneg %p49
      %p56 = scmp.eq.s32.totalorder %s40, 1
      %p57 = por %p55, %p56
      %p58 = scmp.ne.s32.totalorder %s50, %s53
      %p59 = scmp.eq.s32.totalorder %s40, 0
      %p60 = por %p58, %p59
      %p61 = scmp.ne.s32.totalorder %s50, %s53
      %p62 = scmp.eq.s32.totalorder %s45, 1
      %p63 = por %p61, %p62
      %p64 = scmp.ne.s32.totalorder %s53, %s54
      %p65 = scmp.eq.s32.totalorder %s45, 0
      %p66 = por %p64, %p65
      %p67 = scmp.ne.s32.totalorder %s53, %s54
      %p68 = scmp.eq.s32.totalorder %s46, 1
      %p69 = por %p67, %p68
      %p71 = scmp.ne.s32.totalorder %s54, %s70
      %p72 = scmp.eq.s32.totalorder %s46, 0
      %p73 = por %p71, %p72
      %s74 = ssub.s32 %s40, %s47
      %p75 = scmp.eq.s32.totalorder %s74, 0
      %s77 = sadd.s32 %s76, 1
      %s78 = scalar_select %p75, %s76, %s77
      %p81 = pneg %p75
      %p82 = scmp.eq.s32.totalorder %s40, 1
      %p83 = por %p81, %p82
      %p84 = scmp.ne.s32.totalorder %s76, %s79
      %p85 = scmp.eq.s32.totalorder %s40, 0
      %p86 = por %p84, %p85
      %p87 = scmp.ne.s32.totalorder %s76, %s79
      %p88 = scmp.eq.s32.totalorder %s45, 1
      %p89 = por %p87, %p88
      %p90 = scmp.ne.s32.totalorder %s79, %s80
      %p91 = scmp.eq.s32.totalorder %s45, 0
      %p92 = por %p90, %p91
      %p93 = scmp.ne.s32.totalorder %s79, %s80
      %p94 = scmp.eq.s32.totalorder %s46, 1
      %p95 = por %p93, %p94
      %p97 = scmp.ne.s32.totalorder %s80, %s96
      %p98 = scmp.eq.s32.totalorder %s46, 0
      %p99 = por %p97, %p98
      %s101 = sadd.s32 %s100, 1
      %p104 = scmp.eq.s32.totalorder %s40, 1
      %p105 = scmp.ne.s32.totalorder %s100, %s102
      %p106 = scmp.eq.s32.totalorder %s40, 0
      %p107 = por %p105, %p106
      %p108 = scmp.ne.s32.totalorder %s100, %s102
      %p109 = scmp.eq.s32.totalorder %s45, 1
      %p110 = por %p108, %p109
      %p111 = scmp.ne.s32.totalorder %s102, %s103
      %p112 = scmp.eq.s32.totalorder %s45, 0
      %p113 = por %p111, %p112
      %p114 = scmp.ne.s32.totalorder %s102, %s103
      %p115 = scmp.eq.s32.totalorder %s46, 1
      %p116 = por %p114, %p115
      %p118 = scmp.ne.s32.totalorder %s103, %s117
      %p119 = scmp.eq.s32.totalorder %s46, 0
      %p120 = por %p118, %p119
      %s122 = sadd.s32 %s121, 1
      %p125 = scmp.eq.s32.totalorder %s40, 1
      %p126 = scmp.ne.s32.totalorder %s121, %s123
      %p127 = scmp.eq.s32.totalorder %s40, 0
      %p128 = por %p126, %p127
      %p129 = scmp.ne.s32.totalorder %s121, %s123
      %p130 = scmp.eq.s32.totalorder %s45, 1
      %p131 = por %p129, %p130
      %p132 = scmp.ne.s32.totalorder %s123, %s124
      %p133 = scmp.eq.s32.totalorder %s45, 0
      %p134 = por %p132, %p133
      %p135 = scmp.ne.s32.totalorder %s123, %s124
      %p136 = scmp.eq.s32.totalorder %s46, 1
      %p137 = por %p135, %p136
      %p139 = scmp.ne.s32.totalorder %s124, %s138
      %p140 = scmp.eq.s32.totalorder %s46, 0
      %p141 = por %p139, %p140
      %s143 = sadd.s32 %s142, 1
      %p146 = scmp.eq.s32.totalorder %s40, 1
      %p147 = scmp.ne.s32.totalorder %s142, %s144
      %p148 = scmp.eq.s32.totalorder %s40, 0
      %p149 = por %p147, %p148
      %p150 = scmp.ne.s32.totalorder %s142, %s144
      %p151 = scmp.eq.s32.totalorder %s45, 1
      %p152 = por %p150, %p151
      %p153 = scmp.ne.s32.totalorder %s144, %s145
      %p154 = scmp.eq.s32.totalorder %s45, 0
      %p155 = por %p153, %p154
      %p156 = scmp.ne.s32.totalorder %s144, %s145
      %p157 = scmp.eq.s32.totalorder %s46, 1
      %p158 = por %p156, %p157
      %p160 = scmp.ne.s32.totalorder %s145, %s159
      %p161 = scmp.eq.s32.totalorder %s46, 0
      %p162 = por %p160, %p161
      %s164 = sadd.s32 %s163, 1
      %p167 = scmp.eq.s32.totalorder %s40, 1
      %p168 = scmp.ne.s32.totalorder %s163, %s165
      %p169 = scmp.eq.s32.totalorder %s40, 0
      %p170 = por %p168, %p169
      %p171 = scmp.ne.s32.totalorder %s163, %s165
      %p172 = scmp.eq.s32.totalorder %s45, 1
      %p173 = por %p171, %p172
      %p174 = scmp.ne.s32.totalorder %s165, %s166
      %p175 = scmp.eq.s32.totalorder %s45, 0
      %p176 = por %p174, %p175
      %p177 = scmp.ne.s32.totalorder %s165, %s166
      %p178 = scmp.eq.s32.totalorder %s46, 1
      %p179 = por %p177, %p178
      %p181 = scmp.ne.s32.totalorder %s166, %s180
      %p182 = scmp.eq.s32.totalorder %s46, 0
      %p183 = por %p181, %p182
      %s185 = sadd.s32 %s184, 1
      %p188 = scmp.eq.s32.totalorder %s40, 1
      %p189 = scmp.ne.s32.totalorder %s184, %s186
      %p190 = scmp.eq.s32.totalorder %s40, 0
      %p191 = por %p189, %p190
      %p192 = scmp.ne.s32.totalorder %s184, %s186
      %p193 = scmp.eq.s32.totalorder %s45, 1
      %p194 = por %p192, %p193
      %p195 = scmp.ne.s32.totalorder %s186, %s187
      %p196 = scmp.eq.s32.totalorder %s45, 0
      %p197 = por %p195, %p196
      %p198 = scmp.ne.s32.totalorder %s186, %s187
      %p199 = scmp.eq.s32.totalorder %s46, 1
      %p200 = por %p198, %p199
      %p202 = scmp.ne.s32.totalorder %s187, %s201
      %p203 = scmp.eq.s32.totalorder %s46, 0
      %p204 = por %p202, %p203
      %s206 = sadd.s32 %s205, 1
      %p209 = scmp.eq.s32.totalorder %s40, 1
      %p210 = scmp.ne.s32.totalorder %s205, %s207
      %p211 = scmp.eq.s32.totalorder %s40, 0
      %p212 = por %p210, %p211
      %p213 = scmp.ne.s32.totalorder %s205, %s207
      %p214 = scmp.eq.s32.totalorder %s45, 1
      %p215 = por %p213, %p214
      %p216 = scmp.ne.s32.totalorder %s207, %s208
      %p217 = scmp.eq.s32.totalorder %s45, 0
      %p218 = por %p216, %p217
      %p219 = scmp.ne.s32.totalorder %s207, %s208
      %p220 = scmp.eq.s32.totalorder %s46, 1
      %p221 = por %p219, %p220
      %p223 = scmp.ne.s32.totalorder %s208, %s222
      %p224 = scmp.eq.s32.totalorder %s46, 0
      %p225 = por %p223, %p224
      %s227 = sadd.s32 %s226, 1
      %p230 = scmp.eq.s32.totalorder %s40, 1
      %p231 = scmp.ne.s32.totalorder %s226, %s228
      %p232 = scmp.eq.s32.totalorder %s40, 0
      %p233 = por %p231, %p232
      %p234 = scmp.ne.s32.totalorder %s226, %s228
      %p235 = scmp.eq.s32.totalorder %s45, 1
      %p236 = por %p234, %p235
      %p237 = scmp.ne.s32.totalorder %s228, %s229
      %p238 = scmp.eq.s32.totalorder %s45, 0
      %p239 = por %p237, %p238
      %p240 = scmp.ne.s32.totalorder %s228, %s229
      %p241 = scmp.eq.s32.totalorder %s46, 1
      %p242 = por %p240, %p241
      %p244 = scmp.ne.s32.totalorder %s229, %s243
      %p245 = scmp.eq.s32.totalorder %s46, 0
      %p246 = por %p244, %p245
      %s248 = sadd.s32 %s247, 1
      %p251 = scmp.eq.s32.totalorder %s40, 1
      %p252 = scmp.ne.s32.totalorder %s247, %s249
      %p253 = scmp.eq.s32.totalorder %s40, 0
      %p254 = por %p252, %p253
      %p255 = scmp.ne.s32.totalorder %s247, %s249
      %p256 = scmp.eq.s32.totalorder %s45, 1
      %p257 = por %p255, %p256
      %p258 = scmp.ne.s32.totalorder %s249, %s250
      %p259 = scmp.eq.s32.totalorder %s45, 0
      %p260 = por %p258, %p259
      %p261 = scmp.ne.s32.totalorder %s249, %s250
      %p262 = scmp.eq.s32.totalorder %s46, 1
      %p263 = por %p261, %p262
      %p265 = scmp.ne.s32.totalorder %s250, %s264
      %p266 = scmp.eq.s32.totalorder %s46, 0
      %p267 = por %p265, %p266
      %s269 = sadd.s32 %s268, 1
      %p272 = scmp.eq.s32.totalorder %s40, 1
      %p273 = scmp.ne.s32.totalorder %s268, %s270
      %p274 = scmp.eq.s32.totalorder %s40, 0
      %p275 = por %p273, %p274
      %p276 = scmp.ne.s32.totalorder %s268, %s270
      %p277 = scmp.eq.s32.totalorder %s45, 1
      %p278 = por %p276, %p277
      %p279 = scmp.ne.s32.totalorder %s270, %s271
      %p280 = scmp.eq.s32.totalorder %s45, 0
      %p281 = por %p279, %p280
      %p282 = scmp.ne.s32.totalorder %s270, %s271
      %p283 = scmp.eq.s32.totalorder %s46, 1
      %p284 = por %p282, %p283
      %p286 = scmp.ne.s32.totalorder %s271, %s285
      %p287 = scmp.eq.s32.totalorder %s46, 0
      %p288 = por %p286, %p287
      %s290 = sadd.s32 %s289, 1
      %p293 = scmp.eq.s32.totalorder %s40, 1
      %p294 = scmp.ne.s32.totalorder %s289, %s291
      %p295 = scmp.eq.s32.totalorder %s40, 0
      %p296 = por %p294, %p295
      %p297 = scmp.ne.s32.totalorder %s289, %s291
      %p298 = scmp.eq.s32.totalorder %s45, 1
      %p299 = por %p297, %p298
      %p300 = scmp.ne.s32.totalorder %s291, %s292
      %p301 = scmp.eq.s32.totalorder %s45, 0
      %p302 = por %p300, %p301
      %p303 = scmp.ne.s32.totalorder %s291, %s292
      %p304 = scmp.eq.s32.totalorder %s46, 1
      %p305 = por %p303, %p304
      %p307 = scmp.ne.s32.totalorder %s292, %s306
      %p308 = scmp.eq.s32.totalorder %s46, 0
      %p309 = por %p307, %p308
      %s311 = sadd.s32 %s310, 1
      %p314 = scmp.eq.s32.totalorder %s40, 1
      %p315 = scmp.ne.s32.totalorder %s310, %s312
      %p316 = scmp.eq.s32.totalorder %s40, 0
      %p317 = por %p315, %p316
      %p318 = scmp.ne.s32.totalorder %s310, %s312
      %p319 = scmp.eq.s32.totalorder %s45, 1
      %p320 = por %p318, %p319
      %p321 = scmp.ne.s32.totalorder %s312, %s313
      %p322 = scmp.eq.s32.totalorder %s45, 0
      %p323 = por %p321, %p322
      %p324 = scmp.ne.s32.totalorder %s312, %s313
      %p325 = scmp.eq.s32.totalorder %s46, 1
      %p326 = por %p324, %p325
      %p328 = scmp.ne.s32.totalorder %s313, %s327
      %p329 = scmp.eq.s32.totalorder %s46, 0
      %p330 = por %p328, %p329
      %s332 = sadd.s32 %s331, 1
      %p335 = scmp.eq.s32.totalorder %s40, 1
      %p336 = scmp.ne.s32.totalorder %s331, %s333
      %p337 = scmp.eq.s32.totalorder %s40, 0
      %p338 = por %p336, %p337
      %p339 = scmp.ne.s32.totalorder %s331, %s333
      %p340 = scmp.eq.s32.totalorder %s45, 1
      %p341 = por %p339, %p340
      %p342 = scmp.ne.s32.totalorder %s333, %s334
      %p343 = scmp.eq.s32.totalorder %s45, 0
      %p344 = por %p342, %p343
      %p345 = scmp.ne.s32.totalorder %s333, %s334
      %p346 = scmp.eq.s32.totalorder %s46, 1
      %p347 = por %p345, %p346
      %p349 = scmp.ne.s32.totalorder %s334, %s348
      %p350 = scmp.eq.s32.totalorder %s46, 0
      %p351 = por %p349, %p350
      %s353 = sadd.s32 %s352, 1
      %p356 = scmp.eq.s32.totalorder %s40, 1
      %p357 = scmp.ne.s32.totalorder %s352, %s354
      %p358 = scmp.eq.s32.totalorder %s40, 0
      %p359 = por %p357, %p358
      %p360 = scmp.ne.s32.totalorder %s352, %s354
      %p361 = scmp.eq.s32.totalorder %s45, 1
      %p362 = por %p360, %p361
      %p363 = scmp.ne.s32.totalorder %s354, %s355
      %p364 = scmp.eq.s32.totalorder %s45, 0
      %p365 = por %p363, %p364
      %p366 = scmp.ne.s32.totalorder %s354, %s355
      %p367 = scmp.eq.s32.totalorder %s46, 1
      %p368 = por %p366, %p367
      %p370 = scmp.ne.s32.totalorder %s355, %s369
      %p371 = scmp.eq.s32.totalorder %s46, 0
      %p372 = por %p370, %p371
      %s374 = sadd.s32 %s373, 1
      %p377 = scmp.eq.s32.totalorder %s40, 1
      %p378 = scmp.ne.s32.totalorder %s373, %s375
      %p379 = scmp.eq.s32.totalorder %s40, 0
      %p380 = por %p378, %p379
      %p381 = scmp.ne.s32.totalorder %s373, %s375
      %p382 = scmp.eq.s32.totalorder %s45, 1
      %p383 = por %p381, %p382
      %p384 = scmp.ne.s32.totalorder %s375, %s376
      %p385 = scmp.eq.s32.totalorder %s45, 0
      %p386 = por %p384, %p385
      %p387 = scmp.ne.s32.totalorder %s375, %s376
      %p388 = scmp.eq.s32.totalorder %s46, 1
      %p389 = por %p387, %p388
      %p391 = scmp.ne.s32.totalorder %s376, %s390
      %p392 = scmp.eq.s32.totalorder %s46, 0
      %p393 = por %p391, %p392
      %s395 = sadd.s32 %s394, 1
      %p398 = scmp.eq.s32.totalorder %s40, 1
      %p399 = scmp.ne.s32.totalorder %s394, %s396
      %p400 = scmp.eq.s32.totalorder %s40, 0
      %p401 = por %p399, %p400
      %p402 = scmp.ne.s32.totalorder %s394, %s396
      %p403 = scmp.eq.s32.totalorder %s45, 1
      %p404 = por %p402, %p403
      %p405 = scmp.ne.s32.totalorder %s396, %s397
      %p406 = scmp.eq.s32.totalorder %s45, 0
      %p407 = por %p405, %p406
      %p408 = scmp.ne.s32.totalorder %s396, %s397
      %p409 = scmp.eq.s32.totalorder %s46, 1
      %p410 = por %p408, %p409
      %p412 = scmp.ne.s32.totalorder %s397, %s411
      %p413 = scmp.eq.s32.totalorder %s46, 0
      %p414 = por %p412, %p413
      %s416 = sadd.s32 %s415, 1
      %p419 = scmp.eq.s32.totalorder %s40, 1
      %p420 = scmp.ne.s32.totalorder %s415, %s417
      %p421 = scmp.eq.s32.totalorder %s40, 0
      %p422 = por %p420, %p421
      %p423 = scmp.ne.s32.totalorder %s415, %s417
      %p424 = scmp.eq.s32.totalorder %s45, 1
      %p425 = por %p423, %p424
      %p426 = scmp.ne.s32.totalorder %s417, %s418
      %p427 = scmp.eq.s32.totalorder %s45, 0
      %p428 = por %p426, %p427
      %p429 = scmp.ne.s32.totalorder %s417, %s418
      %p430 = scmp.eq.s32.totalorder %s46, 1
      %p431 = por %p429, %p430
      %p433 = scmp.ne.s32.totalorder %s418, %s432
      %p434 = scmp.eq.s32.totalorder %s46, 0
      %p435 = por %p433, %p434
      %s437 = sadd.s32 %s436, 1
      %p440 = scmp.eq.s32.totalorder %s40, 1
      %p441 = scmp.ne.s32.totalorder %s436, %s438
      %p442 = scmp.eq.s32.totalorder %s40, 0
      %p443 = por %p441, %p442
      %p444 = scmp.ne.s32.totalorder %s436, %s438
      %p445 = scmp.eq.s32.totalorder %s45, 1
      %p446 = por %p444, %p445
      %p447 = scmp.ne.s32.totalorder %s438, %s439
      %p448 = scmp.eq.s32.totalorder %s45, 0
      %p449 = por %p447, %p448
      %p450 = scmp.ne.s32.totalorder %s438, %s439
      %p451 = scmp.eq.s32.totalorder %s46, 1
      %p452 = por %p450, %p451
      %p454 = scmp.ne.s32.totalorder %s439, %s453
      %p455 = scmp.eq.s32.totalorder %s46, 0
      %p456 = por %p454, %p455
      %s458 = sadd.s32 %s457, 1
      %p461 = scmp.eq.s32.totalorder %s40, 1
      %p462 = scmp.ne.s32.totalorder %s457, %s459
      %p463 = scmp.eq.s32.totalorder %s40, 0
      %p464 = por %p462, %p463
      %p465 = scmp.ne.s32.totalorder %s457, %s459
      %p466 = scmp.eq.s32.totalorder %s45, 1
      %p467 = por %p465, %p466
      %p468 = scmp.ne.s32.totalorder %s459, %s460
      %p469 = scmp.eq.s32.totalorder %s45, 0
      %p470 = por %p468, %p469
      %p471 = scmp.ne.s32.totalorder %s459, %s460
      %p472 = scmp.eq.s32.totalorder %s46, 1
      %p473 = por %p471, %p472
      %p475 = scmp.ne.s32.totalorder %s460, %s474
      %p476 = scmp.eq.s32.totalorder %s46, 0
      %p477 = por %p475, %p476
      %s479 = sadd.s32 %s478, 1
      %p482 = scmp.eq.s32.totalorder %s40, 1
      %p483 = scmp.ne.s32.totalorder %s478, %s480
      %p484 = scmp.eq.s32.totalorder %s40, 0
      %p485 = por %p483, %p484
      %p486 = scmp.ne.s32.totalorder %s478, %s480
      %p487 = scmp.eq.s32.totalorder %s45, 1
      %p488 = por %p486, %p487
      %p489 = scmp.ne.s32.totalorder %s480, %s481
      %p490 = scmp.eq.s32.totalorder %s45, 0
      %p491 = por %p489, %p490
      %p492 = scmp.ne.s32.totalorder %s480, %s481
      %p493 = scmp.eq.s32.totalorder %s46, 1
      %p494 = por %p492, %p493
      %p496 = scmp.ne.s32.totalorder %s481, %s495
      %p497 = scmp.eq.s32.totalorder %s46, 0
      %p498 = por %p496, %p497
      %s500 = sadd.s32 %s499, 1
      %p503 = scmp.eq.s32.totalorder %s40, 1
      %p504 = scmp.ne.s32.totalorder %s499, %s501
      %p505 = scmp.eq.s32.totalorder %s40, 0
      %p506 = por %p504, %p505
      %p507 = scmp.ne.s32.totalorder %s499, %s501
      %p508 = scmp.eq.s32.totalorder %s45, 1
      %p509 = por %p507, %p508
      %p510 = scmp.ne.s32.totalorder %s501, %s502
      %p511 = scmp.eq.s32.totalorder %s45, 0
      %p512 = por %p510, %p511
      %p513 = scmp.ne.s32.totalorder %s501, %s502
      %p514 = scmp.eq.s32.totalorder %s46, 1
      %p515 = por %p513, %p514
      %p517 = scmp.ne.s32.totalorder %s502, %s516
      %p518 = scmp.eq.s32.totalorder %s46, 0
      %p519 = por %p517, %p518
      %s521 = sadd.s32 %s520, 1
      %p524 = scmp.eq.s32.totalorder %s40, 1
      %p525 = scmp.ne.s32.totalorder %s520, %s522
      %p526 = scmp.eq.s32.totalorder %s40, 0
      %p527 = por %p525, %p526
      %p528 = scmp.ne.s32.totalorder %s520, %s522
      %p529 = scmp.eq.s32.totalorder %s45, 1
      %p530 = por %p528, %p529
      %p531 = scmp.ne.s32.totalorder %s522, %s523
      %p532 = scmp.eq.s32.totalorder %s45, 0
      %p533 = por %p531, %p532
      %p534 = scmp.ne.s32.totalorder %s522, %s523
      %p535 = scmp.eq.s32.totalorder %s46, 1
      %p536 = por %p534, %p535
      %p538 = scmp.ne.s32.totalorder %s523, %s537
      %p539 = scmp.eq.s32.totalorder %s46, 0
      %p540 = por %p538, %p539
      %s541 = ssub.s32 %s40, %s47
      %p542 = scmp.eq.s32.totalorder %s541, 0
      %s544 = sadd.s32 %s543, 1
      %s545 = scalar_select %p542, %s543, %s544
      %p548 = pneg %p542
      %p549 = scmp.eq.s32.totalorder %s40, 1
      %p550 = por %p548, %p549
      %p551 = scmp.ne.s32.totalorder %s543, %s546
      %p552 = scmp.eq.s32.totalorder %s40, 0
      %p553 = por %p551, %p552
      %p554 = scmp.ne.s32.totalorder %s543, %s546
      %p555 = scmp.eq.s32.totalorder %s45, 1
      %p556 = por %p554, %p555
      %p557 = scmp.ne.s32.totalorder %s546, %s547
      %p558 = scmp.eq.s32.totalorder %s45, 0
      %p559 = por %p557, %p558
      %p560 = scmp.ne.s32.totalorder %s546, %s547
      %p561 = scmp.eq.s32.totalorder %s46, 1
      %p562 = por %p560, %p561
      %p564 = scmp.ne.s32.totalorder %s547, %s563
      %p565 = scmp.eq.s32.totalorder %s46, 0
      %p566 = por %p564, %p565
      %p567 = scmp.le.s32.totalorder 1, %s40
      %p568 = scmp.lt.s32.totalorder %s40, 3
      %p569 = pnand %p567, %p568
      %p570 = pneg %p569
      // Predicated region
      $region9: #{dino_decoder_block.1} parent=5 // pred_check
        _
      $region10: #{dino_decoder_block.1} parent=5 // pred_check_branch
        %572 = sbr.rel (%p569) target = $region12
      $region11: #{dino_decoder_block.1} parent=5 // pred_region
        %s573 = ssub.s32 %s40, 1
        // Predicated region
        $region13: #{dino_decoder_block.1} parent=11 // pred_check
          %p574 = pneg %p113
        $region14: #{dino_decoder_block.1} parent=11 // pred_check_branch
          %576 = sbr.rel (%p574) target = $region16
        $region15: #{dino_decoder_block.1} parent=11 // pred_region
          _
        $region16: #{dino_decoder_block.1} parent=11 // pred_fallthru
          _
        // Predicated region
        $region17: #{dino_decoder_block.1} parent=11 // pred_check
          %p577 = pneg %p134
        $region18: #{dino_decoder_block.1} parent=11 // pred_check_branch
          %579 = sbr.rel (%p577) target = $region20
        $region19: #{dino_decoder_block.1} parent=11 // pred_region
          %s581 = ssub.s32 16, 16
          %582 = vsyncadd [#allocation4], %s581
          %s584 = sshll.u32 [#allocation3], 4
          %s585 = int_to_ptr.vmem [resolvable:$true] %s584
          %587 = dma.hbm_to_vmem [thread:$0]  %s3, 16, %s585, [#allocation4]
        $region20: #{dino_decoder_block.1} parent=11 // pred_fallthru
          _
        // Predicated region
        $region21: #{dino_decoder_block.1} parent=11 // pred_check
          %p588 = pneg %p155
        $region22: #{dino_decoder_block.1} parent=11 // pred_check_branch
          %590 = sbr.rel (%p588) target = $region24
        $region23: #{dino_decoder_block.1} parent=11 // pred_region
          %s592 = ssub.s32 16, 16
          %593 = vsyncadd [#allocation7], %s592
          %s595 = sshll.u32 [#allocation6], 4
          %s596 = int_to_ptr.vmem [resolvable:$true] %s595
          %598 = dma.hbm_to_vmem [thread:$0]  %s4, 16, %s596, [#allocation7]
        $region24: #{dino_decoder_block.1} parent=11 // pred_fallthru
          _
        // Predicated region
        $region25: #{dino_decoder_block.1} parent=11 // pred_check
          %p599 = pneg %p176
        $region26: #{dino_decoder_block.1} parent=11 // pred_check_branch
          %601 = sbr.rel (%p599) target = $region28
        $region27: #{dino_decoder_block.1} parent=11 // pred_region
          _
        $region28: #{dino_decoder_block.1} parent=11 // pred_fallthru
          _
        // Predicated region
        $region29: #{dino_decoder_block.1} parent=11 // pred_check
          %p602 = pneg %p197
        $region30: #{dino_decoder_block.1} parent=11 // pred_check_branch
          %604 = sbr.rel (%p602) target = $region32
        $region31: #{dino_decoder_block.1} parent=11 // pred_region
          _
        $region32: #{dino_decoder_block.1} parent=11 // pred_fallthru
          _
        // Predicated region
        $region33: #{dino_decoder_block.1} parent=11 // pred_check
          %p605 = pneg %p218
        $region34: #{dino_decoder_block.1} parent=11 // pred_check_branch
          %607 = sbr.rel (%p605) target = $region36
        $region35: #{dino_decoder_block.1} parent=11 // pred_region
          %s609 = ssub.s32 16, 16
          %610 = vsyncadd [#allocation7], %s609
          %s612 = sshll.u32 [#allocation8], 4
          %s613 = int_to_ptr.vmem [resolvable:$true] %s612
          %615 = dma.hbm_to_vmem [thread:$0]  %s7, 16, %s613, [#allocation7]
        $region36: #{dino_decoder_block.1} parent=11 // pred_fallthru
          _
        // Predicated region
        $region37: #{dino_decoder_block.1} parent=11 // pred_check
          %p616 = pneg %p239
        $region38: #{dino_decoder_block.1} parent=11 // pred_check_branch
          %618 = sbr.rel (%p616) target = $region40
        $region39: #{dino_decoder_block.1} parent=11 // pred_region
          %s620 = ssub.s32 16, 16
          %621 = vsyncadd [#allocation10], %s620
          %s623 = sshll.u32 [#allocation9], 4
          %s624 = int_to_ptr.vmem [resolvable:$true] %s623
          %626 = dma.hbm_to_vmem [thread:$0]  %s8, 16, %s624, [#allocation10]
        $region40: #{dino_decoder_block.1} parent=11 // pred_fallthru
          _
        // Predicated region
        $region41: #{dino_decoder_block.1} parent=11 // pred_check
          %p627 = pneg %p260
        $region42: #{dino_decoder_block.1} parent=11 // pred_check_branch
          %629 = sbr.rel (%p627) target = $region44
        $region43: #{dino_decoder_block.1} parent=11 // pred_region
          %s631 = ssub.s32 16, 16
          %632 = vsyncadd [#allocation10], %s631
          %s634 = sshll.u32 [#allocation11], 4
          %s635 = int_to_ptr.vmem [resolvable:$true] %s634
          %637 = dma.hbm_to_vmem [thread:$0]  %s9, 16, %s635, [#allocation10]
        $region44: #{dino_decoder_block.1} parent=11 // pred_fallthru
          _
        // Predicated region
        $region45: #{dino_decoder_block.1} parent=11 // pred_check
          %p638 = pneg %p281
        $region46: #{dino_decoder_block.1} parent=11 // pred_check_branch
          %640 = sbr.rel (%p638) target = $region48
        $region47: #{dino_decoder_block.1} parent=11 // pred_region
          %s642 = ssub.s32 16, 16
          %643 = vsyncadd [#allocation13], %s642
          %s645 = sshll.u32 [#allocation12], 4
          %s646 = int_to_ptr.vmem [resolvable:$true] %s645
          %648 = dma.hbm_to_vmem [thread:$0]  %s10, 16, %s646, [#allocation13]
        $region48: #{dino_decoder_block.1} parent=11 // pred_fallthru
          _
        // Predicated region
        $region49: #{dino_decoder_block.1} parent=11 // pred_check
          %p649 = pneg %p302
        $region50: #{dino_decoder_block.1} parent=11 // pred_check_branch
          %651 = sbr.rel (%p649) target = $region52
        $region51: #{dino_decoder_block.1} parent=11 // pred_region
          %s653 = ssub.s32 16, 16
          %654 = vsyncadd [#allocation13], %s653
          %s656 = sshll.u32 [#allocation14], 4
          %s657 = int_to_ptr.vmem [resolvable:$true] %s656
          %659 = dma.hbm_to_vmem [thread:$0]  %s11, 16, %s657, [#allocation13]
        $region52: #{dino_decoder_block.1} parent=11 // pred_fallthru
          _
        // Predicated region
        $region53: #{dino_decoder_block.1} parent=11 // pred_check
          %p660 = pneg %p323
        $region54: #{dino_decoder_block.1} parent=11 // pred_check_branch
          %662 = sbr.rel (%p660) target = $region56
        $region55: #{dino_decoder_block.1} parent=11 // pred_region
          %s664 = ssub.s32 256, 256
          %665 = vsyncadd [#allocation16], %s664
          %s666 = sshll.u32 [#allocation15], 4
          %s667 = int_to_ptr.vmem [resolvable:$true] %s666
          %672 = dma.hbm_to_vmem [thread:$0]  %s12, 256, %s667, [#allocation16], 64, 64, 4
        $region56: #{dino_decoder_block.1} parent=11 // pred_fallthru
          _
        // Predicated region
        $region57: #{dino_decoder_block.1} parent=11 // pred_check
          %p673 = pneg %p344
        $region58: #{dino_decoder_block.1} parent=11 // pred_check_branch
          %675 = sbr.rel (%p673) target = $region60
        $region59: #{dino_decoder_block.1} parent=11 // pred_region
          %s677 = ssub.s32 256, 256
          %678 = vsyncadd [#allocation16], %s677
          %s679 = sshll.u32 [#allocation17], 4
          %s680 = int_to_ptr.vmem [resolvable:$true] %s679
          %685 = dma.hbm_to_vmem [thread:$0]  %s13, 256, %s680, [#allocation16], 64, 64, 4
        $region60: #{dino_decoder_block.1} parent=11 // pred_fallthru
          _
        // Predicated region
        $region61: #{dino_decoder_block.1} parent=11 // pred_check
          %p686 = pneg %p365
        $region62: #{dino_decoder_block.1} parent=11 // pred_check_branch
          %688 = sbr.rel (%p686) target = $region64
        $region63: #{dino_decoder_block.1} parent=11 // pred_region
          %s690 = ssub.s32 256, 256
          %691 = vsyncadd [#allocation19], %s690
          %s692 = sshll.u32 [#allocation18], 4
          %s693 = int_to_ptr.vmem [resolvable:$true] %s692
          %698 = dma.hbm_to_vmem [thread:$0]  %s14, 256, %s693, [#allocation19], 64, 64, 4
        $region64: #{dino_decoder_block.1} parent=11 // pred_fallthru
          _
        // Predicated region
        $region65: #{dino_decoder_block.1} parent=11 // pred_check
          %p699 = pneg %p386
        $region66: #{dino_decoder_block.1} parent=11 // pred_check_branch
          %701 = sbr.rel (%p699) target = $region68
        $region67: #{dino_decoder_block.1} parent=11 // pred_region
          _
        $region68: #{dino_decoder_block.1} parent=11 // pred_fallthru
          _
        // Predicated region
        $region69: #{dino_decoder_block.1} parent=11 // pred_check
          %p702 = pneg %p407
        $region70: #{dino_decoder_block.1} parent=11 // pred_check_branch
          %704 = sbr.rel (%p702) target = $region72
        $region71: #{dino_decoder_block.1} parent=11 // pred_region
          %s706 = ssub.s32 16, 16
          %707 = vsyncadd [#allocation19], %s706
          %s709 = sshll.u32 [#allocation20], 4
          %s710 = int_to_ptr.vmem [resolvable:$true] %s709
          %712 = dma.hbm_to_vmem [thread:$0]  %s16, 16, %s710, [#allocation19]
        $region72: #{dino_decoder_block.1} parent=11 // pred_fallthru
          _
        // Predicated region
        $region73: #{dino_decoder_block.1} parent=11 // pred_check
          %p713 = pneg %p428
        $region74: #{dino_decoder_block.1} parent=11 // pred_check_branch
          %715 = sbr.rel (%p713) target = $region76
        $region75: #{dino_decoder_block.1} parent=11 // pred_region
          %s717 = ssub.s32 16, 16
          %718 = vsyncadd [#allocation22], %s717
          %s720 = sshll.u32 [#allocation21], 4
          %s721 = int_to_ptr.vmem [resolvable:$true] %s720
          %723 = dma.hbm_to_vmem [thread:$0]  %s17, 16, %s721, [#allocation22]
        $region76: #{dino_decoder_block.1} parent=11 // pred_fallthru
          _
        // Predicated region
        $region77: #{dino_decoder_block.1} parent=11 // pred_check
          %p724 = pneg %p449
        $region78: #{dino_decoder_block.1} parent=11 // pred_check_branch
          %726 = sbr.rel (%p724) target = $region80
        $region79: #{dino_decoder_block.1} parent=11 // pred_region
          %s728 = ssub.s32 16, 16
          %729 = vsyncadd [#allocation22], %s728
          %s731 = sshll.u32 [#allocation23], 4
          %s732 = int_to_ptr.vmem [resolvable:$true] %s731
          %734 = dma.hbm_to_vmem [thread:$0]  %s18, 16, %s732, [#allocation22]
        $region80: #{dino_decoder_block.1} parent=11 // pred_fallthru
          _
        // Predicated region
        $region81: #{dino_decoder_block.1} parent=11 // pred_check
          %p735 = pneg %p470
        $region82: #{dino_decoder_block.1} parent=11 // pred_check_branch
          %737 = sbr.rel (%p735) target = $region84
        $region83: #{dino_decoder_block.1} parent=11 // pred_region
          %s739 = ssub.s32 256, 256
          %740 = vsyncadd [#allocation25], %s739
          %s741 = sshll.u32 [#allocation24], 4
          %s742 = int_to_ptr.vmem [resolvable:$true] %s741
          %747 = dma.hbm_to_vmem [thread:$0]  %s19, 256, %s742, [#allocation25], 64, 64, 4
        $region84: #{dino_decoder_block.1} parent=11 // pred_fallthru
          _
        // Predicated region
        $region85: #{dino_decoder_block.1} parent=11 // pred_check
          %p748 = pneg %p491
        $region86: #{dino_decoder_block.1} parent=11 // pred_check_branch
          %750 = sbr.rel (%p748) target = $region88
        $region87: #{dino_decoder_block.1} parent=11 // pred_region
          _
        $region88: #{dino_decoder_block.1} parent=11 // pred_fallthru
          _
        // Predicated region
        $region89: #{dino_decoder_block.1} parent=11 // pred_check
          %p751 = pneg %p512
        $region90: #{dino_decoder_block.1} parent=11 // pred_check_branch
          %753 = sbr.rel (%p751) target = $region92
        $region91: #{dino_decoder_block.1} parent=11 // pred_region
          _
        $region92: #{dino_decoder_block.1} parent=11 // pred_fallthru
          _
        // Predicated region
        $region93: #{dino_decoder_block.1} parent=11 // pred_check
          %p754 = pneg %p533
        $region94: #{dino_decoder_block.1} parent=11 // pred_check_branch
          %756 = sbr.rel (%p754) target = $region96
        $region95: #{dino_decoder_block.1} parent=11 // pred_region
          _
        $region96: #{dino_decoder_block.1} parent=11 // pred_fallthru
          _
      $region12: #{dino_decoder_block.1} parent=5 // pred_fallthru
        _
      %p757 = scmp.lt.s32.totalorder %s40, 2
      // Predicated region
      $region97: #{dino_decoder_block.1} parent=5 // pred_check
        %p758 = pneg %p757
      $region98: #{dino_decoder_block.1} parent=5 // pred_check_branch
        %760 = sbr.rel (%p758) target = $region100
      $region99: #{dino_decoder_block.1} parent=5 // pred_region
        // Predicated region
        $region101: #{dino_decoder_block.1} parent=99 // pred_check
          %p761 = pneg %p60
        $region102: #{dino_decoder_block.1} parent=99 // pred_check_branch
          %763 = sbr.rel (%p761) target = $region104
        $region103: #{dino_decoder_block.1} parent=99 // pred_region
          %p764 = scmp.lt.s32.totalorder %s40, 1
          %s765 = scalar_select %p764, %s40, 1
          %s766 = smul.addr %s765, 2
          %s767 = smul.addr %s766, 8
          %s768 = scalar_lea.vmem %s0, %s767
        $region104: #{dino_decoder_block.1} parent=99 // pred_fallthru
          _
        // Predicated region
        $region105: #{dino_decoder_block.1} parent=99 // pred_check
          %p769 = pneg %p86
        $region106: #{dino_decoder_block.1} parent=99 // pred_check_branch
          %771 = sbr.rel (%p769) target = $region108
        $region107: #{dino_decoder_block.1} parent=99 // pred_region
          %p772 = scmp.lt.s32.totalorder %s40, 1
          %s773 = scalar_select %p772, %s40, 1
          %s774 = smul.addr %s773, 2
          %s775 = smul.addr %s774, 8
          %s776 = scalar_lea.vmem %s1, %s775
        $region108: #{dino_decoder_block.1} parent=99 // pred_fallthru
          _
      $region100: #{dino_decoder_block.1} parent=5 // pred_fallthru
        _
      %p777 = scmp.le.s32.totalorder 1, %s40
      %p778 = scmp.lt.s32.totalorder %s40, 3
      %p779 = pnand %p777, %p778
      %p780 = pneg %p779
      // Predicated region
      $region109: #{dino_decoder_block.1} parent=5 // pred_check
        _
      $region110: #{dino_decoder_block.1} parent=5 // pred_check_branch
        %782 = sbr.rel (%p779) target = $region112
      $region111: #{dino_decoder_block.1} parent=5 // pred_region
        %s783 = ssub.s32 %s40, 1
        // Predicated region
        $region113: #{dino_decoder_block.1} parent=111 // pred_check
          %p784 = pneg %p134
        $region114: #{dino_decoder_block.1} parent=111 // pred_check_branch
          %786 = sbr.rel (%p784) target = $region116
        $region115: #{dino_decoder_block.1} parent=111 // pred_region
          %787 = dma.done [#allocation4], 16
        $region116: #{dino_decoder_block.1} parent=111 // pred_fallthru
          _
        // Predicated region
        $region117: #{dino_decoder_block.1} parent=111 // pred_check
          %p788 = pneg %p155
        $region118: #{dino_decoder_block.1} parent=111 // pred_check_branch
          %790 = sbr.rel (%p788) target = $region120
        $region119: #{dino_decoder_block.1} parent=111 // pred_region
          %791 = dma.done [#allocation7], 16
        $region120: #{dino_decoder_block.1} parent=111 // pred_fallthru
          _
        // Predicated region
        $region121: #{dino_decoder_block.1} parent=111 // pred_check
          %p792 = pneg %p218
        $region122: #{dino_decoder_block.1} parent=111 // pred_check_branch
          %794 = sbr.rel (%p792) target = $region124
        $region123: #{dino_decoder_block.1} parent=111 // pred_region
          %795 = dma.done [#allocation7], 16
        $region124: #{dino_decoder_block.1} parent=111 // pred_fallthru
          _
        // Predicated region
        $region125: #{dino_decoder_block.1} parent=111 // pred_check
          %p796 = pneg %p239
        $region126: #{dino_decoder_block.1} parent=111 // pred_check_branch
          %798 = sbr.rel (%p796) target = $region128
        $region127: #{dino_decoder_block.1} parent=111 // pred_region
          %799 = dma.done [#allocation10], 16
        $region128: #{dino_decoder_block.1} parent=111 // pred_fallthru
          _
        // Predicated region
        $region129: #{dino_decoder_block.1} parent=111 // pred_check
          %p800 = pneg %p260
        $region130: #{dino_decoder_block.1} parent=111 // pred_check_branch
          %802 = sbr.rel (%p800) target = $region132
        $region131: #{dino_decoder_block.1} parent=111 // pred_region
          %803 = dma.done [#allocation10], 16
        $region132: #{dino_decoder_block.1} parent=111 // pred_fallthru
          _
        // Predicated region
        $region133: #{dino_decoder_block.1} parent=111 // pred_check
          %p804 = pneg %p281
        $region134: #{dino_decoder_block.1} parent=111 // pred_check_branch
          %806 = sbr.rel (%p804) target = $region136
        $region135: #{dino_decoder_block.1} parent=111 // pred_region
          %807 = dma.done [#allocation13], 16
        $region136: #{dino_decoder_block.1} parent=111 // pred_fallthru
          _
        // Predicated region
        $region137: #{dino_decoder_block.1} parent=111 // pred_check
          %p808 = pneg %p302
        $region138: #{dino_decoder_block.1} parent=111 // pred_check_branch
          %810 = sbr.rel (%p808) target = $region140
        $region139: #{dino_decoder_block.1} parent=111 // pred_region
          %811 = dma.done [#allocation13], 16
        $region140: #{dino_decoder_block.1} parent=111 // pred_fallthru
          _
        // Predicated region
        $region141: #{dino_decoder_block.1} parent=111 // pred_check
          %p812 = pneg %p323
        $region142: #{dino_decoder_block.1} parent=111 // pred_check_branch
          %814 = sbr.rel (%p812) target = $region144
        $region143: #{dino_decoder_block.1} parent=111 // pred_region
          %815 = dma.done [#allocation16], 256
        $region144: #{dino_decoder_block.1} parent=111 // pred_fallthru
          _
        // Predicated region
        $region145: #{dino_decoder_block.1} parent=111 // pred_check
          %p816 = pneg %p344
        $region146: #{dino_decoder_block.1} parent=111 // pred_check_branch
          %818 = sbr.rel (%p816) target = $region148
        $region147: #{dino_decoder_block.1} parent=111 // pred_region
          %819 = dma.done [#allocation16], 256
        $region148: #{dino_decoder_block.1} parent=111 // pred_fallthru
          _
        // Predicated region
        $region149: #{dino_decoder_block.1} parent=111 // pred_check
          %p820 = pneg %p365
        $region150: #{dino_decoder_block.1} parent=111 // pred_check_branch
          %822 = sbr.rel (%p820) target = $region152
        $region151: #{dino_decoder_block.1} parent=111 // pred_region
          %823 = dma.done [#allocation19], 256
        $region152: #{dino_decoder_block.1} parent=111 // pred_fallthru
          _
        // Predicated region
        $region153: #{dino_decoder_block.1} parent=111 // pred_check
          %p824 = pneg %p407
        $region154: #{dino_decoder_block.1} parent=111 // pred_check_branch
          %826 = sbr.rel (%p824) target = $region156
        $region155: #{dino_decoder_block.1} parent=111 // pred_region
          %827 = dma.done [#allocation19], 16
        $region156: #{dino_decoder_block.1} parent=111 // pred_fallthru
          _
        // Predicated region
        $region157: #{dino_decoder_block.1} parent=111 // pred_check
          %p828 = pneg %p428
        $region158: #{dino_decoder_block.1} parent=111 // pred_check_branch
          %830 = sbr.rel (%p828) target = $region160
        $region159: #{dino_decoder_block.1} parent=111 // pred_region
          %831 = dma.done [#allocation22], 16
        $region160: #{dino_decoder_block.1} parent=111 // pred_fallthru
          _
        // Predicated region
        $region161: #{dino_decoder_block.1} parent=111 // pred_check
          %p832 = pneg %p449
        $region162: #{dino_decoder_block.1} parent=111 // pred_check_branch
          %834 = sbr.rel (%p832) target = $region164
        $region163: #{dino_decoder_block.1} parent=111 // pred_region
          %835 = dma.done [#allocation22], 16
        $region164: #{dino_decoder_block.1} parent=111 // pred_fallthru
          _
        // Predicated region
        $region165: #{dino_decoder_block.1} parent=111 // pred_check
          %p836 = pneg %p470
        $region166: #{dino_decoder_block.1} parent=111 // pred_check_branch
          %838 = sbr.rel (%p836) target = $region168
        $region167: #{dino_decoder_block.1} parent=111 // pred_region
          %839 = dma.done [#allocation25], 256
        $region168: #{dino_decoder_block.1} parent=111 // pred_fallthru
          _
        %p840 = scmp.lt.s32.totalorder %s45, 1
        %s841 = scalar_select %p840, %s45, 1
        %s842 = smul.addr %s841, 2
        %s843 = smul.addr %s842, 8
        %s844 = scalar_lea.vmem %s0, %s843
        %p845 = pneg %p66
        %p846 = pneg %p63
        %p847 = scmp.lt.s32.totalorder %s45, 1
        %s848 = scalar_select %p847, %s45, 1
        %s849 = smul.addr %s848, 2
        %s850 = smul.addr %s849, 8
        %s851 = scalar_lea.vmem %s1, %s850
        %p852 = pneg %p92
        %p853 = pneg %p89
        %p854 = pneg %p113
        %p855 = pneg %p110
        %p856 = pneg %p134
        %p857 = pneg %p131
        %p858 = pneg %p155
        %p859 = pneg %p152
        %p860 = pneg %p176
        %p861 = pneg %p173
        %p862 = pneg %p197
        %p863 = pneg %p194
        %p864 = pneg %p218
        %p865 = pneg %p215
        %p866 = pneg %p239
        %p867 = pneg %p236
        %p868 = pneg %p260
        %p869 = pneg %p257
        %p870 = pneg %p281
        %p871 = pneg %p278
        %p872 = pneg %p302
        %p873 = pneg %p299
        %p874 = pneg %p323
        %p875 = pneg %p320
        %p876 = pneg %p344
        %p877 = pneg %p341
        %p878 = pneg %p365
        %p879 = pneg %p362
        %p880 = pneg %p386
        %p881 = pneg %p383
        %p882 = pneg %p407
        %p883 = pneg %p404
        %p884 = pneg %p428
        %p885 = pneg %p425
        %p886 = pneg %p449
        %p887 = pneg %p446
        %p888 = pneg %p470
        %p889 = pneg %p467
        %p890 = pneg %p491
        %p891 = pneg %p488
        %p892 = pneg %p512
        %p893 = pneg %p509
        %p894 = pneg %p533
        %p895 = pneg %p530
        %p896 = pneg %p559
        %p897 = pneg %p556
        %s898 = sand.u32 %s546, 1
        %s899 = scalar_lea.sflag [#allocation5], %s898
        %s900 = sand.u32 %s546, 1
        %s901 = smul.addr %s900, 16
        %s902 = scalar_lea.vmem [#allocation26], %s901
        %p903 = scmp.lt.s32.totalorder %s45, 1
        %s904 = scalar_select %p903, %s45, 1
        %s905 = smul.addr %s904, 2
        %s906 = smul.addr %s905, 8
        %s907 = scalar_lea.vmem %s0, %s906
        %p908 = scmp.lt.s32.totalorder %s45, 1
        %s909 = scalar_select %p908, %s45, 1
        %s910 = smul.addr %s909, 2
        %s911 = smul.addr %s910, 8
        %s912 = scalar_lea.vmem %s1, %s911
        %v914 = vld [vmem:[%s907] sm:$0xff]
        %v915 = vld [vmem:[%s907 + $0x8] sm:$0xff]
        %v916 = vld [vmem:[#allocation3] sm:$0x1]
        %v917 = vld [vmem:[#allocation6] sm:$0x1]
        %vm918 = vcmask 261120
        %v919 = vsel %vm918, %v914, 0.0
        %920 = vadd.xlane.f32.xlu0 %v919
        %v921 = vpop.xlane.xlu0 %920
        %v922 = vsel %vm918, %v915, 0.0
        %923 = vadd.xlane.f32.xlu0 %v922
        %v924 = vpop.xlane.xlu0 %923
        %v925 = vrcp.pop 32.0
        %v926 = vmul.f32 %v921, %v925
        %v927 = vmul.f32 %v924, %v925
        %v928 = vsub.f32 %v914, %v926
        %v929 = vsub.f32 %v915, %v927
        %v930 = vmul.f32 %v928, %v928
        %v931 = vmul.f32 %v929, %v929
        %v932 = vsel %vm918, %v930, 0.0
        %933 = vadd.xlane.f32.xlu0 %v932
        %v934 = vpop.xlane.xlu0 %933
        %v935 = vsel %vm918, %v931, 0.0
        %936 = vadd.xlane.f32.xlu0 %v935
        %v937 = vpop.xlane.xlu0 %936
        %v938 = vmul.f32 %v934, %v925
        %v939 = vmul.f32 %v937, %v925
        %v940 = vadd.f32 %v938, 1e-05
        %v941 = vadd.f32 %v939, 1e-05
        %v942 = vrsqrt.pop %v940
        %v943 = vrsqrt.pop %v941
        %v944 = vmul.f32 %v928, %v942
        %v945 = vmul.f32 %v929, %v943
        %v947 = vlaneseq
        %v948 = vshrl.u32 %v947, 7
        %v949 = vsub.s32 0, %v948
        %v950 = vrot.slane %v916, %v949
        %v952 = vmul.f32 %v944, %v950
        %v953 = vmul.f32 %v945, %v950
        %v955 = vlaneseq
        %v956 = vshrl.u32 %v955, 7
        %v957 = vsub.s32 0, %v956
        %v958 = vrot.slane %v917, %v957
        %v960 = vadd.f32 %v952, %v958
        %v961 = vadd.f32 %v953, %v958
        %v962 = vpack.c.bf16 %v961, %v960
        %v963 = vld [vmem:[%s5] sm:$0xf]
        %v964 = vld [vmem:[%s5 + $0x4] sm:$0xf]
        %v965 = vld [vmem:[%s5 + $0x8] sm:$0xf]
        %v966 = vld [vmem:[%s5 + $0xc] sm:$0xf]
        %v971 = vunpack.c.l.b16 %v963
        %v972 = vunpack.c.l.b16 %v964
        %v973 = vunpack.c.l.b16 %v965
        %v974 = vunpack.c.l.b16 %v966
        %v975 = vpack.c.b16 %v972, %v971
        %v976 = vpack.c.b16 %v974, %v973
        %v980 = vsel %vm918, %v962, 0
        %982 = vmatprep.subr.bf16.mxu0 0
        %983 = vmatpush1.bf16.msra.mxu0 0
        %984 = vmatprep.subr.bf16.mxu0 0
        %985 = vmatpush1.bf16.msra.mxu0 0
        %986 = vmatprep.subr.bf16.mxu0 0
        %987 = vmatpush1.bf16.msra.mxu0 0
        %988 = vmatprep.subr.bf16.mxu0 0
        %989 = vmatpush1.bf16.msra.mxu0 0
        %990 = vmatprep.subr.bf16.mxu0 0
        %991 = vmatpush1.bf16.msra.mxu0 0
        %992 = vmatprep.subr.bf16.mxu0 0
        %993 = vmatpush1.bf16.msra.mxu0 0
        %994 = vmatprep.subr.bf16.mxu0 0
        %995 = vmatpush1.bf16.msra.mxu0 %v976
        %996 = vmatprep.subr.bf16.mxu0 0
        %997 = vmatpush1.bf16.msra.mxu0 %v975
        %998 = vmatprep.subr.bf16.mxu0 0
        %999 = vmatpush2.bf16.msra.mxu0 0
        %1000 = vmatprep.subr.bf16.mxu0 0
        %1001 = vmatpush2.bf16.msra.mxu0 0
        %1002 = vmatprep.subr.bf16.mxu0 0
        %1003 = vmatpush2.bf16.msra.mxu0 0
        %1004 = vmatprep.subr.bf16.mxu0 0
        %1005 = vmatpush2.bf16.msra.mxu0 0
        %1006 = vmatprep.subr.bf16.mxu0 0
        %1007 = vmatpush2.bf16.msra.mxu0 0
        %1008 = vmatprep.subr.bf16.mxu0 0
        %1009 = vmatpush2.bf16.msra.mxu0 0
        %1010 = vmatprep.subr.bf16.mxu0 0
        %1011 = vmatpush2.bf16.msra.mxu0 0
        %1012 = vmatprep.subr.bf16.mxu0 0
        %1013 = vmatpush2.bf16.msra.mxu0 0
        %1014 = vmatprep.mubr.bf16.mxu0 0
        %1015 = vmatmul.mubr.bf16.gmra.mxu0 %v980
        %v1016 = vpop.f32.mrf.mxu0
        %v1017 = vadd.f32 0.0, %v1016
        %v1018 = vpop.f32.mrf.mxu0
        %v1019 = vpop.f32.mrf.mxu0
        %v1020 = vadd.f32 0.0, %v1019
        %v1021 = vpop.f32.mrf.mxu0
        %1022 = vdwg.mxu0
        %v1023 = vpack.c.bf16 %v1020, %v1017
        %1025 = vrot.lane.b32.xlu0 %v1023, 96
        %v1026 = vpop.permute.xlu0 %1025
        %vm1027 = vcmask 64512
        %v1029 = vsel %vm1027, %v1023, 0
        %v1032 = vsel %vm1027, %v1026, 0
        %1034 = vmatprep.subr.bf16.mxu0 0
        %1035 = vmatpush1.bf16.xpose.msra.mxu0 0
        %1036 = vmatprep.subr.bf16.mxu0 0
        %1037 = vmatpush1.bf16.xpose.msra.mxu0 0
        %1038 = vmatprep.subr.bf16.mxu0 0
        %1039 = vmatpush1.bf16.xpose.msra.mxu0 0
        %1040 = vmatprep.subr.bf16.mxu0 0
        %1041 = vmatpush1.bf16.xpose.msra.mxu0 0
        %1042 = vmatprep.subr.bf16.mxu0 0
        %1043 = vmatpush1.bf16.xpose.msra.mxu0 0
        %1044 = vmatprep.subr.bf16.mxu0 0
        %1045 = vmatpush1.bf16.xpose.msra.mxu0 0
        %1046 = vmatprep.subr.bf16.mxu0 0
        %1047 = vmatpush1.bf16.xpose.msra.mxu0 0
        %1048 = vmatprep.subr.bf16.mxu0 0
        %1049 = vmatpush1.bf16.xpose.msra.mxu0 %v1032
        %1050 = vmatprep.subr.bf16.mxu0 0
        %1051 = vmatpush2.bf16.xpose.msra.mxu0 0
        %1052 = vmatprep.subr.bf16.mxu0 0
        %1053 = vmatpush2.bf16.xpose.msra.mxu0 0
        %1054 = vmatprep.subr.bf16.mxu0 0
        %1055 = vmatpush2.bf16.xpose.msra.mxu0 0
        %1056 = vmatprep.subr.bf16.mxu0 0
        %1057 = vmatpush2.bf16.xpose.msra.mxu0 0
        %1058 = vmatprep.subr.bf16.mxu0 0
        %1059 = vmatpush2.bf16.xpose.msra.mxu0 0
        %1060 = vmatprep.subr.bf16.mxu0 0
        %1061 = vmatpush2.bf16.xpose.msra.mxu0 0
        %1062 = vmatprep.subr.bf16.mxu0 0
        %1063 = vmatpush2.bf16.xpose.msra.mxu0 0
        %1064 = vmatprep.subr.bf16.mxu0 0
        %1065 = vmatpush2.bf16.xpose.msra.mxu0 0
        %1066 = vmatprep.mubr.bf16.mxu0 0
        %1067 = vmatmul.mubr.bf16.gmra.mxu0 %v1029
        %v1068 = vpop.f32.mrf.mxu0
        %v1069 = vadd.f32 0.0, %v1068
        %v1070 = vpop.f32.mrf.mxu0
        %v1071 = vpop.f32.mrf.mxu0
        %v1072 = vadd.f32 0.0, %v1071
        %v1073 = vpop.f32.mrf.mxu0
        %1074 = vdwg.mxu0
        %v1075 = vmul.f32 %v1069, 0.35355338
        %v1076 = vmul.f32 %v1072, 0.35355338
        %vm1077 = vcmask 130048
        %v1078 = vsel %vm1077, %v1075, -inf
        %1079 = vmax.xlane.f32.xlu0 %v1078
        %v1080 = vpop.xlane.xlu0 %1079
        %v1081 = vsel %vm1077, %v1076, -inf
        %1082 = vmax.xlane.f32.xlu0 %v1081
        %v1083 = vpop.xlane.xlu0 %1082
        %v1084 = vsub.f32 %v1075, %v1080
        %v1085 = vsub.f32 %v1076, %v1083
        %v1086 = vmul.f32 %v1084, 1.442695
        %v1087 = vpow.pop %v1086
        %v1088 = vmul.f32 %v1085, 1.442695
        %v1089 = vpow.pop %v1088
        %v1090 = vsel %vm1077, %v1087, 0.0
        %1091 = vadd.xlane.f32.xlu0 %v1090
        %v1092 = vpop.xlane.xlu0 %1091
        %v1093 = vsel %vm1077, %v1089, 0.0
        %1094 = vadd.xlane.f32.xlu0 %v1093
        %v1095 = vpop.xlane.xlu0 %1094
        %v1096 = vrcp.pop %v1092
        %v1097 = vrcp.pop %v1095
        %v1098 = vmul.f32 %v1087, %v1096
        %v1099 = vmul.f32 %v1089, %v1097
        %v1100 = vpack.c.bf16 %v1099, %v1098
        %1101 = vrot.lane.b32.xlu0 %v1023, 64
        %v1102 = vpop.permute.xlu0 %1101
        %v1105 = vsel %vm1077, %v1100, 0
        %1107 = vmatprep.subr.bf16.mxu0 0
        %1108 = vmatpush1.bf16.msra.mxu0 0
        %1109 = vmatprep.subr.bf16.mxu0 0
        %1110 = vmatpush1.bf16.msra.mxu0 0
        %1111 = vmatprep.subr.bf16.mxu0 0
        %1112 = vmatpush1.bf16.msra.mxu0 0
        %1113 = vmatprep.subr.bf16.mxu0 0
        %1114 = vmatpush1.bf16.msra.mxu0 0
        %1115 = vmatprep.subr.bf16.mxu0 0
        %1116 = vmatpush1.bf16.msra.mxu0 0
        %1117 = vmatprep.subr.bf16.mxu0 0
        %1118 = vmatpush1.bf16.msra.mxu0 0
        %1119 = vmatprep.subr.bf16.mxu0 0
        %1120 = vmatpush1.bf16.msra.mxu0 0
        %1121 = vmatprep.subr.bf16.mxu0 0
        %1122 = vmatpush1.bf16.msra.mxu0 %v1102
        %1123 = vmatprep.subr.bf16.mxu0 0
        %1124 = vmatpush2.bf16.msra.mxu0 0
        %1125 = vmatprep.subr.bf16.mxu0 0
        %1126 = vmatpush2.bf16.msra.mxu0 0
        %1127 = vmatprep.subr.bf16.mxu0 0
        %1128 = vmatpush2.bf16.msra.mxu0 0
        %1129 = vmatprep.subr.bf16.mxu0 0
        %1130 = vmatpush2.bf16.msra.mxu0 0
        %1131 = vmatprep.subr.bf16.mxu0 0
        %1132 = vmatpush2.bf16.msra.mxu0 0
        %1133 = vmatprep.subr.bf16.mxu0 0
        %1134 = vmatpush2.bf16.msra.mxu0 0
        %1135 = vmatprep.subr.bf16.mxu0 0
        %1136 = vmatpush2.bf16.msra.mxu0 0
        %1137 = vmatprep.subr.bf16.mxu0 0
        %1138 = vmatpush2.bf16.msra.mxu0 0
        %1139 = vmatprep.mubr.bf16.mxu0 0
        %1140 = vmatmul.mubr.bf16.gmra.mxu0 %v1105
        %v1141 = vpop.f32.mrf.mxu0
        %v1142 = vadd.f32 0.0, %v1141
        %v1143 = vpop.f32.mrf.mxu0
        %v1144 = vpop.f32.mrf.mxu0
        %v1145 = vadd.f32 0.0, %v1144
        %v1146 = vpop.f32.mrf.mxu0
        %1147 = vdwg.mxu0
        %v1148 = vpack.c.bf16 %v1145, %v1142
        %v1150 = vunpack.c.l.b16 %v1148
        %v1151 = vunpack.c.h.b16 %v1148
        %v1152 = vpack.c.b16 %v1150, %v1150
        %v1153 = vpack.c.b16 %v1151, %v1151
        %vm1156 = vcmask 60416
        %1157 = vst.msk [vmem:[#allocation2] sm:$0xf] %vm1156, %v1152
        %1158 = vst.msk [vmem:[#allocation2 + $0x4] sm:$0xf] %vm1156, %v1153
        %1159 = vrot.lane.b32.xlu0 %v1023, 120
        %v1160 = vpop.permute.xlu0 %1159
        %1161 = vrot.lane.b32.xlu0 %v1023, 88
        %v1162 = vpop.permute.xlu0 %1161
        %v1164 = vsel %vm1027, %v1160, 0
        %v1167 = vsel %vm1027, %v1162, 0
        %1169 = vmatprep.subr.bf16.mxu0 0
        %1170 = vmatpush1.bf16.xpose.msra.mxu0 0
        %1171 = vmatprep.subr.bf16.mxu0 0
        %1172 = vmatpush1.bf16.xpose.msra.mxu0 0
        %1173 = vmatprep.subr.bf16.mxu0 0
        %1174 = vmatpush1.bf16.xpose.msra.mxu0 0
        %1175 = vmatprep.subr.bf16.mxu0 0
        %1176 = vmatpush1.bf16.xpose.msra.mxu0 0
        %1177 = vmatprep.subr.bf16.mxu0 0
        %1178 = vmatpush1.bf16.xpose.msra.mxu0 0
        %1179 = vmatprep.subr.bf16.mxu0 0
        %1180 = vmatpush1.bf16.xpose.msra.mxu0 0
        %1181 = vmatprep.subr.bf16.mxu0 0
        %1182 = vmatpush1.bf16.xpose.msra.mxu0 0
        %1183 = vmatprep.subr.bf16.mxu0 0
        %1184 = vmatpush1.bf16.xpose.msra.mxu0 %v1167
        %1185 = vmatprep.subr.bf16.mxu0 0
        %1186 = vmatpush2.bf16.xpose.msra.mxu0 0
        %1187 = vmatprep.subr.bf16.mxu0 0
        %1188 = vmatpush2.bf16.xpose.msra.mxu0 0
        %1189 = vmatprep.subr.bf16.mxu0 0
        %1190 = vmatpush2.bf16.xpose.msra.mxu0 0
        %1191 = vmatprep.subr.bf16.mxu0 0
        %1192 = vmatpush2.bf16.xpose.msra.mxu0 0
        %1193 = vmatprep.subr.bf16.mxu0 0
        %1194 = vmatpush2.bf16.xpose.msra.mxu0 0
        %1195 = vmatprep.subr.bf16.mxu0 0
        %1196 = vmatpush2.bf16.xpose.msra.mxu0 0
        %1197 = vmatprep.subr.bf16.mxu0 0
        %1198 = vmatpush2.bf16.xpose.msra.mxu0 0
        %1199 = vmatprep.subr.bf16.mxu0 0
        %1200 = vmatpush2.bf16.xpose.msra.mxu0 0
        %1201 = vmatprep.mubr.bf16.mxu0 0
        %1202 = vmatmul.mubr.bf16.gmra.mxu0 %v1164
        %v1203 = vpop.f32.mrf.mxu0
        %v1204 = vadd.f32 0.0, %v1203
        %v1205 = vpop.f32.mrf.mxu0
        %v1206 = vpop.f32.mrf.mxu0
        %v1207 = vadd.f32 0.0, %v1206
        %v1208 = vpop.f32.mrf.mxu0
        %1209 = vdwg.mxu0
        %v1210 = vmul.f32 %v1204, 0.35355338
        %v1211 = vmul.f32 %v1207, 0.35355338
        %v1212 = vsel %vm1077, %v1210, -inf
        %1213 = vmax.xlane.f32.xlu0 %v1212
        %v1214 = vpop.xlane.xlu0 %1213
        %v1215 = vsel %vm1077, %v1211, -inf
        %1216 = vmax.xlane.f32.xlu0 %v1215
        %v1217 = vpop.xlane.xlu0 %1216
        %v1218 = vsub.f32 %v1210, %v1214
        %v1219 = vsub.f32 %v1211, %v1217
        %v1220 = vmul.f32 %v1218, 1.442695
        %v1221 = vpow.pop %v1220
        %v1222 = vmul.f32 %v1219, 1.442695
        %v1223 = vpow.pop %v1222
        %v1224 = vsel %vm1077, %v1221, 0.0
        %1225 = vadd.xlane.f32.xlu0 %v1224
        %v1226 = vpop.xlane.xlu0 %1225
        %v1227 = vsel %vm1077, %v1223, 0.0
        %1228 = vadd.xlane.f32.xlu0 %v1227
        %v1229 = vpop.xlane.xlu0 %1228
        %v1230 = vrcp.pop %v1226
        %v1231 = vrcp.pop %v1229
        %v1232 = vmul.f32 %v1221, %v1230
        %v1233 = vmul.f32 %v1223, %v1231
        %v1234 = vpack.c.bf16 %v1233, %v1232
        %1235 = vrot.lane.b32.xlu0 %v1023, 56
        %v1236 = vpop.permute.xlu0 %1235
        %v1239 = vsel %vm1077, %v1234, 0
        %1241 = vmatprep.subr.bf16.mxu0 0
        %1242 = vmatpush1.bf16.msra.mxu0 0
        %1243 = vmatprep.subr.bf16.mxu0 0
        %1244 = vmatpush1.bf16.msra.mxu0 0
        %1245 = vmatprep.subr.bf16.mxu0 0
        %1246 = vmatpush1.bf16.msra.mxu0 0
        %1247 = vmatprep.subr.bf16.mxu0 0
        %1248 = vmatpush1.bf16.msra.mxu0 0
        %1249 = vmatprep.subr.bf16.mxu0 0
        %1250 = vmatpush1.bf16.msra.mxu0 0
        %1251 = vmatprep.subr.bf16.mxu0 0
        %1252 = vmatpush1.bf16.msra.mxu0 0
        %1253 = vmatprep.subr.bf16.mxu0 0
        %1254 = vmatpush1.bf16.msra.mxu0 0
        %1255 = vmatprep.subr.bf16.mxu0 0
        %1256 = vmatpush1.bf16.msra.mxu0 %v1236
        %1257 = vmatprep.subr.bf16.mxu0 0
        %1258 = vmatpush2.bf16.msra.mxu0 0
        %1259 = vmatprep.subr.bf16.mxu0 0
        %1260 = vmatpush2.bf16.msra.mxu0 0
        %1261 = vmatprep.subr.bf16.mxu0 0
        %1262 = vmatpush2.bf16.msra.mxu0 0
        %1263 = vmatprep.subr.bf16.mxu0 0
        %1264 = vmatpush2.bf16.msra.mxu0 0
        %1265 = vmatprep.subr.bf16.mxu0 0
        %1266 = vmatpush2.bf16.msra.mxu0 0
        %1267 = vmatprep.subr.bf16.mxu0 0
        %1268 = vmatpush2.bf16.msra.mxu0 0
        %1269 = vmatprep.subr.bf16.mxu0 0
        %1270 = vmatpush2.bf16.msra.mxu0 0
        %1271 = vmatprep.subr.bf16.mxu0 0
        %1272 = vmatpush2.bf16.msra.mxu0 0
        %1273 = vmatprep.mubr.bf16.mxu0 0
        %1274 = vmatmul.mubr.bf16.gmra.mxu0 %v1239
        %v1275 = vpop.f32.mrf.mxu0
        %v1276 = vadd.f32 0.0, %v1275
        %v1277 = vpop.f32.mrf.mxu0
        %v1278 = vpop.f32.mrf.mxu0
        %v1279 = vadd.f32 0.0, %v1278
        %v1280 = vpop.f32.mrf.mxu0
        %1281 = vdwg.mxu0
        %v1282 = vpack.c.bf16 %v1279, %v1276
        %v1284 = vunpack.c.l.b16 %v1282
        %v1285 = vunpack.c.h.b16 %v1282
        %v1286 = vpack.c.b16 %v1284, %v1284
        %v1287 = vpack.c.b16 %v1285, %v1285
        %1288 = vrot.lane.b32.xlu0 %v1286, 8
        %v1289 = vpop.permute.xlu0 %1288
        %1290 = vrot.lane.b32.xlu0 %v1287, 8
        %v1291 = vpop.permute.xlu0 %1290
        %vm1294 = vcmask 126016
        %1295 = vst.msk [vmem:[#allocation2] sm:$0xf] %vm1294, %v1289
        %1296 = vst.msk [vmem:[#allocation2 + $0x4] sm:$0xf] %vm1294, %v1291
        %1297 = vrot.lane.b32.xlu0 %v1023, 112
        %v1298 = vpop.permute.xlu0 %1297
        %1299 = vrot.lane.b32.xlu0 %v1023, 80
        %v1300 = vpop.permute.xlu0 %1299
        %v1302 = vsel %vm1027, %v1298, 0
        %v1305 = vsel %vm1027, %v1300, 0
        %1307 = vmatprep.subr.bf16.mxu0 0
        %1308 = vmatpush1.bf16.xpose.msra.mxu0 0
        %1309 = vmatprep.subr.bf16.mxu0 0
        %1310 = vmatpush1.bf16.xpose.msra.mxu0 0
        %1311 = vmatprep.subr.bf16.mxu0 0
        %1312 = vmatpush1.bf16.xpose.msra.mxu0 0
        %1313 = vmatprep.subr.bf16.mxu0 0
        %1314 = vmatpush1.bf16.xpose.msra.mxu0 0
        %1315 = vmatprep.subr.bf16.mxu0 0
        %1316 = vmatpush1.bf16.xpose.msra.mxu0 0
        %1317 = vmatprep.subr.bf16.mxu0 0
        %1318 = vmatpush1.bf16.xpose.msra.mxu0 0
        %1319 = vmatprep.subr.bf16.mxu0 0
        %1320 = vmatpush1.bf16.xpose.msra.mxu0 0
        %1321 = vmatprep.subr.bf16.mxu0 0
        %1322 = vmatpush1.bf16.xpose.msra.mxu0 %v1305
        %1323 = vmatprep.subr.bf16.mxu0 0
        %1324 = vmatpush2.bf16.xpose.msra.mxu0 0
        %1325 = vmatprep.subr.bf16.mxu0 0
        %1326 = vmatpush2.bf16.xpose.msra.mxu0 0
        %1327 = vmatprep.subr.bf16.mxu0 0
        %1328 = vmatpush2.bf16.xpose.msra.mxu0 0
        %1329 = vmatprep.subr.bf16.mxu0 0
        %1330 = vmatpush2.bf16.xpose.msra.mxu0 0
        %1331 = vmatprep.subr.bf16.mxu0 0
        %1332 = vmatpush2.bf16.xpose.msra.mxu0 0
        %1333 = vmatprep.subr.bf16.mxu0 0
        %1334 = vmatpush2.bf16.xpose.msra.mxu0 0
        %1335 = vmatprep.subr.bf16.mxu0 0
        %1336 = vmatpush2.bf16.xpose.msra.mxu0 0
        %1337 = vmatprep.subr.bf16.mxu0 0
        %1338 = vmatpush2.bf16.xpose.msra.mxu0 0
        %1339 = vmatprep.mubr.bf16.mxu0 0
        %1340 = vmatmul.mubr.bf16.gmra.mxu0 %v1302
        %v1341 = vpop.f32.mrf.mxu0
        %v1342 = vadd.f32 0.0, %v1341
        %v1343 = vpop.f32.mrf.mxu0
        %v1344 = vpop.f32.mrf.mxu0
        %v1345 = vadd.f32 0.0, %v1344
        %v1346 = vpop.f32.mrf.mxu0
        %1347 = vdwg.mxu0
        %v1348 = vmul.f32 %v1342, 0.35355338
        %v1349 = vmul.f32 %v1345, 0.35355338
        %v1350 = vsel %vm1077, %v1348, -inf
        %1351 = vmax.xlane.f32.xlu0 %v1350
        %v1352 = vpop.xlane.xlu0 %1351
        %v1353 = vsel %vm1077, %v1349, -inf
        %1354 = vmax.xlane.f32.xlu0 %v1353
        %v1355 = vpop.xlane.xlu0 %1354
        %v1356 = vsub.f32 %v1348, %v1352
        %v1357 = vsub.f32 %v1349, %v1355
        %v1358 = vmul.f32 %v1356, 1.442695
        %v1359 = vpow.pop %v1358
        %v1360 = vmul.f32 %v1357, 1.442695
        %v1361 = vpow.pop %v1360
        %v1362 = vsel %vm1077, %v1359, 0.0
        %1363 = vadd.xlane.f32.xlu0 %v1362
        %v1364 = vpop.xlane.xlu0 %1363
        %v1365 = vsel %vm1077, %v1361, 0.0
        %1366 = vadd.xlane.f32.xlu0 %v1365
        %v1367 = vpop.xlane.xlu0 %1366
        %v1368 = vrcp.pop %v1364
        %v1369 = vrcp.pop %v1367
        %v1370 = vmul.f32 %v1359, %v1368
        %v1371 = vmul.f32 %v1361, %v1369
        %v1372 = vpack.c.bf16 %v1371, %v1370
        %1373 = vrot.lane.b32.xlu0 %v1023, 48
        %v1374 = vpop.permute.xlu0 %1373
        %v1377 = vsel %vm1077, %v1372, 0
        %1379 = vmatprep.subr.bf16.mxu0 0
        %1380 = vmatpush1.bf16.msra.mxu0 0
        %1381 = vmatprep.subr.bf16.mxu0 0
        %1382 = vmatpush1.bf16.msra.mxu0 0
        %1383 = vmatprep.subr.bf16.mxu0 0
        %1384 = vmatpush1.bf16.msra.mxu0 0
        %1385 = vmatprep.subr.bf16.mxu0 0
        %1386 = vmatpush1.bf16.msra.mxu0 0
        %1387 = vmatprep.subr.bf16.mxu0 0
        %1388 = vmatpush1.bf16.msra.mxu0 0
        %1389 = vmatprep.subr.bf16.mxu0 0
        %1390 = vmatpush1.bf16.msra.mxu0 0
        %1391 = vmatprep.subr.bf16.mxu0 0
        %1392 = vmatpush1.bf16.msra.mxu0 0
        %1393 = vmatprep.subr.bf16.mxu0 0
        %1394 = vmatpush1.bf16.msra.mxu0 %v1374
        %1395 = vmatprep.subr.bf16.mxu0 0
        %1396 = vmatpush2.bf16.msra.mxu0 0
        %1397 = vmatprep.subr.bf16.mxu0 0
        %1398 = vmatpush2.bf16.msra.mxu0 0
        %1399 = vmatprep.subr.bf16.mxu0 0
        %1400 = vmatpush2.bf16.msra.mxu0 0
        %1401 = vmatprep.subr.bf16.mxu0 0
        %1402 = vmatpush2.bf16.msra.mxu0 0
        %1403 = vmatprep.subr.bf16.mxu0 0
        %1404 = vmatpush2.bf16.msra.mxu0 0
        %1405 = vmatprep.subr.bf16.mxu0 0
        %1406 = vmatpush2.bf16.msra.mxu0 0
        %1407 = vmatprep.subr.bf16.mxu0 0
        %1408 = vmatpush2.bf16.msra.mxu0 0
        %1409 = vmatprep.subr.bf16.mxu0 0
        %1410 = vmatpush2.bf16.msra.mxu0 0
        %1411 = vmatprep.mubr.bf16.mxu0 0
        %1412 = vmatmul.mubr.bf16.gmra.mxu0 %v1377
        %v1413 = vpop.f32.mrf.mxu0
        %v1414 = vadd.f32 0.0, %v1413
        %v1415 = vpop.f32.mrf.mxu0
        %v1416 = vpop.f32.mrf.mxu0
        %v1417 = vadd.f32 0.0, %v1416
        %v1418 = vpop.f32.mrf.mxu0
        %1419 = vdwg.mxu0
        %v1420 = vpack.c.bf16 %v1417, %v1414
        %v1422 = vunpack.c.l.b16 %v1420
        %v1423 = vunpack.c.h.b16 %v1420
        %v1424 = vpack.c.b16 %v1422, %v1422
        %v1425 = vpack.c.b16 %v1423, %v1423
        %1426 = vrot.lane.b32.xlu0 %v1424, 16
        %v1427 = vpop.permute.xlu0 %1426
        %1428 = vrot.lane.b32.xlu0 %v1425, 16
        %v1429 = vpop.permute.xlu0 %1428
        %vm1432 = vcmask 191616
        %1433 = vst.msk [vmem:[#allocation2] sm:$0xf] %vm1432, %v1427
        %1434 = vst.msk [vmem:[#allocation2 + $0x4] sm:$0xf] %vm1432, %v1429
        %1435 = vrot.lane.b32.xlu0 %v1023, 104
        %v1436 = vpop.permute.xlu0 %1435
        %1437 = vrot.lane.b32.xlu0 %v1023, 72
        %v1438 = vpop.permute.xlu0 %1437
        %v1440 = vsel %vm1027, %v1436, 0
        %v1443 = vsel %vm1027, %v1438, 0
        %1445 = vmatprep.subr.bf16.mxu0 0
        %1446 = vmatpush1.bf16.xpose.msra.mxu0 0
        %1447 = vmatprep.subr.bf16.mxu0 0
        %1448 = vmatpush1.bf16.xpose.msra.mxu0 0
        %1449 = vmatprep.subr.bf16.mxu0 0
        %1450 = vmatpush1.bf16.xpose.msra.mxu0 0
        %1451 = vmatprep.subr.bf16.mxu0 0
        %1452 = vmatpush1.bf16.xpose.msra.mxu0 0
        %1453 = vmatprep.subr.bf16.mxu0 0
        %1454 = vmatpush1.bf16.xpose.msra.mxu0 0
        %1455 = vmatprep.subr.bf16.mxu0 0
        %1456 = vmatpush1.bf16.xpose.msra.mxu0 0
        %1457 = vmatprep.subr.bf16.mxu0 0
        %1458 = vmatpush1.bf16.xpose.msra.mxu0 0
        %1459 = vmatprep.subr.bf16.mxu0 0
        %1460 = vmatpush1.bf16.xpose.msra.mxu0 %v1443
        %1461 = vmatprep.subr.bf16.mxu0 0
        %1462 = vmatpush2.bf16.xpose.msra.mxu0 0
        %1463 = vmatprep.subr.bf16.mxu0 0
        %1464 = vmatpush2.bf16.xpose.msra.mxu0 0
        %1465 = vmatprep.subr.bf16.mxu0 0
        %1466 = vmatpush2.bf16.xpose.msra.mxu0 0
        %1467 = vmatprep.subr.bf16.mxu0 0
        %1468 = vmatpush2.bf16.xpose.msra.mxu0 0
        %1469 = vmatprep.subr.bf16.mxu0 0
        %1470 = vmatpush2.bf16.xpose.msra.mxu0 0
        %1471 = vmatprep.subr.bf16.mxu0 0
        %1472 = vmatpush2.bf16.xpose.msra.mxu0 0
        %1473 = vmatprep.subr.bf16.mxu0 0
        %1474 = vmatpush2.bf16.xpose.msra.mxu0 0
        %1475 = vmatprep.subr.bf16.mxu0 0
        %1476 = vmatpush2.bf16.xpose.msra.mxu0 0
        %1477 = vmatprep.mubr.bf16.mxu0 0
        %1478 = vmatmul.mubr.bf16.gmra.mxu0 %v1440
        %v1479 = vpop.f32.mrf.mxu0
        %v1480 = vadd.f32 0.0, %v1479
        %v1481 = vpop.f32.mrf.mxu0
        %v1482 = vpop.f32.mrf.mxu0
        %v1483 = vadd.f32 0.0, %v1482
        %v1484 = vpop.f32.mrf.mxu0
        %1485 = vdwg.mxu0
        %v1486 = vmul.f32 %v1480, 0.35355338
        %v1487 = vmul.f32 %v1483, 0.35355338
        %v1488 = vsel %vm1077, %v1486, -inf
        %1489 = vmax.xlane.f32.xlu0 %v1488
        %v1490 = vpop.xlane.xlu0 %1489
        %v1491 = vsel %vm1077, %v1487, -inf
        %1492 = vmax.xlane.f32.xlu0 %v1491
        %v1493 = vpop.xlane.xlu0 %1492
        %v1494 = vsub.f32 %v1486, %v1490
        %v1495 = vsub.f32 %v1487, %v1493
        %v1496 = vmul.f32 %v1494, 1.442695
        %v1497 = vpow.pop %v1496
        %v1498 = vmul.f32 %v1495, 1.442695
        %v1499 = vpow.pop %v1498
        %v1500 = vsel %vm1077, %v1497, 0.0
        %1501 = vadd.xlane.f32.xlu0 %v1500
        %v1502 = vpop.xlane.xlu0 %1501
        %v1503 = vsel %vm1077, %v1499, 0.0
        %1504 = vadd.xlane.f32.xlu0 %v1503
        %v1505 = vpop.xlane.xlu0 %1504
        %v1506 = vrcp.pop %v1502
        %v1507 = vrcp.pop %v1505
        %v1508 = vmul.f32 %v1497, %v1506
        %v1509 = vmul.f32 %v1499, %v1507
        %v1510 = vpack.c.bf16 %v1509, %v1508
        %1511 = vrot.lane.b32.xlu0 %v1023, 40
        %v1512 = vpop.permute.xlu0 %1511
        %v1515 = vsel %vm1077, %v1510, 0
        %1517 = vmatprep.subr.bf16.mxu0 0
        %1518 = vmatpush1.bf16.msra.mxu0 0
        %1519 = vmatprep.subr.bf16.mxu0 0
        %1520 = vmatpush1.bf16.msra.mxu0 0
        %1521 = vmatprep.subr.bf16.mxu0 0
        %1522 = vmatpush1.bf16.msra.mxu0 0
        %1523 = vmatprep.subr.bf16.mxu0 0
        %1524 = vmatpush1.bf16.msra.mxu0 0
        %1525 = vmatprep.subr.bf16.mxu0 0
        %1526 = vmatpush1.bf16.msra.mxu0 0
        %1527 = vmatprep.subr.bf16.mxu0 0
        %1528 = vmatpush1.bf16.msra.mxu0 0
        %1529 = vmatprep.subr.bf16.mxu0 0
        %1530 = vmatpush1.bf16.msra.mxu0 0
        %1531 = vmatprep.subr.bf16.mxu0 0
        %1532 = vmatpush1.bf16.msra.mxu0 %v1512
        %1533 = vmatprep.subr.bf16.mxu0 0
        %1534 = vmatpush2.bf16.msra.mxu0 0
        %1535 = vmatprep.subr.bf16.mxu0 0
        %1536 = vmatpush2.bf16.msra.mxu0 0
        %1537 = vmatprep.subr.bf16.mxu0 0
        %1538 = vmatpush2.bf16.msra.mxu0 0
        %1539 = vmatprep.subr.bf16.mxu0 0
        %1540 = vmatpush2.bf16.msra.mxu0 0
        %1541 = vmatprep.subr.bf16.mxu0 0
        %1542 = vmatpush2.bf16.msra.mxu0 0
        %1543 = vmatprep.subr.bf16.mxu0 0
        %1544 = vmatpush2.bf16.msra.mxu0 0
        %1545 = vmatprep.subr.bf16.mxu0 0
        %1546 = vmatpush2.bf16.msra.mxu0 0
        %1547 = vmatprep.subr.bf16.mxu0 0
        %1548 = vmatpush2.bf16.msra.mxu0 0
        %1549 = vmatprep.mubr.bf16.mxu0 0
        %1550 = vmatmul.mubr.bf16.gmra.mxu0 %v1515
        %v1551 = vpop.f32.mrf.mxu0
        %v1552 = vadd.f32 0.0, %v1551
        %v1553 = vpop.f32.mrf.mxu0
        %v1554 = vpop.f32.mrf.mxu0
        %v1555 = vadd.f32 0.0, %v1554
        %v1556 = vpop.f32.mrf.mxu0
        %1557 = vdwg.mxu0
        %v1558 = vpack.c.bf16 %v1555, %v1552
        %v1560 = vunpack.c.l.b16 %v1558
        %v1561 = vunpack.c.h.b16 %v1558
        %v1562 = vpack.c.b16 %v1560, %v1560
        %v1563 = vpack.c.b16 %v1561, %v1561
        %1564 = vrot.lane.b32.xlu0 %v1562, 24
        %v1565 = vpop.permute.xlu0 %1564
        %1566 = vrot.lane.b32.xlu0 %v1563, 24
        %v1567 = vpop.permute.xlu0 %1566
        %vm1570 = vcmask 257216
        %1571 = vst.msk [vmem:[#allocation2] sm:$0xf] %vm1570, %v1565
        %1572 = vst.msk [vmem:[#allocation2 + $0x4] sm:$0xf] %vm1570, %v1567
        %v1573 = vld [vmem:[#allocation2] sm:$0xf]
        %v1574 = vld [vmem:[#allocation2 + $0x4] sm:$0xf]
        %v1575 = vld [vmem:[%s6] sm:$0xf]
        %v1576 = vld [vmem:[%s6 + $0x4] sm:$0xf]
        %v1577 = vld [vmem:[%s6 + $0x8] sm:$0xf]
        %v1578 = vld [vmem:[%s6 + $0xc] sm:$0xf]
        %v1581 = vunpack.c.l.b16 %v1573
        %v1582 = vunpack.c.l.b16 %v1574
        %v1583 = vpack.c.b16 %v1582, %v1581
        %v1588 = vunpack.c.l.b16 %v1575
        %v1589 = vunpack.c.l.b16 %v1576
        %v1590 = vunpack.c.l.b16 %v1577
        %v1591 = vunpack.c.l.b16 %v1578
        %v1592 = vpack.c.b16 %v1589, %v1588
        %v1593 = vpack.c.b16 %v1591, %v1590
        %v1597 = vsel %vm918, %v1583, 0
        %1599 = vmatprep.subr.bf16.mxu0 0
        %1600 = vmatpush1.bf16.msra.mxu0 0
        %1601 = vmatprep.subr.bf16.mxu0 0
        %1602 = vmatpush1.bf16.msra.mxu0 0
        %1603 = vmatprep.subr.bf16.mxu0 0
        %1604 = vmatpush1.bf16.msra.mxu0 0
        %1605 = vmatprep.subr.bf16.mxu0 0
        %1606 = vmatpush1.bf16.msra.mxu0 0
        %1607 = vmatprep.subr.bf16.mxu0 0
        %1608 = vmatpush1.bf16.msra.mxu0 0
        %1609 = vmatprep.subr.bf16.mxu0 0
        %1610 = vmatpush1.bf16.msra.mxu0 0
        %1611 = vmatprep.subr.bf16.mxu0 0
        %1612 = vmatpush1.bf16.msra.mxu0 %v1593
        %1613 = vmatprep.subr.bf16.mxu0 0
        %1614 = vmatpush1.bf16.msra.mxu0 %v1592
        %1615 = vmatprep.subr.bf16.mxu0 0
        %1616 = vmatpush2.bf16.msra.mxu0 0
        %1617 = vmatprep.subr.bf16.mxu0 0
        %1618 = vmatpush2.bf16.msra.mxu0 0
        %1619 = vmatprep.subr.bf16.mxu0 0
        %1620 = vmatpush2.bf16.msra.mxu0 0
        %1621 = vmatprep.subr.bf16.mxu0 0
        %1622 = vmatpush2.bf16.msra.mxu0 0
        %1623 = vmatprep.subr.bf16.mxu0 0
        %1624 = vmatpush2.bf16.msra.mxu0 0
        %1625 = vmatprep.subr.bf16.mxu0 0
        %1626 = vmatpush2.bf16.msra.mxu0 0
        %1627 = vmatprep.subr.bf16.mxu0 0
        %1628 = vmatpush2.bf16.msra.mxu0 0
        %1629 = vmatprep.subr.bf16.mxu0 0
        %1630 = vmatpush2.bf16.msra.mxu0 0
        %1631 = vmatprep.mubr.bf16.mxu0 0
        %1632 = vmatmul.mubr.bf16.gmra.mxu0 %v1597
        %v1633 = vpop.f32.mrf.mxu0
        %v1634 = vadd.f32 0.0, %v1633
        %v1635 = vpop.f32.mrf.mxu0
        %v1636 = vpop.f32.mrf.mxu0
        %v1637 = vadd.f32 0.0, %v1636
        %v1638 = vpop.f32.mrf.mxu0
        %1639 = vdwg.mxu0
        %v1640 = vadd.f32 %v914, %v1634
        %v1641 = vadd.f32 %v915, %v1637
        %v1642 = vld [vmem:[#allocation8] sm:$0x1]
        %v1644 = vlaneseq
        %v1645 = vshrl.u32 %v1644, 7
        %v1646 = vsub.s32 0, %v1645
        %v1647 = vrot.slane %v1642, %v1646
        %v1649 = vadd.f32 %v1640, %v1647
        %v1650 = vadd.f32 %v1641, %v1647
        %v1651 = vld [vmem:[#allocation9] sm:$0x1]
        %v1652 = vld [vmem:[#allocation11] sm:$0x1]
        %v1653 = vsel %vm918, %v1649, 0.0
        %1654 = vadd.xlane.f32.xlu0 %v1653
        %v1655 = vpop.xlane.xlu0 %1654
        %v1656 = vsel %vm918, %v1650, 0.0
        %1657 = vadd.xlane.f32.xlu0 %v1656
        %v1658 = vpop.xlane.xlu0 %1657
        %v1659 = vmul.f32 %v1655, %v925
        %v1660 = vmul.f32 %v1658, %v925
        %v1661 = vsub.f32 %v1649, %v1659
        %v1662 = vsub.f32 %v1650, %v1660
        %v1663 = vmul.f32 %v1661, %v1661
        %v1664 = vmul.f32 %v1662, %v1662
        %v1665 = vsel %vm918, %v1663, 0.0
        %1666 = vadd.xlane.f32.xlu0 %v1665
        %v1667 = vpop.xlane.xlu0 %1666
        %v1668 = vsel %vm918, %v1664, 0.0
        %1669 = vadd.xlane.f32.xlu0 %v1668
        %v1670 = vpop.xlane.xlu0 %1669
        %v1671 = vmul.f32 %v1667, %v925
        %v1672 = vmul.f32 %v1670, %v925
        %v1673 = vadd.f32 %v1671, 1e-05
        %v1674 = vadd.f32 %v1672, 1e-05
        %v1675 = vrsqrt.pop %v1673
        %v1676 = vrsqrt.pop %v1674
        %v1677 = vmul.f32 %v1661, %v1675
        %v1678 = vmul.f32 %v1662, %v1676
        %v1680 = vlaneseq
        %v1681 = vshrl.u32 %v1680, 7
        %v1682 = vsub.s32 0, %v1681
        %v1683 = vrot.slane %v1651, %v1682
        %v1685 = vmul.f32 %v1677, %v1683
        %v1686 = vmul.f32 %v1678, %v1683
        %v1688 = vlaneseq
        %v1689 = vshrl.u32 %v1688, 7
        %v1690 = vsub.s32 0, %v1689
        %v1691 = vrot.slane %v1652, %v1690
        %v1693 = vadd.f32 %v1685, %v1691
        %v1694 = vadd.f32 %v1686, %v1691
        %v1695 = vpack.c.bf16 %v1694, %v1693
        %v1696 = vld [vmem:[#allocation15] sm:$0xf]
        %v1697 = vld [vmem:[#allocation15 + $0x4] sm:$0xf]
        %v1698 = vld [vmem:[#allocation15 + $0x8] sm:$0xf]
        %v1699 = vld [vmem:[#allocation15 + $0xc] sm:$0xf]
        %v1704 = vunpack.c.l.b16 %v1696
        %v1705 = vunpack.c.l.b16 %v1697
        %v1706 = vunpack.c.l.b16 %v1698
        %v1707 = vunpack.c.l.b16 %v1699
        %v1708 = vpack.c.b16 %v1705, %v1704
        %v1709 = vpack.c.b16 %v1707, %v1706
        %v1713 = vsel %vm918, %v1695, 0
        %1715 = vmatprep.subr.bf16.mxu0 0
        %1716 = vmatpush1.bf16.msra.mxu0 0
        %1717 = vmatprep.subr.bf16.mxu0 0
        %1718 = vmatpush1.bf16.msra.mxu0 0
        %1719 = vmatprep.subr.bf16.mxu0 0
        %1720 = vmatpush1.bf16.msra.mxu0 0
        %1721 = vmatprep.subr.bf16.mxu0 0
        %1722 = vmatpush1.bf16.msra.mxu0 0
        %1723 = vmatprep.subr.bf16.mxu0 0
        %1724 = vmatpush1.bf16.msra.mxu0 0
        %1725 = vmatprep.subr.bf16.mxu0 0
        %1726 = vmatpush1.bf16.msra.mxu0 0
        %1727 = vmatprep.subr.bf16.mxu0 0
        %1728 = vmatpush1.bf16.msra.mxu0 %v1709
        %1729 = vmatprep.subr.bf16.mxu0 0
        %1730 = vmatpush1.bf16.msra.mxu0 %v1708
        %1731 = vmatprep.subr.bf16.mxu0 0
        %1732 = vmatpush2.bf16.msra.mxu0 0
        %1733 = vmatprep.subr.bf16.mxu0 0
        %1734 = vmatpush2.bf16.msra.mxu0 0
        %1735 = vmatprep.subr.bf16.mxu0 0
        %1736 = vmatpush2.bf16.msra.mxu0 0
        %1737 = vmatprep.subr.bf16.mxu0 0
        %1738 = vmatpush2.bf16.msra.mxu0 0
        %1739 = vmatprep.subr.bf16.mxu0 0
        %1740 = vmatpush2.bf16.msra.mxu0 0
        %1741 = vmatprep.subr.bf16.mxu0 0
        %1742 = vmatpush2.bf16.msra.mxu0 0
        %1743 = vmatprep.subr.bf16.mxu0 0
        %1744 = vmatpush2.bf16.msra.mxu0 0
        %1745 = vmatprep.subr.bf16.mxu0 0
        %1746 = vmatpush2.bf16.msra.mxu0 0
        %1747 = vmatprep.mubr.bf16.mxu0 0
        %1748 = vmatmul.mubr.bf16.gmra.mxu0 %v1713
        %v1749 = vpop.f32.mrf.mxu0
        %v1750 = vadd.f32 0.0, %v1749
        %v1751 = vpop.f32.mrf.mxu0
        %v1752 = vpop.f32.mrf.mxu0
        %v1753 = vadd.f32 0.0, %v1752
        %v1754 = vpop.f32.mrf.mxu0
        %1755 = vdwg.mxu0
        %v1756 = vpack.c.bf16 %v1753, %v1750
        %v1757 = vld [vmem:[%s912] sm:$0xff]
        %v1758 = vld [vmem:[#allocation12] sm:$0x1]
        %v1759 = vld [vmem:[#allocation14] sm:$0x1]
        %v1760 = vsel %vm918, %v1757, 0.0
        %1761 = vadd.xlane.f32.xlu0 %v1760
        %v1762 = vpop.xlane.xlu0 %1761
        %v1763 = vmul.f32 %v1762, %v925
        %v1764 = vsub.f32 %v1757, %v1763
        %v1765 = vmul.f32 %v1764, %v1764
        %v1766 = vsel %vm918, %v1765, 0.0
        %1767 = vadd.xlane.f32.xlu0 %v1766
        %v1768 = vpop.xlane.xlu0 %1767
        %v1769 = vmul.f32 %v1768, %v925
        %v1770 = vadd.f32 %v1769, 1e-05
        %v1771 = vrsqrt.pop %v1770
        %v1772 = vmul.f32 %v1764, %v1771
        %v1774 = vlaneseq
        %v1775 = vshrl.u32 %v1774, 7
        %v1776 = vsub.s32 0, %v1775
        %v1777 = vrot.slane %v1758, %v1776
        %v1779 = vmul.f32 %v1772, %v1777
        %v1781 = vlaneseq
        %v1782 = vshrl.u32 %v1781, 7
        %v1783 = vsub.s32 0, %v1782
        %v1784 = vrot.slane %v1759, %v1783
        %v1786 = vadd.f32 %v1779, %v1784
        %v1787 = vpack.c.bf16 %v1786, %v1786
        %v1788 = vld [vmem:[#allocation17] sm:$0xf]
        %v1789 = vld [vmem:[#allocation17 + $0x4] sm:$0xf]
        %v1790 = vld [vmem:[#allocation17 + $0x8] sm:$0xf]
        %v1791 = vld [vmem:[#allocation17 + $0xc] sm:$0xf]
        %v1796 = vunpack.c.l.b16 %v1788
        %v1797 = vunpack.c.l.b16 %v1789
        %v1798 = vunpack.c.l.b16 %v1790
        %v1799 = vunpack.c.l.b16 %v1791
        %v1800 = vpack.c.b16 %v1797, %v1796
        %v1801 = vpack.c.b16 %v1799, %v1798
        %v1805 = vsel %vm918, %v1787, 0
        %1807 = vmatprep.subr.bf16.mxu0 0
        %1808 = vmatpush1.bf16.msra.mxu0 0
        %1809 = vmatprep.subr.bf16.mxu0 0
        %1810 = vmatpush1.bf16.msra.mxu0 0
        %1811 = vmatprep.subr.bf16.mxu0 0
        %1812 = vmatpush1.bf16.msra.mxu0 0
        %1813 = vmatprep.subr.bf16.mxu0 0
        %1814 = vmatpush1.bf16.msra.mxu0 0
        %1815 = vmatprep.subr.bf16.mxu0 0
        %1816 = vmatpush1.bf16.msra.mxu0 0
        %1817 = vmatprep.subr.bf16.mxu0 0
        %1818 = vmatpush1.bf16.msra.mxu0 0
        %1819 = vmatprep.subr.bf16.mxu0 0
        %1820 = vmatpush1.bf16.msra.mxu0 %v1801
        %1821 = vmatprep.subr.bf16.mxu0 0
        %1822 = vmatpush1.bf16.msra.mxu0 %v1800
        %1823 = vmatprep.subr.bf16.mxu0 0
        %1824 = vmatpush2.bf16.msra.mxu0 0
        %1825 = vmatprep.subr.bf16.mxu0 0
        %1826 = vmatpush2.bf16.msra.mxu0 0
        %1827 = vmatprep.subr.bf16.mxu0 0
        %1828 = vmatpush2.bf16.msra.mxu0 0
        %1829 = vmatprep.subr.bf16.mxu0 0
        %1830 = vmatpush2.bf16.msra.mxu0 0
        %1831 = vmatprep.subr.bf16.mxu0 0
        %1832 = vmatpush2.bf16.msra.mxu0 0
        %1833 = vmatprep.subr.bf16.mxu0 0
        %1834 = vmatpush2.bf16.msra.mxu0 0
        %1835 = vmatprep.subr.bf16.mxu0 0
        %1836 = vmatpush2.bf16.msra.mxu0 0
        %1837 = vmatprep.subr.bf16.mxu0 0
        %1838 = vmatpush2.bf16.msra.mxu0 0
        %1839 = vmatprep.mubr.bf16.mxu0 0
        %1840 = vmatmul.mubr.bf16.gmra.mxu0 %v1805
        %v1841 = vpop.f32.mrf.mxu0
        %v1842 = vadd.f32 0.0, %v1841
        %v1843 = vpop.f32.mrf.mxu0
        %v1844 = vpop.f32.mrf.mxu0
        %v1845 = vpop.f32.mrf.mxu0
        %1846 = vdwg.mxu0
        %v1847 = vpack.c.bf16 %v1842, %v1842
        %v1848 = vld [vmem:[#allocation18] sm:$0xf]
        %v1849 = vld [vmem:[#allocation18 + $0x4] sm:$0xf]
        %v1850 = vld [vmem:[#allocation18 + $0x8] sm:$0xf]
        %v1851 = vld [vmem:[#allocation18 + $0xc] sm:$0xf]
        %v1856 = vunpack.c.l.b16 %v1848
        %v1857 = vunpack.c.l.b16 %v1849
        %v1858 = vunpack.c.l.b16 %v1850
        %v1859 = vunpack.c.l.b16 %v1851
        %v1860 = vpack.c.b16 %v1857, %v1856
        %v1861 = vpack.c.b16 %v1859, %v1858
        %1864 = vmatprep.subr.bf16.mxu0 0
        %1865 = vmatpush1.bf16.msra.mxu0 0
        %1866 = vmatprep.subr.bf16.mxu0 0
        %1867 = vmatpush1.bf16.msra.mxu0 0
        %1868 = vmatprep.subr.bf16.mxu0 0
        %1869 = vmatpush1.bf16.msra.mxu0 0
        %1870 = vmatprep.subr.bf16.mxu0 0
        %1871 = vmatpush1.bf16.msra.mxu0 0
        %1872 = vmatprep.subr.bf16.mxu0 0
        %1873 = vmatpush1.bf16.msra.mxu0 0
        %1874 = vmatprep.subr.bf16.mxu0 0
        %1875 = vmatpush1.bf16.msra.mxu0 0
        %1876 = vmatprep.subr.bf16.mxu0 0
        %1877 = vmatpush1.bf16.msra.mxu0 %v1861
        %1878 = vmatprep.subr.bf16.mxu0 0
        %1879 = vmatpush1.bf16.msra.mxu0 %v1860
        %1880 = vmatprep.subr.bf16.mxu0 0
        %1881 = vmatpush2.bf16.msra.mxu0 0
        %1882 = vmatprep.subr.bf16.mxu0 0
        %1883 = vmatpush2.bf16.msra.mxu0 0
        %1884 = vmatprep.subr.bf16.mxu0 0
        %1885 = vmatpush2.bf16.msra.mxu0 0
        %1886 = vmatprep.subr.bf16.mxu0 0
        %1887 = vmatpush2.bf16.msra.mxu0 0
        %1888 = vmatprep.subr.bf16.mxu0 0
        %1889 = vmatpush2.bf16.msra.mxu0 0
        %1890 = vmatprep.subr.bf16.mxu0 0
        %1891 = vmatpush2.bf16.msra.mxu0 0
        %1892 = vmatprep.subr.bf16.mxu0 0
        %1893 = vmatpush2.bf16.msra.mxu0 0
        %1894 = vmatprep.subr.bf16.mxu0 0
        %1895 = vmatpush2.bf16.msra.mxu0 0
        %1896 = vmatprep.mubr.bf16.mxu0 0
        %1897 = vmatmul.mubr.bf16.gmra.mxu0 %v1805
        %v1898 = vpop.f32.mrf.mxu0
        %v1899 = vadd.f32 0.0, %v1898
        %v1900 = vpop.f32.mrf.mxu0
        %v1901 = vpop.f32.mrf.mxu0
        %v1902 = vpop.f32.mrf.mxu0
        %1903 = vdwg.mxu0
        %v1904 = vpack.c.bf16 %v1899, %v1899
        %v1905 = vld [vmem:[%s2] sm:$0xff]
        %v1906 = vld [vmem:[%s2 + $0x8] sm:$0xff]
        %v1908 = vsel %vm1027, %v1756, 0
        %v1911 = vsel %vm1027, %v1847, 0
        %1913 = vmatprep.subr.bf16.mxu0 0
        %1914 = vmatpush1.bf16.xpose.msra.mxu0 0
        %1915 = vmatprep.subr.bf16.mxu0 0
        %1916 = vmatpush1.bf16.xpose.msra.mxu0 0
        %1917 = vmatprep.subr.bf16.mxu0 0
        %1918 = vmatpush1.bf16.xpose.msra.mxu0 0
        %1919 = vmatprep.subr.bf16.mxu0 0
        %1920 = vmatpush1.bf16.xpose.msra.mxu0 0
        %1921 = vmatprep.subr.bf16.mxu0 0
        %1922 = vmatpush1.bf16.xpose.msra.mxu0 0
        %1923 = vmatprep.subr.bf16.mxu0 0
        %1924 = vmatpush1.bf16.xpose.msra.mxu0 0
        %1925 = vmatprep.subr.bf16.mxu0 0
        %1926 = vmatpush1.bf16.xpose.msra.mxu0 0
        %1927 = vmatprep.subr.bf16.mxu0 0
        %1928 = vmatpush1.bf16.xpose.msra.mxu0 %v1911
        %1929 = vmatprep.subr.bf16.mxu0 0
        %1930 = vmatpush2.bf16.xpose.msra.mxu0 0
        %1931 = vmatprep.subr.bf16.mxu0 0
        %1932 = vmatpush2.bf16.xpose.msra.mxu0 0
        %1933 = vmatprep.subr.bf16.mxu0 0
        %1934 = vmatpush2.bf16.xpose.msra.mxu0 0
        %1935 = vmatprep.subr.bf16.mxu0 0
        %1936 = vmatpush2.bf16.xpose.msra.mxu0 0
        %1937 = vmatprep.subr.bf16.mxu0 0
        %1938 = vmatpush2.bf16.xpose.msra.mxu0 0
        %1939 = vmatprep.subr.bf16.mxu0 0
        %1940 = vmatpush2.bf16.xpose.msra.mxu0 0
        %1941 = vmatprep.subr.bf16.mxu0 0
        %1942 = vmatpush2.bf16.xpose.msra.mxu0 0
        %1943 = vmatprep.subr.bf16.mxu0 0
        %1944 = vmatpush2.bf16.xpose.msra.mxu0 0
        %1945 = vmatprep.mubr.bf16.mxu0 0
        %1946 = vmatmul.mubr.bf16.gmra.mxu0 %v1908
        %v1947 = vpop.f32.mrf.mxu0
        %v1948 = vadd.f32 0.0, %v1947
        %v1949 = vpop.f32.mrf.mxu0
        %v1950 = vpop.f32.mrf.mxu0
        %v1951 = vadd.f32 0.0, %v1950
        %v1952 = vpop.f32.mrf.mxu0
        %1953 = vdwg.mxu0
        %v1954 = vmul.f32 %v1948, 0.35355338
        %v1955 = vmul.f32 %v1951, 0.35355338
        %v1956 = vadd.f32 %v1954, %v1905
        %v1957 = vadd.f32 %v1955, %v1906
        %v1958 = vsel %vm1027, %v1956, -inf
        %1959 = vmax.xlane.f32.xlu0 %v1958
        %v1960 = vpop.xlane.xlu0 %1959
        %v1961 = vsel %vm1027, %v1957, -inf
        %1962 = vmax.xlane.f32.xlu0 %v1961
        %v1963 = vpop.xlane.xlu0 %1962
        %v1964 = vmax.f32 %v1960, -1e+30
        %v1965 = vmax.f32 %v1963, -1e+30
        %v1966 = vsub.f32 -1e+30, %v1964
        %v1967 = vsub.f32 -1e+30, %v1965
        %v1968 = vmul.f32 %v1966, 1.442695
        %v1969 = vpow.pop %v1968
        %v1970 = vmul.f32 %v1967, 1.442695
        %v1971 = vpow.pop %v1970
        %v1972 = vsub.f32 %v1956, %v1964
        %v1973 = vsub.f32 %v1957, %v1965
        %v1974 = vmul.f32 %v1972, 1.442695
        %v1975 = vpow.pop %v1974
        %v1976 = vmul.f32 %v1973, 1.442695
        %v1977 = vpow.pop %v1976
        %v1978 = vmul.f32 %v1969, 0.0
        %v1979 = vmul.f32 %v1971, 0.0
        %v1980 = vsel %vm1027, %v1975, 0.0
        %1981 = vadd.xlane.f32.xlu0 %v1980
        %v1982 = vpop.xlane.xlu0 %1981
        %v1983 = vsel %vm1027, %v1977, 0.0
        %1984 = vadd.xlane.f32.xlu0 %v1983
        %v1985 = vpop.xlane.xlu0 %1984
        %v1986 = vadd.f32 %v1978, %v1982
        %v1987 = vadd.f32 %v1979, %v1985
        %v1988 = vpack.c.bf16 %v1977, %v1975
        %v1990 = vsel %vm1027, %v1988, 0
        %vm1992 = vcmask 1043456
        %v1994 = vsel %vm1992, %v1904, 0
        %1996 = vmatprep.subr.bf16.mxu0 0
        %1997 = vmatpush1.bf16.msra.mxu0 0
        %1998 = vmatprep.subr.bf16.mxu0 0
        %1999 = vmatpush1.bf16.msra.mxu0 0
        %2000 = vmatprep.subr.bf16.mxu0 0
        %2001 = vmatpush1.bf16.msra.mxu0 0
        %2002 = vmatprep.subr.bf16.mxu0 0
        %2003 = vmatpush1.bf16.msra.mxu0 0
        %2004 = vmatprep.subr.bf16.mxu0 0
        %2005 = vmatpush1.bf16.msra.mxu0 0
        %2006 = vmatprep.subr.bf16.mxu0 0
        %2007 = vmatpush1.bf16.msra.mxu0 0
        %2008 = vmatprep.subr.bf16.mxu0 0
        %2009 = vmatpush1.bf16.msra.mxu0 0
        %2010 = vmatprep.subr.bf16.mxu0 0
        %2011 = vmatpush1.bf16.msra.mxu0 %v1994
        %2012 = vmatprep.subr.bf16.mxu0 0
        %2013 = vmatpush2.bf16.msra.mxu0 0
        %2014 = vmatprep.subr.bf16.mxu0 0
        %2015 = vmatpush2.bf16.msra.mxu0 0
        %2016 = vmatprep.subr.bf16.mxu0 0
        %2017 = vmatpush2.bf16.msra.mxu0 0
        %2018 = vmatprep.subr.bf16.mxu0 0
        %2019 = vmatpush2.bf16.msra.mxu0 0
        %2020 = vmatprep.subr.bf16.mxu0 0
        %2021 = vmatpush2.bf16.msra.mxu0 0
        %2022 = vmatprep.subr.bf16.mxu0 0
        %2023 = vmatpush2.bf16.msra.mxu0 0
        %2024 = vmatprep.subr.bf16.mxu0 0
        %2025 = vmatpush2.bf16.msra.mxu0 0
        %2026 = vmatprep.subr.bf16.mxu0 0
        %2027 = vmatpush2.bf16.msra.mxu0 0
        %2028 = vmatprep.mubr.bf16.mxu0 0
        %2029 = vmatmul.mubr.bf16.gmra.mxu0 %v1990
        %v2030 = vpop.f32.mrf.mxu0
        %v2031 = vadd.f32 0.0, %v2030
        %v2032 = vpop.f32.mrf.mxu0
        %v2033 = vpop.f32.mrf.mxu0
        %v2034 = vadd.f32 0.0, %v2033
        %v2035 = vpop.f32.mrf.mxu0
        %2036 = vdwg.mxu0
        %v2037 = vadd.f32 %v1978, %v2031
        %v2038 = vadd.f32 %v1979, %v2034
        %2040 = vrot.lane.b32.xlu0 %v1756, 120
        %v2041 = vpop.permute.xlu0 %2040
        %2043 = vrot.lane.b32.xlu0 %v1847, 120
        %v2044 = vpop.permute.xlu0 %2043
        %v2046 = vsel %vm1027, %v2041, 0
        %v2049 = vsel %vm1027, %v2044, 0
        %2051 = vmatprep.subr.bf16.mxu0 0
        %2052 = vmatpush1.bf16.xpose.msra.mxu0 0
        %2053 = vmatprep.subr.bf16.mxu0 0
        %2054 = vmatpush1.bf16.xpose.msra.mxu0 0
        %2055 = vmatprep.subr.bf16.mxu0 0
        %2056 = vmatpush1.bf16.xpose.msra.mxu0 0
        %2057 = vmatprep.subr.bf16.mxu0 0
        %2058 = vmatpush1.bf16.xpose.msra.mxu0 0
        %2059 = vmatprep.subr.bf16.mxu0 0
        %2060 = vmatpush1.bf16.xpose.msra.mxu0 0
        %2061 = vmatprep.subr.bf16.mxu0 0
        %2062 = vmatpush1.bf16.xpose.msra.mxu0 0
        %2063 = vmatprep.subr.bf16.mxu0 0
        %2064 = vmatpush1.bf16.xpose.msra.mxu0 0
        %2065 = vmatprep.subr.bf16.mxu0 0
        %2066 = vmatpush1.bf16.xpose.msra.mxu0 %v2049
        %2067 = vmatprep.subr.bf16.mxu0 0
        %2068 = vmatpush2.bf16.xpose.msra.mxu0 0
        %2069 = vmatprep.subr.bf16.mxu0 0
        %2070 = vmatpush2.bf16.xpose.msra.mxu0 0
        %2071 = vmatprep.subr.bf16.mxu0 0
        %2072 = vmatpush2.bf16.xpose.msra.mxu0 0
        %2073 = vmatprep.subr.bf16.mxu0 0
        %2074 = vmatpush2.bf16.xpose.msra.mxu0 0
        %2075 = vmatprep.subr.bf16.mxu0 0
        %2076 = vmatpush2.bf16.xpose.msra.mxu0 0
        %2077 = vmatprep.subr.bf16.mxu0 0
        %2078 = vmatpush2.bf16.xpose.msra.mxu0 0
        %2079 = vmatprep.subr.bf16.mxu0 0
        %2080 = vmatpush2.bf16.xpose.msra.mxu0 0
        %2081 = vmatprep.subr.bf16.mxu0 0
        %2082 = vmatpush2.bf16.xpose.msra.mxu0 0
        %2083 = vmatprep.mubr.bf16.mxu0 0
        %2084 = vmatmul.mubr.bf16.gmra.mxu0 %v2046
        %v2085 = vpop.f32.mrf.mxu0
        %v2086 = vadd.f32 0.0, %v2085
        %v2087 = vpop.f32.mrf.mxu0
        %v2088 = vpop.f32.mrf.mxu0
        %v2089 = vadd.f32 0.0, %v2088
        %v2090 = vpop.f32.mrf.mxu0
        %2091 = vdwg.mxu0
        %v2092 = vmul.f32 %v2086, 0.35355338
        %v2093 = vmul.f32 %v2089, 0.35355338
        %v2094 = vadd.f32 %v2092, %v1905
        %v2095 = vadd.f32 %v2093, %v1906
        %v2096 = vsel %vm1027, %v2094, -inf
        %2097 = vmax.xlane.f32.xlu0 %v2096
        %v2098 = vpop.xlane.xlu0 %2097
        %v2099 = vsel %vm1027, %v2095, -inf
        %2100 = vmax.xlane.f32.xlu0 %v2099
        %v2101 = vpop.xlane.xlu0 %2100
        %v2102 = vmax.f32 %v2098, -1e+30
        %v2103 = vmax.f32 %v2101, -1e+30
        %v2104 = vsub.f32 -1e+30, %v2102
        %v2105 = vsub.f32 -1e+30, %v2103
        %v2106 = vmul.f32 %v2104, 1.442695
        %v2107 = vpow.pop %v2106
        %v2108 = vmul.f32 %v2105, 1.442695
        %v2109 = vpow.pop %v2108
        %v2110 = vsub.f32 %v2094, %v2102
        %v2111 = vsub.f32 %v2095, %v2103
        %v2112 = vmul.f32 %v2110, 1.442695
        %v2113 = vpow.pop %v2112
        %v2114 = vmul.f32 %v2111, 1.442695
        %v2115 = vpow.pop %v2114
        %v2116 = vmul.f32 %v2107, 0.0
        %v2117 = vmul.f32 %v2109, 0.0
        %v2118 = vsel %vm1027, %v2113, 0.0
        %2119 = vadd.xlane.f32.xlu0 %v2118
        %v2120 = vpop.xlane.xlu0 %2119
        %v2121 = vsel %vm1027, %v2115, 0.0
        %2122 = vadd.xlane.f32.xlu0 %v2121
        %v2123 = vpop.xlane.xlu0 %2122
        %v2124 = vadd.f32 %v2116, %v2120
        %v2125 = vadd.f32 %v2117, %v2123
        %v2126 = vpack.c.bf16 %v2115, %v2113
        %2128 = vrot.lane.b32.xlu0 %v1904, 120
        %v2129 = vpop.permute.xlu0 %2128
        %v2131 = vsel %vm1027, %v2126, 0
        %v2134 = vsel %vm1992, %v2129, 0
        %2136 = vmatprep.subr.bf16.mxu0 0
        %2137 = vmatpush1.bf16.msra.mxu0 0
        %2138 = vmatprep.subr.bf16.mxu0 0
        %2139 = vmatpush1.bf16.msra.mxu0 0
        %2140 = vmatprep.subr.bf16.mxu0 0
        %2141 = vmatpush1.bf16.msra.mxu0 0
        %2142 = vmatprep.subr.bf16.mxu0 0
        %2143 = vmatpush1.bf16.msra.mxu0 0
        %2144 = vmatprep.subr.bf16.mxu0 0
        %2145 = vmatpush1.bf16.msra.mxu0 0
        %2146 = vmatprep.subr.bf16.mxu0 0
        %2147 = vmatpush1.bf16.msra.mxu0 0
        %2148 = vmatprep.subr.bf16.mxu0 0
        %2149 = vmatpush1.bf16.msra.mxu0 0
        %2150 = vmatprep.subr.bf16.mxu0 0
        %2151 = vmatpush1.bf16.msra.mxu0 %v2134
        %2152 = vmatprep.subr.bf16.mxu0 0
        %2153 = vmatpush2.bf16.msra.mxu0 0
        %2154 = vmatprep.subr.bf16.mxu0 0
        %2155 = vmatpush2.bf16.msra.mxu0 0
        %2156 = vmatprep.subr.bf16.mxu0 0
        %2157 = vmatpush2.bf16.msra.mxu0 0
        %2158 = vmatprep.subr.bf16.mxu0 0
        %2159 = vmatpush2.bf16.msra.mxu0 0
        %2160 = vmatprep.subr.bf16.mxu0 0
        %2161 = vmatpush2.bf16.msra.mxu0 0
        %2162 = vmatprep.subr.bf16.mxu0 0
        %2163 = vmatpush2.bf16.msra.mxu0 0
        %2164 = vmatprep.subr.bf16.mxu0 0
        %2165 = vmatpush2.bf16.msra.mxu0 0
        %2166 = vmatprep.subr.bf16.mxu0 0
        %2167 = vmatpush2.bf16.msra.mxu0 0
        %2168 = vmatprep.mubr.bf16.mxu0 0
        %2169 = vmatmul.mubr.bf16.gmra.mxu0 %v2131
        %v2170 = vpop.f32.mrf.mxu0
        %v2171 = vadd.f32 0.0, %v2170
        %v2172 = vpop.f32.mrf.mxu0
        %v2173 = vpop.f32.mrf.mxu0
        %v2174 = vadd.f32 0.0, %v2173
        %v2175 = vpop.f32.mrf.mxu0
        %2176 = vdwg.mxu0
        %v2177 = vadd.f32 %v2116, %v2171
        %v2178 = vadd.f32 %v2117, %v2174
        %2179 = vrot.lane.b32.xlu0 %v1756, 112
        %v2180 = vpop.permute.xlu0 %2179
        %2181 = vrot.lane.b32.xlu0 %v1847, 112
        %v2182 = vpop.permute.xlu0 %2181
        %v2184 = vsel %vm1027, %v2180, 0
        %v2187 = vsel %vm1027, %v2182, 0
        %2189 = vmatprep.subr.bf16.mxu0 0
        %2190 = vmatpush1.bf16.xpose.msra.mxu0 0
        %2191 = vmatprep.subr.bf16.mxu0 0
        %2192 = vmatpush1.bf16.xpose.msra.mxu0 0
        %2193 = vmatprep.subr.bf16.mxu0 0
        %2194 = vmatpush1.bf16.xpose.msra.mxu0 0
        %2195 = vmatprep.subr.bf16.mxu0 0
        %2196 = vmatpush1.bf16.xpose.msra.mxu0 0
        %2197 = vmatprep.subr.bf16.mxu0 0
        %2198 = vmatpush1.bf16.xpose.msra.mxu0 0
        %2199 = vmatprep.subr.bf16.mxu0 0
        %2200 = vmatpush1.bf16.xpose.msra.mxu0 0
        %2201 = vmatprep.subr.bf16.mxu0 0
        %2202 = vmatpush1.bf16.xpose.msra.mxu0 0
        %2203 = vmatprep.subr.bf16.mxu0 0
        %2204 = vmatpush1.bf16.xpose.msra.mxu0 %v2187
        %2205 = vmatprep.subr.bf16.mxu0 0
        %2206 = vmatpush2.bf16.xpose.msra.mxu0 0
        %2207 = vmatprep.subr.bf16.mxu0 0
        %2208 = vmatpush2.bf16.xpose.msra.mxu0 0
        %2209 = vmatprep.subr.bf16.mxu0 0
        %2210 = vmatpush2.bf16.xpose.msra.mxu0 0
        %2211 = vmatprep.subr.bf16.mxu0 0
        %2212 = vmatpush2.bf16.xpose.msra.mxu0 0
        %2213 = vmatprep.subr.bf16.mxu0 0
        %2214 = vmatpush2.bf16.xpose.msra.mxu0 0
        %2215 = vmatprep.subr.bf16.mxu0 0
        %2216 = vmatpush2.bf16.xpose.msra.mxu0 0
        %2217 = vmatprep.subr.bf16.mxu0 0
        %2218 = vmatpush2.bf16.xpose.msra.mxu0 0
        %2219 = vmatprep.subr.bf16.mxu0 0
        %2220 = vmatpush2.bf16.xpose.msra.mxu0 0
        %2221 = vmatprep.mubr.bf16.mxu0 0
        %2222 = vmatmul.mubr.bf16.gmra.mxu0 %v2184
        %v2223 = vpop.f32.mrf.mxu0
        %v2224 = vadd.f32 0.0, %v2223
        %v2225 = vpop.f32.mrf.mxu0
        %v2226 = vpop.f32.mrf.mxu0
        %v2227 = vadd.f32 0.0, %v2226
        %v2228 = vpop.f32.mrf.mxu0
        %2229 = vdwg.mxu0
        %v2230 = vmul.f32 %v2224, 0.35355338
        %v2231 = vmul.f32 %v2227, 0.35355338
        %v2232 = vadd.f32 %v2230, %v1905
        %v2233 = vadd.f32 %v2231, %v1906
        %v2234 = vsel %vm1027, %v2232, -inf
        %2235 = vmax.xlane.f32.xlu0 %v2234
        %v2236 = vpop.xlane.xlu0 %2235
        %v2237 = vsel %vm1027, %v2233, -inf
        %2238 = vmax.xlane.f32.xlu0 %v2237
        %v2239 = vpop.xlane.xlu0 %2238
        %v2240 = vmax.f32 %v2236, -1e+30
        %v2241 = vmax.f32 %v2239, -1e+30
        %v2242 = vsub.f32 -1e+30, %v2240
        %v2243 = vsub.f32 -1e+30, %v2241
        %v2244 = vmul.f32 %v2242, 1.442695
        %v2245 = vpow.pop %v2244
        %v2246 = vmul.f32 %v2243, 1.442695
        %v2247 = vpow.pop %v2246
        %v2248 = vsub.f32 %v2232, %v2240
        %v2249 = vsub.f32 %v2233, %v2241
        %v2250 = vmul.f32 %v2248, 1.442695
        %v2251 = vpow.pop %v2250
        %v2252 = vmul.f32 %v2249, 1.442695
        %v2253 = vpow.pop %v2252
        %v2254 = vmul.f32 %v2245, 0.0
        %v2255 = vmul.f32 %v2247, 0.0
        %v2256 = vsel %vm1027, %v2251, 0.0
        %2257 = vadd.xlane.f32.xlu0 %v2256
        %v2258 = vpop.xlane.xlu0 %2257
        %v2259 = vsel %vm1027, %v2253, 0.0
        %2260 = vadd.xlane.f32.xlu0 %v2259
        %v2261 = vpop.xlane.xlu0 %2260
        %v2262 = vadd.f32 %v2254, %v2258
        %v2263 = vadd.f32 %v2255, %v2261
        %v2264 = vpack.c.bf16 %v2253, %v2251
        %2265 = vrot.lane.b32.xlu0 %v1904, 112
        %v2266 = vpop.permute.xlu0 %2265
        %v2268 = vsel %vm1027, %v2264, 0
        %v2271 = vsel %vm1992, %v2266, 0
        %2273 = vmatprep.subr.bf16.mxu0 0
        %2274 = vmatpush1.bf16.msra.mxu0 0
        %2275 = vmatprep.subr.bf16.mxu0 0
        %2276 = vmatpush1.bf16.msra.mxu0 0
        %2277 = vmatprep.subr.bf16.mxu0 0
        %2278 = vmatpush1.bf16.msra.mxu0 0
        %2279 = vmatprep.subr.bf16.mxu0 0
        %2280 = vmatpush1.bf16.msra.mxu0 0
        %2281 = vmatprep.subr.bf16.mxu0 0
        %2282 = vmatpush1.bf16.msra.mxu0 0
        %2283 = vmatprep.subr.bf16.mxu0 0
        %2284 = vmatpush1.bf16.msra.mxu0 0
        %2285 = vmatprep.subr.bf16.mxu0 0
        %2286 = vmatpush1.bf16.msra.mxu0 0
        %2287 = vmatprep.subr.bf16.mxu0 0
        %2288 = vmatpush1.bf16.msra.mxu0 %v2271
        %2289 = vmatprep.subr.bf16.mxu0 0
        %2290 = vmatpush2.bf16.msra.mxu0 0
        %2291 = vmatprep.subr.bf16.mxu0 0
        %2292 = vmatpush2.bf16.msra.mxu0 0
        %2293 = vmatprep.subr.bf16.mxu0 0
        %2294 = vmatpush2.bf16.msra.mxu0 0
        %2295 = vmatprep.subr.bf16.mxu0 0
        %2296 = vmatpush2.bf16.msra.mxu0 0
        %2297 = vmatprep.subr.bf16.mxu0 0
        %2298 = vmatpush2.bf16.msra.mxu0 0
        %2299 = vmatprep.subr.bf16.mxu0 0
        %2300 = vmatpush2.bf16.msra.mxu0 0
        %2301 = vmatprep.subr.bf16.mxu0 0
        %2302 = vmatpush2.bf16.msra.mxu0 0
        %2303 = vmatprep.subr.bf16.mxu0 0
        %2304 = vmatpush2.bf16.msra.mxu0 0
        %2305 = vmatprep.mubr.bf16.mxu0 0
        %2306 = vmatmul.mubr.bf16.gmra.mxu0 %v2268
        %v2307 = vpop.f32.mrf.mxu0
        %v2308 = vadd.f32 0.0, %v2307
        %v2309 = vpop.f32.mrf.mxu0
        %v2310 = vpop.f32.mrf.mxu0
        %v2311 = vadd.f32 0.0, %v2310
        %v2312 = vpop.f32.mrf.mxu0
        %2313 = vdwg.mxu0
        %v2314 = vadd.f32 %v2254, %v2308
        %v2315 = vadd.f32 %v2255, %v2311
        %2316 = vrot.lane.b32.xlu0 %v1756, 104
        %v2317 = vpop.permute.xlu0 %2316
        %2318 = vrot.lane.b32.xlu0 %v1847, 104
        %v2319 = vpop.permute.xlu0 %2318
        %v2321 = vsel %vm1027, %v2317, 0
        %v2324 = vsel %vm1027, %v2319, 0
        %2326 = vmatprep.subr.bf16.mxu0 0
        %2327 = vmatpush1.bf16.xpose.msra.mxu0 0
        %2328 = vmatprep.subr.bf16.mxu0 0
        %2329 = vmatpush1.bf16.xpose.msra.mxu0 0
        %2330 = vmatprep.subr.bf16.mxu0 0
        %2331 = vmatpush1.bf16.xpose.msra.mxu0 0
        %2332 = vmatprep.subr.bf16.mxu0 0
        %2333 = vmatpush1.bf16.xpose.msra.mxu0 0
        %2334 = vmatprep.subr.bf16.mxu0 0
        %2335 = vmatpush1.bf16.xpose.msra.mxu0 0
        %2336 = vmatprep.subr.bf16.mxu0 0
        %2337 = vmatpush1.bf16.xpose.msra.mxu0 0
        %2338 = vmatprep.subr.bf16.mxu0 0
        %2339 = vmatpush1.bf16.xpose.msra.mxu0 0
        %2340 = vmatprep.subr.bf16.mxu0 0
        %2341 = vmatpush1.bf16.xpose.msra.mxu0 %v2324
        %2342 = vmatprep.subr.bf16.mxu0 0
        %2343 = vmatpush2.bf16.xpose.msra.mxu0 0
        %2344 = vmatprep.subr.bf16.mxu0 0
        %2345 = vmatpush2.bf16.xpose.msra.mxu0 0
        %2346 = vmatprep.subr.bf16.mxu0 0
        %2347 = vmatpush2.bf16.xpose.msra.mxu0 0
        %2348 = vmatprep.subr.bf16.mxu0 0
        %2349 = vmatpush2.bf16.xpose.msra.mxu0 0
        %2350 = vmatprep.subr.bf16.mxu0 0
        %2351 = vmatpush2.bf16.xpose.msra.mxu0 0
        %2352 = vmatprep.subr.bf16.mxu0 0
        %2353 = vmatpush2.bf16.xpose.msra.mxu0 0
        %2354 = vmatprep.subr.bf16.mxu0 0
        %2355 = vmatpush2.bf16.xpose.msra.mxu0 0
        %2356 = vmatprep.subr.bf16.mxu0 0
        %2357 = vmatpush2.bf16.xpose.msra.mxu0 0
        %2358 = vmatprep.mubr.bf16.mxu0 0
        %2359 = vmatmul.mubr.bf16.gmra.mxu0 %v2321
        %v2360 = vpop.f32.mrf.mxu0
        %v2361 = vadd.f32 0.0, %v2360
        %v2362 = vpop.f32.mrf.mxu0
        %v2363 = vpop.f32.mrf.mxu0
        %v2364 = vadd.f32 0.0, %v2363
        %v2365 = vpop.f32.mrf.mxu0
        %2366 = vdwg.mxu0
        %v2367 = vmul.f32 %v2361, 0.35355338
        %v2368 = vmul.f32 %v2364, 0.35355338
        %v2369 = vadd.f32 %v2367, %v1905
        %v2370 = vadd.f32 %v2368, %v1906
        %v2371 = vsel %vm1027, %v2369, -inf
        %2372 = vmax.xlane.f32.xlu0 %v2371
        %v2373 = vpop.xlane.xlu0 %2372
        %v2374 = vsel %vm1027, %v2370, -inf
        %2375 = vmax.xlane.f32.xlu0 %v2374
        %v2376 = vpop.xlane.xlu0 %2375
        %v2377 = vmax.f32 %v2373, -1e+30
        %v2378 = vmax.f32 %v2376, -1e+30
        %v2379 = vsub.f32 -1e+30, %v2377
        %v2380 = vsub.f32 -1e+30, %v2378
        %v2381 = vmul.f32 %v2379, 1.442695
        %v2382 = vpow.pop %v2381
        %v2383 = vmul.f32 %v2380, 1.442695
        %v2384 = vpow.pop %v2383
        %v2385 = vsub.f32 %v2369, %v2377
        %v2386 = vsub.f32 %v2370, %v2378
        %v2387 = vmul.f32 %v2385, 1.442695
        %v2388 = vpow.pop %v2387
        %v2389 = vmul.f32 %v2386, 1.442695
        %v2390 = vpow.pop %v2389
        %v2391 = vmul.f32 %v2382, 0.0
        %v2392 = vmul.f32 %v2384, 0.0
        %v2393 = vsel %vm1027, %v2388, 0.0
        %2394 = vadd.xlane.f32.xlu0 %v2393
        %v2395 = vpop.xlane.xlu0 %2394
        %v2396 = vsel %vm1027, %v2390, 0.0
        %2397 = vadd.xlane.f32.xlu0 %v2396
        %v2398 = vpop.xlane.xlu0 %2397
        %v2399 = vadd.f32 %v2391, %v2395
        %v2400 = vadd.f32 %v2392, %v2398
        %v2401 = vpack.c.bf16 %v2390, %v2388
        %2402 = vrot.lane.b32.xlu0 %v1904, 104
        %v2403 = vpop.permute.xlu0 %2402
        %v2405 = vsel %vm1027, %v2401, 0
        %v2408 = vsel %vm1992, %v2403, 0
        %2410 = vmatprep.subr.bf16.mxu0 0
        %2411 = vmatpush1.bf16.msra.mxu0 0
        %2412 = vmatprep.subr.bf16.mxu0 0
        %2413 = vmatpush1.bf16.msra.mxu0 0
        %2414 = vmatprep.subr.bf16.mxu0 0
        %2415 = vmatpush1.bf16.msra.mxu0 0
        %2416 = vmatprep.subr.bf16.mxu0 0
        %2417 = vmatpush1.bf16.msra.mxu0 0
        %2418 = vmatprep.subr.bf16.mxu0 0
        %2419 = vmatpush1.bf16.msra.mxu0 0
        %2420 = vmatprep.subr.bf16.mxu0 0
        %2421 = vmatpush1.bf16.msra.mxu0 0
        %2422 = vmatprep.subr.bf16.mxu0 0
        %2423 = vmatpush1.bf16.msra.mxu0 0
        %2424 = vmatprep.subr.bf16.mxu0 0
        %2425 = vmatpush1.bf16.msra.mxu0 %v2408
        %2426 = vmatprep.subr.bf16.mxu0 0
        %2427 = vmatpush2.bf16.msra.mxu0 0
        %2428 = vmatprep.subr.bf16.mxu0 0
        %2429 = vmatpush2.bf16.msra.mxu0 0
        %2430 = vmatprep.subr.bf16.mxu0 0
        %2431 = vmatpush2.bf16.msra.mxu0 0
        %2432 = vmatprep.subr.bf16.mxu0 0
        %2433 = vmatpush2.bf16.msra.mxu0 0
        %2434 = vmatprep.subr.bf16.mxu0 0
        %2435 = vmatpush2.bf16.msra.mxu0 0
        %2436 = vmatprep.subr.bf16.mxu0 0
        %2437 = vmatpush2.bf16.msra.mxu0 0
        %2438 = vmatprep.subr.bf16.mxu0 0
        %2439 = vmatpush2.bf16.msra.mxu0 0
        %2440 = vmatprep.subr.bf16.mxu0 0
        %2441 = vmatpush2.bf16.msra.mxu0 0
        %2442 = vmatprep.mubr.bf16.mxu0 0
        %2443 = vmatmul.mubr.bf16.gmra.mxu0 %v2405
        %v2444 = vpop.f32.mrf.mxu0
        %v2445 = vadd.f32 0.0, %v2444
        %v2446 = vpop.f32.mrf.mxu0
        %v2447 = vpop.f32.mrf.mxu0
        %v2448 = vadd.f32 0.0, %v2447
        %v2449 = vpop.f32.mrf.mxu0
        %2450 = vdwg.mxu0
        %v2451 = vadd.f32 %v2391, %v2445
        %v2452 = vadd.f32 %v2392, %v2448
        %v2453 = vld [vmem:[%s912 + $0x8] sm:$0xff]
        %v2454 = vld [vmem:[#allocation12] sm:$0x1]
        %v2455 = vld [vmem:[#allocation14] sm:$0x1]
        %v2456 = vsel %vm918, %v2453, 0.0
        %2457 = vadd.xlane.f32.xlu0 %v2456
        %v2458 = vpop.xlane.xlu0 %2457
        %v2459 = vmul.f32 %v2458, %v925
        %v2460 = vsub.f32 %v2453, %v2459
        %v2461 = vmul.f32 %v2460, %v2460
        %v2462 = vsel %vm918, %v2461, 0.0
        %2463 = vadd.xlane.f32.xlu0 %v2462
        %v2464 = vpop.xlane.xlu0 %2463
        %v2465 = vmul.f32 %v2464, %v925
        %v2466 = vadd.f32 %v2465, 1e-05
        %v2467 = vrsqrt.pop %v2466
        %v2468 = vmul.f32 %v2460, %v2467
        %v2470 = vlaneseq
        %v2471 = vshrl.u32 %v2470, 7
        %v2472 = vsub.s32 0, %v2471
        %v2473 = vrot.slane %v2454, %v2472
        %v2475 = vmul.f32 %v2468, %v2473
        %v2477 = vlaneseq
        %v2478 = vshrl.u32 %v2477, 7
        %v2479 = vsub.s32 0, %v2478
        %v2480 = vrot.slane %v2455, %v2479
        %v2482 = vadd.f32 %v2475, %v2480
        %v2483 = vpack.c.bf16 %v2482, %v2482
        %v2484 = vld [vmem:[#allocation17] sm:$0xf]
        %v2485 = vld [vmem:[#allocation17 + $0x4] sm:$0xf]
        %v2486 = vld [vmem:[#allocation17 + $0x8] sm:$0xf]
        %v2487 = vld [vmem:[#allocation17 + $0xc] sm:$0xf]
        %v2492 = vunpack.c.l.b16 %v2484
        %v2493 = vunpack.c.l.b16 %v2485
        %v2494 = vunpack.c.l.b16 %v2486
        %v2495 = vunpack.c.l.b16 %v2487
        %v2496 = vpack.c.b16 %v2493, %v2492
        %v2497 = vpack.c.b16 %v2495, %v2494
        %v2501 = vsel %vm918, %v2483, 0
        %2503 = vmatprep.subr.bf16.mxu0 0
        %2504 = vmatpush1.bf16.msra.mxu0 0
        %2505 = vmatprep.subr.bf16.mxu0 0
        %2506 = vmatpush1.bf16.msra.mxu0 0
        %2507 = vmatprep.subr.bf16.mxu0 0
        %2508 = vmatpush1.bf16.msra.mxu0 0
        %2509 = vmatprep.subr.bf16.mxu0 0
        %2510 = vmatpush1.bf16.msra.mxu0 0
        %2511 = vmatprep.subr.bf16.mxu0 0
        %2512 = vmatpush1.bf16.msra.mxu0 0
        %2513 = vmatprep.subr.bf16.mxu0 0
        %2514 = vmatpush1.bf16.msra.mxu0 0
        %2515 = vmatprep.subr.bf16.mxu0 0
        %2516 = vmatpush1.bf16.msra.mxu0 %v2497
        %2517 = vmatprep.subr.bf16.mxu0 0
        %2518 = vmatpush1.bf16.msra.mxu0 %v2496
        %2519 = vmatprep.subr.bf16.mxu0 0
        %2520 = vmatpush2.bf16.msra.mxu0 0
        %2521 = vmatprep.subr.bf16.mxu0 0
        %2522 = vmatpush2.bf16.msra.mxu0 0
        %2523 = vmatprep.subr.bf16.mxu0 0
        %2524 = vmatpush2.bf16.msra.mxu0 0
        %2525 = vmatprep.subr.bf16.mxu0 0
        %2526 = vmatpush2.bf16.msra.mxu0 0
        %2527 = vmatprep.subr.bf16.mxu0 0
        %2528 = vmatpush2.bf16.msra.mxu0 0
        %2529 = vmatprep.subr.bf16.mxu0 0
        %2530 = vmatpush2.bf16.msra.mxu0 0
        %2531 = vmatprep.subr.bf16.mxu0 0
        %2532 = vmatpush2.bf16.msra.mxu0 0
        %2533 = vmatprep.subr.bf16.mxu0 0
        %2534 = vmatpush2.bf16.msra.mxu0 0
        %2535 = vmatprep.mubr.bf16.mxu0 0
        %2536 = vmatmul.mubr.bf16.gmra.mxu0 %v2501
        %v2537 = vpop.f32.mrf.mxu0
        %v2538 = vadd.f32 0.0, %v2537
        %v2539 = vpop.f32.mrf.mxu0
        %v2540 = vpop.f32.mrf.mxu0
        %v2541 = vpop.f32.mrf.mxu0
        %2542 = vdwg.mxu0
        %v2543 = vpack.c.bf16 %v2538, %v2538
        %v2544 = vld [vmem:[#allocation18] sm:$0xf]
        %v2545 = vld [vmem:[#allocation18 + $0x4] sm:$0xf]
        %v2546 = vld [vmem:[#allocation18 + $0x8] sm:$0xf]
        %v2547 = vld [vmem:[#allocation18 + $0xc] sm:$0xf]
        %v2552 = vunpack.c.l.b16 %v2544
        %v2553 = vunpack.c.l.b16 %v2545
        %v2554 = vunpack.c.l.b16 %v2546
        %v2555 = vunpack.c.l.b16 %v2547
        %v2556 = vpack.c.b16 %v2553, %v2552
        %v2557 = vpack.c.b16 %v2555, %v2554
        %2560 = vmatprep.subr.bf16.mxu0 0
        %2561 = vmatpush1.bf16.msra.mxu0 0
        %2562 = vmatprep.subr.bf16.mxu0 0
        %2563 = vmatpush1.bf16.msra.mxu0 0
        %2564 = vmatprep.subr.bf16.mxu0 0
        %2565 = vmatpush1.bf16.msra.mxu0 0
        %2566 = vmatprep.subr.bf16.mxu0 0
        %2567 = vmatpush1.bf16.msra.mxu0 0
        %2568 = vmatprep.subr.bf16.mxu0 0
        %2569 = vmatpush1.bf16.msra.mxu0 0
        %2570 = vmatprep.subr.bf16.mxu0 0
        %2571 = vmatpush1.bf16.msra.mxu0 0
        %2572 = vmatprep.subr.bf16.mxu0 0
        %2573 = vmatpush1.bf16.msra.mxu0 %v2557
        %2574 = vmatprep.subr.bf16.mxu0 0
        %2575 = vmatpush1.bf16.msra.mxu0 %v2556
        %2576 = vmatprep.subr.bf16.mxu0 0
        %2577 = vmatpush2.bf16.msra.mxu0 0
        %2578 = vmatprep.subr.bf16.mxu0 0
        %2579 = vmatpush2.bf16.msra.mxu0 0
        %2580 = vmatprep.subr.bf16.mxu0 0
        %2581 = vmatpush2.bf16.msra.mxu0 0
        %2582 = vmatprep.subr.bf16.mxu0 0
        %2583 = vmatpush2.bf16.msra.mxu0 0
        %2584 = vmatprep.subr.bf16.mxu0 0
        %2585 = vmatpush2.bf16.msra.mxu0 0
        %2586 = vmatprep.subr.bf16.mxu0 0
        %2587 = vmatpush2.bf16.msra.mxu0 0
        %2588 = vmatprep.subr.bf16.mxu0 0
        %2589 = vmatpush2.bf16.msra.mxu0 0
        %2590 = vmatprep.subr.bf16.mxu0 0
        %2591 = vmatpush2.bf16.msra.mxu0 0
        %2592 = vmatprep.mubr.bf16.mxu0 0
        %2593 = vmatmul.mubr.bf16.gmra.mxu0 %v2501
        %v2594 = vpop.f32.mrf.mxu0
        %v2595 = vadd.f32 0.0, %v2594
        %v2596 = vpop.f32.mrf.mxu0
        %v2597 = vpop.f32.mrf.mxu0
        %v2598 = vpop.f32.mrf.mxu0
        %2599 = vdwg.mxu0
        %v2600 = vpack.c.bf16 %v2595, %v2595
        %v2601 = vld [vmem:[%s2] sm:$0xff]
        %v2602 = vld [vmem:[%s2 + $0x8] sm:$0xff]
        %v2604 = vsel %vm1027, %v2543, 0
        %2606 = vmatprep.subr.bf16.mxu0 0
        %2607 = vmatpush1.bf16.xpose.msra.mxu0 0
        %2608 = vmatprep.subr.bf16.mxu0 0
        %2609 = vmatpush1.bf16.xpose.msra.mxu0 0
        %2610 = vmatprep.subr.bf16.mxu0 0
        %2611 = vmatpush1.bf16.xpose.msra.mxu0 0
        %2612 = vmatprep.subr.bf16.mxu0 0
        %2613 = vmatpush1.bf16.xpose.msra.mxu0 0
        %2614 = vmatprep.subr.bf16.mxu0 0
        %2615 = vmatpush1.bf16.xpose.msra.mxu0 0
        %2616 = vmatprep.subr.bf16.mxu0 0
        %2617 = vmatpush1.bf16.xpose.msra.mxu0 0
        %2618 = vmatprep.subr.bf16.mxu0 0
        %2619 = vmatpush1.bf16.xpose.msra.mxu0 0
        %2620 = vmatprep.subr.bf16.mxu0 0
        %2621 = vmatpush1.bf16.xpose.msra.mxu0 %v2604
        %2622 = vmatprep.subr.bf16.mxu0 0
        %2623 = vmatpush2.bf16.xpose.msra.mxu0 0
        %2624 = vmatprep.subr.bf16.mxu0 0
        %2625 = vmatpush2.bf16.xpose.msra.mxu0 0
        %2626 = vmatprep.subr.bf16.mxu0 0
        %2627 = vmatpush2.bf16.xpose.msra.mxu0 0
        %2628 = vmatprep.subr.bf16.mxu0 0
        %2629 = vmatpush2.bf16.xpose.msra.mxu0 0
        %2630 = vmatprep.subr.bf16.mxu0 0
        %2631 = vmatpush2.bf16.xpose.msra.mxu0 0
        %2632 = vmatprep.subr.bf16.mxu0 0
        %2633 = vmatpush2.bf16.xpose.msra.mxu0 0
        %2634 = vmatprep.subr.bf16.mxu0 0
        %2635 = vmatpush2.bf16.xpose.msra.mxu0 0
        %2636 = vmatprep.subr.bf16.mxu0 0
        %2637 = vmatpush2.bf16.xpose.msra.mxu0 0
        %2638 = vmatprep.mubr.bf16.mxu0 0
        %2639 = vmatmul.mubr.bf16.gmra.mxu0 %v1908
        %v2640 = vpop.f32.mrf.mxu0
        %v2641 = vadd.f32 0.0, %v2640
        %v2642 = vpop.f32.mrf.mxu0
        %v2643 = vpop.f32.mrf.mxu0
        %v2644 = vadd.f32 0.0, %v2643
        %v2645 = vpop.f32.mrf.mxu0
        %2646 = vdwg.mxu0
        %v2647 = vmul.f32 %v2641, 0.35355338
        %v2648 = vmul.f32 %v2644, 0.35355338
        %2651 = vrot.lane.b32.xlu0 %v2601, 120
        %v2652 = vpop.permute.xlu0 %2651
        %2653 = vrot.lane.b32.xlu0 %v2602, 120
        %v2654 = vpop.permute.xlu0 %2653
        %v2657 = vadd.f32 %v2647, %v2652
        %v2658 = vadd.f32 %v2648, %v2654
        %v2659 = vsel %vm1027, %v2657, -inf
        %2660 = vmax.xlane.f32.xlu0 %v2659
        %v2661 = vpop.xlane.xlu0 %2660
        %v2662 = vsel %vm1027, %v2658, -inf
        %2663 = vmax.xlane.f32.xlu0 %v2662
        %v2664 = vpop.xlane.xlu0 %2663
        %v2665 = vmax.f32 %v1964, %v2661
        %v2666 = vmax.f32 %v1965, %v2664
        %v2667 = vsub.f32 %v1964, %v2665
        %v2668 = vsub.f32 %v1965, %v2666
        %v2669 = vmul.f32 %v2667, 1.442695
        %v2670 = vpow.pop %v2669
        %v2671 = vmul.f32 %v2668, 1.442695
        %v2672 = vpow.pop %v2671
        %v2673 = vsub.f32 %v2657, %v2665
        %v2674 = vsub.f32 %v2658, %v2666
        %v2675 = vmul.f32 %v2673, 1.442695
        %v2676 = vpow.pop %v2675
        %v2677 = vmul.f32 %v2674, 1.442695
        %v2678 = vpow.pop %v2677
        %v2679 = vmul.f32 %v2670, %v1986
        %v2680 = vmul.f32 %v2672, %v1987
        %v2681 = vsel %vm1027, %v2676, 0.0
        %2682 = vadd.xlane.f32.xlu0 %v2681
        %v2683 = vpop.xlane.xlu0 %2682
        %v2684 = vsel %vm1027, %v2678, 0.0
        %2685 = vadd.xlane.f32.xlu0 %v2684
        %v2686 = vpop.xlane.xlu0 %2685
        %v2687 = vadd.f32 %v2679, %v2683
        %v2688 = vadd.f32 %v2680, %v2686
        %v2689 = vmul.f32 %v2670, %v2037
        %v2690 = vmul.f32 %v2672, %v2038
        %v2691 = vpack.c.bf16 %v2678, %v2676
        %v2693 = vsel %vm1027, %v2691, 0
        %v2696 = vsel %vm1992, %v2600, 0
        %2698 = vmatprep.subr.bf16.mxu0 0
        %2699 = vmatpush1.bf16.msra.mxu0 0
        %2700 = vmatprep.subr.bf16.mxu0 0
        %2701 = vmatpush1.bf16.msra.mxu0 0
        %2702 = vmatprep.subr.bf16.mxu0 0
        %2703 = vmatpush1.bf16.msra.mxu0 0
        %2704 = vmatprep.subr.bf16.mxu0 0
        %2705 = vmatpush1.bf16.msra.mxu0 0
        %2706 = vmatprep.subr.bf16.mxu0 0
        %2707 = vmatpush1.bf16.msra.mxu0 0
        %2708 = vmatprep.subr.bf16.mxu0 0
        %2709 = vmatpush1.bf16.msra.mxu0 0
        %2710 = vmatprep.subr.bf16.mxu0 0
        %2711 = vmatpush1.bf16.msra.mxu0 0
        %2712 = vmatprep.subr.bf16.mxu0 0
        %2713 = vmatpush1.bf16.msra.mxu0 %v2696
        %2714 = vmatprep.subr.bf16.mxu0 0
        %2715 = vmatpush2.bf16.msra.mxu0 0
        %2716 = vmatprep.subr.bf16.mxu0 0
        %2717 = vmatpush2.bf16.msra.mxu0 0
        %2718 = vmatprep.subr.bf16.mxu0 0
        %2719 = vmatpush2.bf16.msra.mxu0 0
        %2720 = vmatprep.subr.bf16.mxu0 0
        %2721 = vmatpush2.bf16.msra.mxu0 0
        %2722 = vmatprep.subr.bf16.mxu0 0
        %2723 = vmatpush2.bf16.msra.mxu0 0
        %2724 = vmatprep.subr.bf16.mxu0 0
        %2725 = vmatpush2.bf16.msra.mxu0 0
        %2726 = vmatprep.subr.bf16.mxu0 0
        %2727 = vmatpush2.bf16.msra.mxu0 0
        %2728 = vmatprep.subr.bf16.mxu0 0
        %2729 = vmatpush2.bf16.msra.mxu0 0
        %2730 = vmatprep.mubr.bf16.mxu0 0
        %2731 = vmatmul.mubr.bf16.gmra.mxu0 %v2693
        %v2732 = vpop.f32.mrf.mxu0
        %v2733 = vadd.f32 0.0, %v2732
        %v2734 = vpop.f32.mrf.mxu0
        %v2735 = vpop.f32.mrf.mxu0
        %v2736 = vadd.f32 0.0, %v2735
        %v2737 = vpop.f32.mrf.mxu0
        %2738 = vdwg.mxu0
        %v2739 = vadd.f32 %v2689, %v2733
        %v2740 = vadd.f32 %v2690, %v2736
        %2742 = vrot.lane.b32.xlu0 %v2543, 120
        %v2743 = vpop.permute.xlu0 %2742
        %v2745 = vsel %vm1027, %v2743, 0
        %2747 = vmatprep.subr.bf16.mxu0 0
        %2748 = vmatpush1.bf16.xpose.msra.mxu0 0
        %2749 = vmatprep.subr.bf16.mxu0 0
        %2750 = vmatpush1.bf16.xpose.msra.mxu0 0
        %2751 = vmatprep.subr.bf16.mxu0 0
        %2752 = vmatpush1.bf16.xpose.msra.mxu0 0
        %2753 = vmatprep.subr.bf16.mxu0 0
        %2754 = vmatpush1.bf16.xpose.msra.mxu0 0
        %2755 = vmatprep.subr.bf16.mxu0 0
        %2756 = vmatpush1.bf16.xpose.msra.mxu0 0
        %2757 = vmatprep.subr.bf16.mxu0 0
        %2758 = vmatpush1.bf16.xpose.msra.mxu0 0
        %2759 = vmatprep.subr.bf16.mxu0 0
        %2760 = vmatpush1.bf16.xpose.msra.mxu0 0
        %2761 = vmatprep.subr.bf16.mxu0 0
        %2762 = vmatpush1.bf16.xpose.msra.mxu0 %v2745
        %2763 = vmatprep.subr.bf16.mxu0 0
        %2764 = vmatpush2.bf16.xpose.msra.mxu0 0
        %2765 = vmatprep.subr.bf16.mxu0 0
        %2766 = vmatpush2.bf16.xpose.msra.mxu0 0
        %2767 = vmatprep.subr.bf16.mxu0 0
        %2768 = vmatpush2.bf16.xpose.msra.mxu0 0
        %2769 = vmatprep.subr.bf16.mxu0 0
        %2770 = vmatpush2.bf16.xpose.msra.mxu0 0
        %2771 = vmatprep.subr.bf16.mxu0 0
        %2772 = vmatpush2.bf16.xpose.msra.mxu0 0
        %2773 = vmatprep.subr.bf16.mxu0 0
        %2774 = vmatpush2.bf16.xpose.msra.mxu0 0
        %2775 = vmatprep.subr.bf16.mxu0 0
        %2776 = vmatpush2.bf16.xpose.msra.mxu0 0
        %2777 = vmatprep.subr.bf16.mxu0 0
        %2778 = vmatpush2.bf16.xpose.msra.mxu0 0
        %2779 = vmatprep.mubr.bf16.mxu0 0
        %2780 = vmatmul.mubr.bf16.gmra.mxu0 %v2046
        %v2781 = vpop.f32.mrf.mxu0
        %v2782 = vadd.f32 0.0, %v2781
        %v2783 = vpop.f32.mrf.mxu0
        %v2784 = vpop.f32.mrf.mxu0
        %v2785 = vadd.f32 0.0, %v2784
        %v2786 = vpop.f32.mrf.mxu0
        %2787 = vdwg.mxu0
        %v2788 = vmul.f32 %v2782, 0.35355338
        %v2789 = vmul.f32 %v2785, 0.35355338
        %v2790 = vadd.f32 %v2788, %v2652
        %v2791 = vadd.f32 %v2789, %v2654
        %v2792 = vsel %vm1027, %v2790, -inf
        %2793 = vmax.xlane.f32.xlu0 %v2792
        %v2794 = vpop.xlane.xlu0 %2793
        %v2795 = vsel %vm1027, %v2791, -inf
        %2796 = vmax.xlane.f32.xlu0 %v2795
        %v2797 = vpop.xlane.xlu0 %2796
        %v2798 = vmax.f32 %v2102, %v2794
        %v2799 = vmax.f32 %v2103, %v2797
        %v2800 = vsub.f32 %v2102, %v2798
        %v2801 = vsub.f32 %v2103, %v2799
        %v2802 = vmul.f32 %v2800, 1.442695
        %v2803 = vpow.pop %v2802
        %v2804 = vmul.f32 %v2801, 1.442695
        %v2805 = vpow.pop %v2804
        %v2806 = vsub.f32 %v2790, %v2798
        %v2807 = vsub.f32 %v2791, %v2799
        %v2808 = vmul.f32 %v2806, 1.442695
        %v2809 = vpow.pop %v2808
        %v2810 = vmul.f32 %v2807, 1.442695
        %v2811 = vpow.pop %v2810
        %v2812 = vmul.f32 %v2803, %v2124
        %v2813 = vmul.f32 %v2805, %v2125
        %v2814 = vsel %vm1027, %v2809, 0.0
        %2815 = vadd.xlane.f32.xlu0 %v2814
        %v2816 = vpop.xlane.xlu0 %2815
        %v2817 = vsel %vm1027, %v2811, 0.0
        %2818 = vadd.xlane.f32.xlu0 %v2817
        %v2819 = vpop.xlane.xlu0 %2818
        %v2820 = vadd.f32 %v2812, %v2816
        %v2821 = vadd.f32 %v2813, %v2819
        %v2822 = vmul.f32 %v2803, %v2177
        %v2823 = vmul.f32 %v2805, %v2178
        %v2824 = vpack.c.bf16 %v2811, %v2809
        %2826 = vrot.lane.b32.xlu0 %v2600, 120
        %v2827 = vpop.permute.xlu0 %2826
        %v2829 = vsel %vm1027, %v2824, 0
        %v2832 = vsel %vm1992, %v2827, 0
        %2834 = vmatprep.subr.bf16.mxu0 0
        %2835 = vmatpush1.bf16.msra.mxu0 0
        %2836 = vmatprep.subr.bf16.mxu0 0
        %2837 = vmatpush1.bf16.msra.mxu0 0
        %2838 = vmatprep.subr.bf16.mxu0 0
        %2839 = vmatpush1.bf16.msra.mxu0 0
        %2840 = vmatprep.subr.bf16.mxu0 0
        %2841 = vmatpush1.bf16.msra.mxu0 0
        %2842 = vmatprep.subr.bf16.mxu0 0
        %2843 = vmatpush1.bf16.msra.mxu0 0
        %2844 = vmatprep.subr.bf16.mxu0 0
        %2845 = vmatpush1.bf16.msra.mxu0 0
        %2846 = vmatprep.subr.bf16.mxu0 0
        %2847 = vmatpush1.bf16.msra.mxu0 0
        %2848 = vmatprep.subr.bf16.mxu0 0
        %2849 = vmatpush1.bf16.msra.mxu0 %v2832
        %2850 = vmatprep.subr.bf16.mxu0 0
        %2851 = vmatpush2.bf16.msra.mxu0 0
        %2852 = vmatprep.subr.bf16.mxu0 0
        %2853 = vmatpush2.bf16.msra.mxu0 0
        %2854 = vmatprep.subr.bf16.mxu0 0
        %2855 = vmatpush2.bf16.msra.mxu0 0
        %2856 = vmatprep.subr.bf16.mxu0 0
        %2857 = vmatpush2.bf16.msra.mxu0 0
        %2858 = vmatprep.subr.bf16.mxu0 0
        %2859 = vmatpush2.bf16.msra.mxu0 0
        %2860 = vmatprep.subr.bf16.mxu0 0
        %2861 = vmatpush2.bf16.msra.mxu0 0
        %2862 = vmatprep.subr.bf16.mxu0 0
        %2863 = vmatpush2.bf16.msra.mxu0 0
        %2864 = vmatprep.subr.bf16.mxu0 0
        %2865 = vmatpush2.bf16.msra.mxu0 0
        %2866 = vmatprep.mubr.bf16.mxu0 0
        %2867 = vmatmul.mubr.bf16.gmra.mxu0 %v2829
        %v2868 = vpop.f32.mrf.mxu0
        %v2869 = vadd.f32 0.0, %v2868
        %v2870 = vpop.f32.mrf.mxu0
        %v2871 = vpop.f32.mrf.mxu0
        %v2872 = vadd.f32 0.0, %v2871
        %v2873 = vpop.f32.mrf.mxu0
        %2874 = vdwg.mxu0
        %v2875 = vadd.f32 %v2822, %v2869
        %v2876 = vadd.f32 %v2823, %v2872
        %2877 = vrot.lane.b32.xlu0 %v2543, 112
        %v2878 = vpop.permute.xlu0 %2877
        %v2880 = vsel %vm1027, %v2878, 0
        %2882 = vmatprep.subr.bf16.mxu0 0
        %2883 = vmatpush1.bf16.xpose.msra.mxu0 0
        %2884 = vmatprep.subr.bf16.mxu0 0
        %2885 = vmatpush1.bf16.xpose.msra.mxu0 0
        %2886 = vmatprep.subr.bf16.mxu0 0
        %2887 = vmatpush1.bf16.xpose.msra.mxu0 0
        %2888 = vmatprep.subr.bf16.mxu0 0
        %2889 = vmatpush1.bf16.xpose.msra.mxu0 0
        %2890 = vmatprep.subr.bf16.mxu0 0
        %2891 = vmatpush1.bf16.xpose.msra.mxu0 0
        %2892 = vmatprep.subr.bf16.mxu0 0
        %2893 = vmatpush1.bf16.xpose.msra.mxu0 0
        %2894 = vmatprep.subr.bf16.mxu0 0
        %2895 = vmatpush1.bf16.xpose.msra.mxu0 0
        %2896 = vmatprep.subr.bf16.mxu0 0
        %2897 = vmatpush1.bf16.xpose.msra.mxu0 %v2880
        %2898 = vmatprep.subr.bf16.mxu0 0
        %2899 = vmatpush2.bf16.xpose.msra.mxu0 0
        %2900 = vmatprep.subr.bf16.mxu0 0
        %2901 = vmatpush2.bf16.xpose.msra.mxu0 0
        %2902 = vmatprep.subr.bf16.mxu0 0
        %2903 = vmatpush2.bf16.xpose.msra.mxu0 0
        %2904 = vmatprep.subr.bf16.mxu0 0
        %2905 = vmatpush2.bf16.xpose.msra.mxu0 0
        %2906 = vmatprep.subr.bf16.mxu0 0
        %2907 = vmatpush2.bf16.xpose.msra.mxu0 0
        %2908 = vmatprep.subr.bf16.mxu0 0
        %2909 = vmatpush2.bf16.xpose.msra.mxu0 0
        %2910 = vmatprep.subr.bf16.mxu0 0
        %2911 = vmatpush2.bf16.xpose.msra.mxu0 0
        %2912 = vmatprep.subr.bf16.mxu0 0
        %2913 = vmatpush2.bf16.xpose.msra.mxu0 0
        %2914 = vmatprep.mubr.bf16.mxu0 0
        %2915 = vmatmul.mubr.bf16.gmra.mxu0 %v2184
        %v2916 = vpop.f32.mrf.mxu0
        %v2917 = vadd.f32 0.0, %v2916
        %v2918 = vpop.f32.mrf.mxu0
        %v2919 = vpop.f32.mrf.mxu0
        %v2920 = vadd.f32 0.0, %v2919
        %v2921 = vpop.f32.mrf.mxu0
        %2922 = vdwg.mxu0
        %v2923 = vmul.f32 %v2917, 0.35355338
        %v2924 = vmul.f32 %v2920, 0.35355338
        %v2925 = vadd.f32 %v2923, %v2652
        %v2926 = vadd.f32 %v2924, %v2654
        %v2927 = vsel %vm1027, %v2925, -inf
        %2928 = vmax.xlane.f32.xlu0 %v2927
        %v2929 = vpop.xlane.xlu0 %2928
        %v2930 = vsel %vm1027, %v2926, -inf
        %2931 = vmax.xlane.f32.xlu0 %v2930
        %v2932 = vpop.xlane.xlu0 %2931
        %v2933 = vmax.f32 %v2240, %v2929
        %v2934 = vmax.f32 %v2241, %v2932
        %v2935 = vsub.f32 %v2240, %v2933
        %v2936 = vsub.f32 %v2241, %v2934
        %v2937 = vmul.f32 %v2935, 1.442695
        %v2938 = vpow.pop %v2937
        %v2939 = vmul.f32 %v2936, 1.442695
        %v2940 = vpow.pop %v2939
        %v2941 = vsub.f32 %v2925, %v2933
        %v2942 = vsub.f32 %v2926, %v2934
        %v2943 = vmul.f32 %v2941, 1.442695
        %v2944 = vpow.pop %v2943
        %v2945 = vmul.f32 %v2942, 1.442695
        %v2946 = vpow.pop %v2945
        %v2947 = vmul.f32 %v2938, %v2262
        %v2948 = vmul.f32 %v2940, %v2263
        %v2949 = vsel %vm1027, %v2944, 0.0
        %2950 = vadd.xlane.f32.xlu0 %v2949
        %v2951 = vpop.xlane.xlu0 %2950
        %v2952 = vsel %vm1027, %v2946, 0.0
        %2953 = vadd.xlane.f32.xlu0 %v2952
        %v2954 = vpop.xlane.xlu0 %2953
        %v2955 = vadd.f32 %v2947, %v2951
        %v2956 = vadd.f32 %v2948, %v2954
        %v2957 = vmul.f32 %v2938, %v2314
        %v2958 = vmul.f32 %v2940, %v2315
        %v2959 = vpack.c.bf16 %v2946, %v2944
        %2960 = vrot.lane.b32.xlu0 %v2600, 112
        %v2961 = vpop.permute.xlu0 %2960
        %v2963 = vsel %vm1027, %v2959, 0
        %v2966 = vsel %vm1992, %v2961, 0
        %2968 = vmatprep.subr.bf16.mxu0 0
        %2969 = vmatpush1.bf16.msra.mxu0 0
        %2970 = vmatprep.subr.bf16.mxu0 0
        %2971 = vmatpush1.bf16.msra.mxu0 0
        %2972 = vmatprep.subr.bf16.mxu0 0
        %2973 = vmatpush1.bf16.msra.mxu0 0
        %2974 = vmatprep.subr.bf16.mxu0 0
        %2975 = vmatpush1.bf16.msra.mxu0 0
        %2976 = vmatprep.subr.bf16.mxu0 0
        %2977 = vmatpush1.bf16.msra.mxu0 0
        %2978 = vmatprep.subr.bf16.mxu0 0
        %2979 = vmatpush1.bf16.msra.mxu0 0
        %2980 = vmatprep.subr.bf16.mxu0 0
        %2981 = vmatpush1.bf16.msra.mxu0 0
        %2982 = vmatprep.subr.bf16.mxu0 0
        %2983 = vmatpush1.bf16.msra.mxu0 %v2966
        %2984 = vmatprep.subr.bf16.mxu0 0
        %2985 = vmatpush2.bf16.msra.mxu0 0
        %2986 = vmatprep.subr.bf16.mxu0 0
        %2987 = vmatpush2.bf16.msra.mxu0 0
        %2988 = vmatprep.subr.bf16.mxu0 0
        %2989 = vmatpush2.bf16.msra.mxu0 0
        %2990 = vmatprep.subr.bf16.mxu0 0
        %2991 = vmatpush2.bf16.msra.mxu0 0
        %2992 = vmatprep.subr.bf16.mxu0 0
        %2993 = vmatpush2.bf16.msra.mxu0 0
        %2994 = vmatprep.subr.bf16.mxu0 0
        %2995 = vmatpush2.bf16.msra.mxu0 0
        %2996 = vmatprep.subr.bf16.mxu0 0
        %2997 = vmatpush2.bf16.msra.mxu0 0
        %2998 = vmatprep.subr.bf16.mxu0 0
        %2999 = vmatpush2.bf16.msra.mxu0 0
        %3000 = vmatprep.mubr.bf16.mxu0 0
        %3001 = vmatmul.mubr.bf16.gmra.mxu0 %v2963
        %v3002 = vpop.f32.mrf.mxu0
        %v3003 = vadd.f32 0.0, %v3002
        %v3004 = vpop.f32.mrf.mxu0
        %v3005 = vpop.f32.mrf.mxu0
        %v3006 = vadd.f32 0.0, %v3005
        %v3007 = vpop.f32.mrf.mxu0
        %3008 = vdwg.mxu0
        %v3009 = vadd.f32 %v2957, %v3003
        %v3010 = vadd.f32 %v2958, %v3006
        %3011 = vrot.lane.b32.xlu0 %v2543, 104
        %v3012 = vpop.permute.xlu0 %3011
        %v3014 = vsel %vm1027, %v3012, 0
        %3016 = vmatprep.subr.bf16.mxu0 0
        %3017 = vmatpush1.bf16.xpose.msra.mxu0 0
        %3018 = vmatprep.subr.bf16.mxu0 0
        %3019 = vmatpush1.bf16.xpose.msra.mxu0 0
        %3020 = vmatprep.subr.bf16.mxu0 0
        %3021 = vmatpush1.bf16.xpose.msra.mxu0 0
        %3022 = vmatprep.subr.bf16.mxu0 0
        %3023 = vmatpush1.bf16.xpose.msra.mxu0 0
        %3024 = vmatprep.subr.bf16.mxu0 0
        %3025 = vmatpush1.bf16.xpose.msra.mxu0 0
        %3026 = vmatprep.subr.bf16.mxu0 0
        %3027 = vmatpush1.bf16.xpose.msra.mxu0 0
        %3028 = vmatprep.subr.bf16.mxu0 0
        %3029 = vmatpush1.bf16.xpose.msra.mxu0 0
        %3030 = vmatprep.subr.bf16.mxu0 0
        %3031 = vmatpush1.bf16.xpose.msra.mxu0 %v3014
        %3032 = vmatprep.subr.bf16.mxu0 0
        %3033 = vmatpush2.bf16.xpose.msra.mxu0 0
        %3034 = vmatprep.subr.bf16.mxu0 0
        %3035 = vmatpush2.bf16.xpose.msra.mxu0 0
        %3036 = vmatprep.subr.bf16.mxu0 0
        %3037 = vmatpush2.bf16.xpose.msra.mxu0 0
        %3038 = vmatprep.subr.bf16.mxu0 0
        %3039 = vmatpush2.bf16.xpose.msra.mxu0 0
        %3040 = vmatprep.subr.bf16.mxu0 0
        %3041 = vmatpush2.bf16.xpose.msra.mxu0 0
        %3042 = vmatprep.subr.bf16.mxu0 0
        %3043 = vmatpush2.bf16.xpose.msra.mxu0 0
        %3044 = vmatprep.subr.bf16.mxu0 0
        %3045 = vmatpush2.bf16.xpose.msra.mxu0 0
        %3046 = vmatprep.subr.bf16.mxu0 0
        %3047 = vmatpush2.bf16.xpose.msra.mxu0 0
        %3048 = vmatprep.mubr.bf16.mxu0 0
        %3049 = vmatmul.mubr.bf16.gmra.mxu0 %v2321
        %v3050 = vpop.f32.mrf.mxu0
        %v3051 = vadd.f32 0.0, %v3050
        %v3052 = vpop.f32.mrf.mxu0
        %v3053 = vpop.f32.mrf.mxu0
        %v3054 = vadd.f32 0.0, %v3053
        %v3055 = vpop.f32.mrf.mxu0
        %3056 = vdwg.mxu0
        %v3057 = vmul.f32 %v3051, 0.35355338
        %v3058 = vmul.f32 %v3054, 0.35355338
        %v3059 = vadd.f32 %v3057, %v2652
        %v3060 = vadd.f32 %v3058, %v2654
        %v3061 = vsel %vm1027, %v3059, -inf
        %3062 = vmax.xlane.f32.xlu0 %v3061
        %v3063 = vpop.xlane.xlu0 %3062
        %v3064 = vsel %vm1027, %v3060, -inf
        %3065 = vmax.xlane.f32.xlu0 %v3064
        %v3066 = vpop.xlane.xlu0 %3065
        %v3067 = vmax.f32 %v2377, %v3063
        %v3068 = vmax.f32 %v2378, %v3066
        %v3069 = vsub.f32 %v2377, %v3067
        %v3070 = vsub.f32 %v2378, %v3068
        %v3071 = vmul.f32 %v3069, 1.442695
        %v3072 = vpow.pop %v3071
        %v3073 = vmul.f32 %v3070, 1.442695
        %v3074 = vpow.pop %v3073
        %v3075 = vsub.f32 %v3059, %v3067
        %v3076 = vsub.f32 %v3060, %v3068
        %v3077 = vmul.f32 %v3075, 1.442695
        %v3078 = vpow.pop %v3077
        %v3079 = vmul.f32 %v3076, 1.442695
        %v3080 = vpow.pop %v3079
        %v3081 = vmul.f32 %v3072, %v2399
        %v3082 = vmul.f32 %v3074, %v2400
        %v3083 = vsel %vm1027, %v3078, 0.0
        %3084 = vadd.xlane.f32.xlu0 %v3083
        %v3085 = vpop.xlane.xlu0 %3084
        %v3086 = vsel %vm1027, %v3080, 0.0
        %3087 = vadd.xlane.f32.xlu0 %v3086
        %v3088 = vpop.xlane.xlu0 %3087
        %v3089 = vadd.f32 %v3081, %v3085
        %v3090 = vadd.f32 %v3082, %v3088
        %v3091 = vmul.f32 %v3072, %v2451
        %v3092 = vmul.f32 %v3074, %v2452
        %v3093 = vpack.c.bf16 %v3080, %v3078
        %3094 = vrot.lane.b32.xlu0 %v2600, 104
        %v3095 = vpop.permute.xlu0 %3094
        %v3097 = vsel %vm1027, %v3093, 0
        %v3100 = vsel %vm1992, %v3095, 0
        %3102 = vmatprep.subr.bf16.mxu0 0
        %3103 = vmatpush1.bf16.msra.mxu0 0
        %3104 = vmatprep.subr.bf16.mxu0 0
        %3105 = vmatpush1.bf16.msra.mxu0 0
        %3106 = vmatprep.subr.bf16.mxu0 0
        %3107 = vmatpush1.bf16.msra.mxu0 0
        %3108 = vmatprep.subr.bf16.mxu0 0
        %3109 = vmatpush1.bf16.msra.mxu0 0
        %3110 = vmatprep.subr.bf16.mxu0 0
        %3111 = vmatpush1.bf16.msra.mxu0 0
        %3112 = vmatprep.subr.bf16.mxu0 0
        %3113 = vmatpush1.bf16.msra.mxu0 0
        %3114 = vmatprep.subr.bf16.mxu0 0
        %3115 = vmatpush1.bf16.msra.mxu0 0
        %3116 = vmatprep.subr.bf16.mxu0 0
        %3117 = vmatpush1.bf16.msra.mxu0 %v3100
        %3118 = vmatprep.subr.bf16.mxu0 0
        %3119 = vmatpush2.bf16.msra.mxu0 0
        %3120 = vmatprep.subr.bf16.mxu0 0
        %3121 = vmatpush2.bf16.msra.mxu0 0
        %3122 = vmatprep.subr.bf16.mxu0 0
        %3123 = vmatpush2.bf16.msra.mxu0 0
        %3124 = vmatprep.subr.bf16.mxu0 0
        %3125 = vmatpush2.bf16.msra.mxu0 0
        %3126 = vmatprep.subr.bf16.mxu0 0
        %3127 = vmatpush2.bf16.msra.mxu0 0
        %3128 = vmatprep.subr.bf16.mxu0 0
        %3129 = vmatpush2.bf16.msra.mxu0 0
        %3130 = vmatprep.subr.bf16.mxu0 0
        %3131 = vmatpush2.bf16.msra.mxu0 0
        %3132 = vmatprep.subr.bf16.mxu0 0
        %3133 = vmatpush2.bf16.msra.mxu0 0
        %3134 = vmatprep.mubr.bf16.mxu0 0
        %3135 = vmatmul.mubr.bf16.gmra.mxu0 %v3097
        %v3136 = vpop.f32.mrf.mxu0
        %v3137 = vadd.f32 0.0, %v3136
        %v3138 = vpop.f32.mrf.mxu0
        %v3139 = vpop.f32.mrf.mxu0
        %v3140 = vadd.f32 0.0, %v3139
        %v3141 = vpop.f32.mrf.mxu0
        %3142 = vdwg.mxu0
        %v3143 = vadd.f32 %v3091, %v3137
        %v3144 = vadd.f32 %v3092, %v3140
        %v3145 = vrcp.pop %v2687
        %v3146 = vrcp.pop %v2688
        %v3147 = vmul.f32 %v2739, %v3145
        %v3148 = vmul.f32 %v2740, %v3146
        %v3149 = vpack.c.bf16 %v3148, %v3147
        %v3151 = vunpack.c.l.b16 %v3149
        %v3152 = vunpack.c.h.b16 %v3149
        %v3153 = vpack.c.b16 %v3151, %v3151
        %v3154 = vpack.c.b16 %v3152, %v3152
        %3157 = vst.msk [vmem:[#allocation2] sm:$0xf] %vm1156, %v3153
        %3158 = vst.msk [vmem:[#allocation2 + $0x4] sm:$0xf] %vm1156, %v3154
        %v3159 = vrcp.pop %v2820
        %v3160 = vrcp.pop %v2821
        %v3161 = vmul.f32 %v2875, %v3159
        %v3162 = vmul.f32 %v2876, %v3160
        %v3163 = vpack.c.bf16 %v3162, %v3161
        %v3165 = vunpack.c.l.b16 %v3163
        %v3166 = vunpack.c.h.b16 %v3163
        %v3167 = vpack.c.b16 %v3165, %v3165
        %v3168 = vpack.c.b16 %v3166, %v3166
        %3169 = vrot.lane.b32.xlu0 %v3167, 8
        %v3170 = vpop.permute.xlu0 %3169
        %3171 = vrot.lane.b32.xlu0 %v3168, 8
        %v3172 = vpop.permute.xlu0 %3171
        %3175 = vst.msk [vmem:[#allocation2] sm:$0xf] %vm1294, %v3170
        %3176 = vst.msk [vmem:[#allocation2 + $0x4] sm:$0xf] %vm1294, %v3172
        %v3177 = vrcp.pop %v2955
        %v3178 = vrcp.pop %v2956
        %v3179 = vmul.f32 %v3009, %v3177
        %v3180 = vmul.f32 %v3010, %v3178
        %v3181 = vpack.c.bf16 %v3180, %v3179
        %v3183 = vunpack.c.l.b16 %v3181
        %v3184 = vunpack.c.h.b16 %v3181
        %v3185 = vpack.c.b16 %v3183, %v3183
        %v3186 = vpack.c.b16 %v3184, %v3184
        %3187 = vrot.lane.b32.xlu0 %v3185, 16
        %v3188 = vpop.permute.xlu0 %3187
        %3189 = vrot.lane.b32.xlu0 %v3186, 16
        %v3190 = vpop.permute.xlu0 %3189
        %3193 = vst.msk [vmem:[#allocation2] sm:$0xf] %vm1432, %v3188
        %3194 = vst.msk [vmem:[#allocation2 + $0x4] sm:$0xf] %vm1432, %v3190
        %v3195 = vrcp.pop %v3089
        %v3196 = vrcp.pop %v3090
        %v3197 = vmul.f32 %v3143, %v3195
        %v3198 = vmul.f32 %v3144, %v3196
        %v3199 = vpack.c.bf16 %v3198, %v3197
        %v3201 = vunpack.c.l.b16 %v3199
        %v3202 = vunpack.c.h.b16 %v3199
        %v3203 = vpack.c.b16 %v3201, %v3201
        %v3204 = vpack.c.b16 %v3202, %v3202
        %3205 = vrot.lane.b32.xlu0 %v3203, 24
        %v3206 = vpop.permute.xlu0 %3205
        %3207 = vrot.lane.b32.xlu0 %v3204, 24
        %v3208 = vpop.permute.xlu0 %3207
        %3211 = vst.msk [vmem:[#allocation2] sm:$0xf] %vm1570, %v3206
        %3212 = vst.msk [vmem:[#allocation2 + $0x4] sm:$0xf] %vm1570, %v3208
        %v3213 = vld [vmem:[#allocation2] sm:$0xf]
        %v3214 = vld [vmem:[#allocation2 + $0x4] sm:$0xf]
        %v3215 = vld [vmem:[%s15] sm:$0xf]
        %v3216 = vld [vmem:[%s15 + $0x4] sm:$0xf]
        %v3217 = vld [vmem:[%s15 + $0x8] sm:$0xf]
        %v3218 = vld [vmem:[%s15 + $0xc] sm:$0xf]
        %v3221 = vunpack.c.l.b16 %v3213
        %v3222 = vunpack.c.l.b16 %v3214
        %v3223 = vpack.c.b16 %v3222, %v3221
        %v3228 = vunpack.c.l.b16 %v3215
        %v3229 = vunpack.c.l.b16 %v3216
        %v3230 = vunpack.c.l.b16 %v3217
        %v3231 = vunpack.c.l.b16 %v3218
        %v3232 = vpack.c.b16 %v3229, %v3228
        %v3233 = vpack.c.b16 %v3231, %v3230
        %v3237 = vsel %vm918, %v3223, 0
        %3239 = vmatprep.subr.bf16.mxu0 0
        %3240 = vmatpush1.bf16.msra.mxu0 0
        %3241 = vmatprep.subr.bf16.mxu0 0
        %3242 = vmatpush1.bf16.msra.mxu0 0
        %3243 = vmatprep.subr.bf16.mxu0 0
        %3244 = vmatpush1.bf16.msra.mxu0 0
        %3245 = vmatprep.subr.bf16.mxu0 0
        %3246 = vmatpush1.bf16.msra.mxu0 0
        %3247 = vmatprep.subr.bf16.mxu0 0
        %3248 = vmatpush1.bf16.msra.mxu0 0
        %3249 = vmatprep.subr.bf16.mxu0 0
        %3250 = vmatpush1.bf16.msra.mxu0 0
        %3251 = vmatprep.subr.bf16.mxu0 0
        %3252 = vmatpush1.bf16.msra.mxu0 %v3233
        %3253 = vmatprep.subr.bf16.mxu0 0
        %3254 = vmatpush1.bf16.msra.mxu0 %v3232
        %3255 = vmatprep.subr.bf16.mxu0 0
        %3256 = vmatpush2.bf16.msra.mxu0 0
        %3257 = vmatprep.subr.bf16.mxu0 0
        %3258 = vmatpush2.bf16.msra.mxu0 0
        %3259 = vmatprep.subr.bf16.mxu0 0
        %3260 = vmatpush2.bf16.msra.mxu0 0
        %3261 = vmatprep.subr.bf16.mxu0 0
        %3262 = vmatpush2.bf16.msra.mxu0 0
        %3263 = vmatprep.subr.bf16.mxu0 0
        %3264 = vmatpush2.bf16.msra.mxu0 0
        %3265 = vmatprep.subr.bf16.mxu0 0
        %3266 = vmatpush2.bf16.msra.mxu0 0
        %3267 = vmatprep.subr.bf16.mxu0 0
        %3268 = vmatpush2.bf16.msra.mxu0 0
        %3269 = vmatprep.subr.bf16.mxu0 0
        %3270 = vmatpush2.bf16.msra.mxu0 0
        %3271 = vmatprep.mubr.bf16.mxu0 0
        %3272 = vmatmul.mubr.bf16.gmra.mxu0 %v3237
        %v3273 = vpop.f32.mrf.mxu0
        %v3274 = vadd.f32 0.0, %v3273
        %v3275 = vpop.f32.mrf.mxu0
        %v3276 = vpop.f32.mrf.mxu0
        %v3277 = vadd.f32 0.0, %v3276
        %v3278 = vpop.f32.mrf.mxu0
        %3279 = vdwg.mxu0
        %v3280 = vadd.f32 %v1649, %v3274
        %v3281 = vadd.f32 %v1650, %v3277
        %v3282 = vld [vmem:[#allocation20] sm:$0x1]
        %v3284 = vlaneseq
        %v3285 = vshrl.u32 %v3284, 7
        %v3286 = vsub.s32 0, %v3285
        %v3287 = vrot.slane %v3282, %v3286
        %v3289 = vadd.f32 %v3280, %v3287
        %v3290 = vadd.f32 %v3281, %v3287
        %v3291 = vld [vmem:[#allocation21] sm:$0x1]
        %v3292 = vld [vmem:[#allocation23] sm:$0x1]
        %v3293 = vsel %vm918, %v3289, 0.0
        %3294 = vadd.xlane.f32.xlu0 %v3293
        %v3295 = vpop.xlane.xlu0 %3294
        %v3296 = vsel %vm918, %v3290, 0.0
        %3297 = vadd.xlane.f32.xlu0 %v3296
        %v3298 = vpop.xlane.xlu0 %3297
        %v3299 = vmul.f32 %v3295, %v925
        %v3300 = vmul.f32 %v3298, %v925
        %v3301 = vsub.f32 %v3289, %v3299
        %v3302 = vsub.f32 %v3290, %v3300
        %v3303 = vmul.f32 %v3301, %v3301
        %v3304 = vmul.f32 %v3302, %v3302
        %v3305 = vsel %vm918, %v3303, 0.0
        %3306 = vadd.xlane.f32.xlu0 %v3305
        %v3307 = vpop.xlane.xlu0 %3306
        %v3308 = vsel %vm918, %v3304, 0.0
        %3309 = vadd.xlane.f32.xlu0 %v3308
        %v3310 = vpop.xlane.xlu0 %3309
        %v3311 = vmul.f32 %v3307, %v925
        %v3312 = vmul.f32 %v3310, %v925
        %v3313 = vadd.f32 %v3311, 1e-05
        %v3314 = vadd.f32 %v3312, 1e-05
        %v3315 = vrsqrt.pop %v3313
        %v3316 = vrsqrt.pop %v3314
        %v3317 = vmul.f32 %v3301, %v3315
        %v3318 = vmul.f32 %v3302, %v3316
        %v3320 = vlaneseq
        %v3321 = vshrl.u32 %v3320, 7
        %v3322 = vsub.s32 0, %v3321
        %v3323 = vrot.slane %v3291, %v3322
        %v3325 = vmul.f32 %v3317, %v3323
        %v3326 = vmul.f32 %v3318, %v3323
        %v3328 = vlaneseq
        %v3329 = vshrl.u32 %v3328, 7
        %v3330 = vsub.s32 0, %v3329
        %v3331 = vrot.slane %v3292, %v3330
        %v3333 = vadd.f32 %v3325, %v3331
        %v3334 = vadd.f32 %v3326, %v3331
        %v3335 = vpack.c.bf16 %v3334, %v3333
        %v3336 = vld [vmem:[#allocation24] sm:$0xf]
        %v3337 = vld [vmem:[#allocation24 + $0x4] sm:$0xf]
        %v3338 = vld [vmem:[#allocation24 + $0x8] sm:$0xf]
        %v3339 = vld [vmem:[#allocation24 + $0xc] sm:$0xf]
        %v3340 = vld [vmem:[%s20] sm:$0x1]
        %v3342 = vlaneseq
        %v3343 = vshrl.u32 %v3342, 7
        %v3344 = vsub.s32 0, %v3343
        %v3345 = vrot.slane %v3340, %v3344
        %v3351 = vunpack.c.l.b16 %v3336
        %v3352 = vunpack.c.l.b16 %v3337
        %v3353 = vunpack.c.l.b16 %v3338
        %v3354 = vunpack.c.l.b16 %v3339
        %v3355 = vpack.c.b16 %v3352, %v3351
        %v3356 = vpack.c.b16 %v3354, %v3353
        %v3360 = vsel %vm918, %v3335, 0
        %3362 = vmatprep.subr.bf16.mxu0 0
        %3363 = vmatpush1.bf16.msra.mxu0 0
        %3364 = vmatprep.subr.bf16.mxu0 0
        %3365 = vmatpush1.bf16.msra.mxu0 0
        %3366 = vmatprep.subr.bf16.mxu0 0
        %3367 = vmatpush1.bf16.msra.mxu0 0
        %3368 = vmatprep.subr.bf16.mxu0 0
        %3369 = vmatpush1.bf16.msra.mxu0 0
        %3370 = vmatprep.subr.bf16.mxu0 0
        %3371 = vmatpush1.bf16.msra.mxu0 0
        %3372 = vmatprep.subr.bf16.mxu0 0
        %3373 = vmatpush1.bf16.msra.mxu0 0
        %3374 = vmatprep.subr.bf16.mxu0 0
        %3375 = vmatpush1.bf16.msra.mxu0 %v3356
        %3376 = vmatprep.subr.bf16.mxu0 0
        %3377 = vmatpush1.bf16.msra.mxu0 %v3355
        %3378 = vmatprep.subr.bf16.mxu0 0
        %3379 = vmatpush2.bf16.msra.mxu0 0
        %3380 = vmatprep.subr.bf16.mxu0 0
        %3381 = vmatpush2.bf16.msra.mxu0 0
        %3382 = vmatprep.subr.bf16.mxu0 0
        %3383 = vmatpush2.bf16.msra.mxu0 0
        %3384 = vmatprep.subr.bf16.mxu0 0
        %3385 = vmatpush2.bf16.msra.mxu0 0
        %3386 = vmatprep.subr.bf16.mxu0 0
        %3387 = vmatpush2.bf16.msra.mxu0 0
        %3388 = vmatprep.subr.bf16.mxu0 0
        %3389 = vmatpush2.bf16.msra.mxu0 0
        %3390 = vmatprep.subr.bf16.mxu0 0
        %3391 = vmatpush2.bf16.msra.mxu0 0
        %3392 = vmatprep.subr.bf16.mxu0 0
        %3393 = vmatpush2.bf16.msra.mxu0 0
        %3394 = vmatprep.mubr.bf16.mxu0 0
        %3395 = vmatmul.mubr.bf16.gmra.mxu0 %v3360
        %v3396 = vpop.f32.mrf.mxu0
        %v3397 = vadd.f32 %v3345, %v3396
        %v3398 = vpop.f32.mrf.mxu0
        %v3399 = vpop.f32.mrf.mxu0
        %v3400 = vadd.f32 %v3345, %v3399
        %v3401 = vpop.f32.mrf.mxu0
        %3402 = vdwg.mxu0
        %v3403 = vmul.f32 %v3397, 0.5
        %v3404 = vmul.f32 %v3400, 0.5
        %v3405 = vmul.f32 %v3397, 0.70710677
        %v3406 = vmul.f32 %v3400, 0.70710677
        %v3407 = verf.f32.pop %v3405
        %v3408 = verf.f32.pop %v3406
        %v3409 = vadd.f32 %v3407, 1.0
        %v3410 = vadd.f32 %v3408, 1.0
        %v3411 = vmul.f32 %v3403, %v3409
        %v3412 = vmul.f32 %v3404, %v3410
        %v3413 = vpack.c.bf16 %v3412, %v3411
        %v3414 = vld [vmem:[%s21] sm:$0xf]
        %v3415 = vld [vmem:[%s21 + $0x4] sm:$0xf]
        %v3416 = vld [vmem:[%s21 + $0x8] sm:$0xf]
        %v3417 = vld [vmem:[%s21 + $0xc] sm:$0xf]
        %v3418 = vld [vmem:[%s21 + $0x10] sm:$0xf]
        %v3419 = vld [vmem:[%s21 + $0x14] sm:$0xf]
        %v3420 = vld [vmem:[%s21 + $0x18] sm:$0xf]
        %v3421 = vld [vmem:[%s21 + $0x1c] sm:$0xf]
        %3422 = vrot.lane.b32.xlu0 %v3355, 64
        %v3423 = vpop.permute.xlu0 %3422
        %3424 = vrot.lane.b32.xlu0 %v3356, 64
        %v3425 = vpop.permute.xlu0 %3424
        %3428 = vrot.lane.b32.xlu0 %v3345, 64
        %v3429 = vpop.permute.xlu0 %3428
        %3431 = vmatprep.subr.bf16.mxu0 0
        %3432 = vmatpush1.bf16.msra.mxu0 0
        %3433 = vmatprep.subr.bf16.mxu0 0
        %3434 = vmatpush1.bf16.msra.mxu0 0
        %3435 = vmatprep.subr.bf16.mxu0 0
        %3436 = vmatpush1.bf16.msra.mxu0 0
        %3437 = vmatprep.subr.bf16.mxu0 0
        %3438 = vmatpush1.bf16.msra.mxu0 0
        %3439 = vmatprep.subr.bf16.mxu0 0
        %3440 = vmatpush1.bf16.msra.mxu0 0
        %3441 = vmatprep.subr.bf16.mxu0 0
        %3442 = vmatpush1.bf16.msra.mxu0 0
        %3443 = vmatprep.subr.bf16.mxu0 0
        %3444 = vmatpush1.bf16.msra.mxu0 %v3425
        %3445 = vmatprep.subr.bf16.mxu0 0
        %3446 = vmatpush1.bf16.msra.mxu0 %v3423
        %3447 = vmatprep.subr.bf16.mxu0 0
        %3448 = vmatpush2.bf16.msra.mxu0 0
        %3449 = vmatprep.subr.bf16.mxu0 0
        %3450 = vmatpush2.bf16.msra.mxu0 0
        %3451 = vmatprep.subr.bf16.mxu0 0
        %3452 = vmatpush2.bf16.msra.mxu0 0
        %3453 = vmatprep.subr.bf16.mxu0 0
        %3454 = vmatpush2.bf16.msra.mxu0 0
        %3455 = vmatprep.subr.bf16.mxu0 0
        %3456 = vmatpush2.bf16.msra.mxu0 0
        %3457 = vmatprep.subr.bf16.mxu0 0
        %3458 = vmatpush2.bf16.msra.mxu0 0
        %3459 = vmatprep.subr.bf16.mxu0 0
        %3460 = vmatpush2.bf16.msra.mxu0 0
        %3461 = vmatprep.subr.bf16.mxu0 0
        %3462 = vmatpush2.bf16.msra.mxu0 0
        %3463 = vmatprep.mubr.bf16.mxu0 0
        %3464 = vmatmul.mubr.bf16.gmra.mxu0 %v3360
        %v3465 = vpop.f32.mrf.mxu0
        %v3466 = vadd.f32 %v3429, %v3465
        %v3467 = vpop.f32.mrf.mxu0
        %v3468 = vpop.f32.mrf.mxu0
        %v3469 = vadd.f32 %v3429, %v3468
        %v3470 = vpop.f32.mrf.mxu0
        %3471 = vdwg.mxu0
        %v3472 = vmul.f32 %v3466, 0.5
        %v3473 = vmul.f32 %v3469, 0.5
        %v3474 = vmul.f32 %v3466, 0.70710677
        %v3475 = vmul.f32 %v3469, 0.70710677
        %v3476 = verf.f32.pop %v3474
        %v3477 = verf.f32.pop %v3475
        %v3478 = vadd.f32 %v3476, 1.0
        %v3479 = vadd.f32 %v3477, 1.0
        %v3480 = vmul.f32 %v3472, %v3478
        %v3481 = vmul.f32 %v3473, %v3479
        %v3482 = vpack.c.bf16 %v3481, %v3480
        %v3483 = vld [vmem:[%s21 + $0x20] sm:$0xf]
        %v3484 = vld [vmem:[%s21 + $0x24] sm:$0xf]
        %v3485 = vld [vmem:[%s21 + $0x28] sm:$0xf]
        %v3486 = vld [vmem:[%s21 + $0x2c] sm:$0xf]
        %v3487 = vld [vmem:[%s21 + $0x30] sm:$0xf]
        %v3488 = vld [vmem:[%s21 + $0x34] sm:$0xf]
        %v3489 = vld [vmem:[%s21 + $0x38] sm:$0xf]
        %v3490 = vld [vmem:[%s21 + $0x3c] sm:$0xf]
        %v3499 = vunpack.c.l.b16 %v3483
        %v3500 = vunpack.c.l.b16 %v3484
        %v3501 = vunpack.c.l.b16 %v3485
        %v3502 = vunpack.c.l.b16 %v3486
        %v3503 = vunpack.c.l.b16 %v3487
        %v3504 = vunpack.c.l.b16 %v3488
        %v3505 = vunpack.c.l.b16 %v3489
        %v3506 = vunpack.c.l.b16 %v3490
        %v3507 = vpack.c.b16 %v3500, %v3499
        %v3508 = vpack.c.b16 %v3502, %v3501
        %v3509 = vpack.c.b16 %v3504, %v3503
        %v3510 = vpack.c.b16 %v3506, %v3505
        %vm3515 = vcmask 523264
        %v3517 = vsel %vm3515, %v3482, 0
        %3519 = vmatprep.subr.bf16.mxu0 0
        %3520 = vmatpush1.bf16.msra.mxu0 0
        %3521 = vmatprep.subr.bf16.mxu0 0
        %3522 = vmatpush1.bf16.msra.mxu0 0
        %3523 = vmatprep.subr.bf16.mxu0 0
        %3524 = vmatpush1.bf16.msra.mxu0 0
        %3525 = vmatprep.subr.bf16.mxu0 0
        %3526 = vmatpush1.bf16.msra.mxu0 0
        %3527 = vmatprep.subr.bf16.mxu0 0
        %3528 = vmatpush1.bf16.msra.mxu0 %v3510
        %3529 = vmatprep.subr.bf16.mxu0 0
        %3530 = vmatpush1.bf16.msra.mxu0 %v3509
        %3531 = vmatprep.subr.bf16.mxu0 0
        %3532 = vmatpush1.bf16.msra.mxu0 %v3508
        %3533 = vmatprep.subr.bf16.mxu0 0
        %3534 = vmatpush1.bf16.msra.mxu0 %v3507
        %3535 = vmatprep.subr.bf16.mxu0 0
        %3536 = vmatpush2.bf16.msra.mxu0 0
        %3537 = vmatprep.subr.bf16.mxu0 0
        %3538 = vmatpush2.bf16.msra.mxu0 0
        %3539 = vmatprep.subr.bf16.mxu0 0
        %3540 = vmatpush2.bf16.msra.mxu0 0
        %3541 = vmatprep.subr.bf16.mxu0 0
        %3542 = vmatpush2.bf16.msra.mxu0 0
        %3543 = vmatprep.subr.bf16.mxu0 0
        %3544 = vmatpush2.bf16.msra.mxu0 0
        %3545 = vmatprep.subr.bf16.mxu0 0
        %3546 = vmatpush2.bf16.msra.mxu0 0
        %3547 = vmatprep.subr.bf16.mxu0 0
        %3548 = vmatpush2.bf16.msra.mxu0 0
        %3549 = vmatprep.subr.bf16.mxu0 0
        %3550 = vmatpush2.bf16.msra.mxu0 0
        %3551 = vmatprep.mubr.bf16.mxu0 0
        %3552 = vmatmul.mubr.bf16.gmra.mxu0 %v3517
        %v3553 = vpop.f32.mrf.mxu0
        %v3554 = vadd.f32 0.0, %v3553
        %v3555 = vpop.f32.mrf.mxu0
        %v3556 = vpop.f32.mrf.mxu0
        %v3557 = vadd.f32 0.0, %v3556
        %v3558 = vpop.f32.mrf.mxu0
        %3559 = vdwg.mxu0
        %v3568 = vunpack.c.l.b16 %v3414
        %v3569 = vunpack.c.l.b16 %v3415
        %v3570 = vunpack.c.l.b16 %v3416
        %v3571 = vunpack.c.l.b16 %v3417
        %v3572 = vunpack.c.l.b16 %v3418
        %v3573 = vunpack.c.l.b16 %v3419
        %v3574 = vunpack.c.l.b16 %v3420
        %v3575 = vunpack.c.l.b16 %v3421
        %v3576 = vpack.c.b16 %v3569, %v3568
        %v3577 = vpack.c.b16 %v3571, %v3570
        %v3578 = vpack.c.b16 %v3573, %v3572
        %v3579 = vpack.c.b16 %v3575, %v3574
        %v3585 = vsel %vm3515, %v3413, 0
        %3587 = vmatprep.subr.bf16.mxu0 0
        %3588 = vmatpush1.bf16.msra.mxu0 0
        %3589 = vmatprep.subr.bf16.mxu0 0
        %3590 = vmatpush1.bf16.msra.mxu0 0
        %3591 = vmatprep.subr.bf16.mxu0 0
        %3592 = vmatpush1.bf16.msra.mxu0 0
        %3593 = vmatprep.subr.bf16.mxu0 0
        %3594 = vmatpush1.bf16.msra.mxu0 0
        %3595 = vmatprep.subr.bf16.mxu0 0
        %3596 = vmatpush1.bf16.msra.mxu0 %v3579
        %3597 = vmatprep.subr.bf16.mxu0 0
        %3598 = vmatpush1.bf16.msra.mxu0 %v3578
        %3599 = vmatprep.subr.bf16.mxu0 0
        %3600 = vmatpush1.bf16.msra.mxu0 %v3577
        %3601 = vmatprep.subr.bf16.mxu0 0
        %3602 = vmatpush1.bf16.msra.mxu0 %v3576
        %3603 = vmatprep.subr.bf16.mxu0 0
        %3604 = vmatpush2.bf16.msra.mxu0 0
        %3605 = vmatprep.subr.bf16.mxu0 0
        %3606 = vmatpush2.bf16.msra.mxu0 0
        %3607 = vmatprep.subr.bf16.mxu0 0
        %3608 = vmatpush2.bf16.msra.mxu0 0
        %3609 = vmatprep.subr.bf16.mxu0 0
        %3610 = vmatpush2.bf16.msra.mxu0 0
        %3611 = vmatprep.subr.bf16.mxu0 0
        %3612 = vmatpush2.bf16.msra.mxu0 0
        %3613 = vmatprep.subr.bf16.mxu0 0
        %3614 = vmatpush2.bf16.msra.mxu0 0
        %3615 = vmatprep.subr.bf16.mxu0 0
        %3616 = vmatpush2.bf16.msra.mxu0 0
        %3617 = vmatprep.subr.bf16.mxu0 0
        %3618 = vmatpush2.bf16.msra.mxu0 0
        %3619 = vmatprep.mubr.bf16.mxu0 0
        %3620 = vmatmul.mubr.bf16.gmra.mxu0 %v3585
        %v3621 = vpop.f32.mrf.mxu0
        %v3622 = vadd.f32 %v3554, %v3621
        %v3623 = vpop.f32.mrf.mxu0
        %v3624 = vpop.f32.mrf.mxu0
        %v3625 = vadd.f32 %v3557, %v3624
        %v3626 = vpop.f32.mrf.mxu0
        %3627 = vdwg.mxu0
        %v3628 = vadd.f32 %v3289, %v3622
        %v3629 = vadd.f32 %v3290, %v3625
        %v3630 = vld [vmem:[%s22] sm:$0x1]
        %v3632 = vlaneseq
        %v3633 = vshrl.u32 %v3632, 7
        %v3634 = vsub.s32 0, %v3633
        %v3635 = vrot.slane %v3630, %v3634
        %v3637 = vadd.f32 %v3628, %v3635
        %v3638 = vadd.f32 %v3629, %v3635
        %3639 = vst.msk [vmem:[%s902] sm:$0xff] %vm918, %v3637
        %3640 = vst.msk [vmem:[%s902 + $0x8] sm:$0xff] %vm918, %v3638
        %s3641 = sand.u32 %s546, 1
        %s3642 = scalar_lea.sflag [#allocation5], %s3641
        %s3643 = sand.u32 %s546, 1
        %s3644 = smul.addr %s3643, 16
        %s3645 = scalar_lea.vmem [#allocation26], %s3644
        // Predicated region
        $region169: #{dino_decoder_block.1} parent=111 // pred_check
          %p3646 = pneg %p556
        $region170: #{dino_decoder_block.1} parent=111 // pred_check_branch
          %3648 = sbr.rel (%p3646) target = $region172
        $region171: #{dino_decoder_block.1} parent=111 // pred_region
          %s3650 = ssub.s32 256, 256
          %3651 = vsyncadd %s3642, %s3650
          %s3652 = smul.addr %s45, 2
          %s3653 = smul.addr %s3652, 128
          %s3654 = scalar_lea.hbm %s23, %s3653
          %s3655 = sshll.u32 %s3645, 4
          %s3656 = int_to_ptr.vmem [resolvable:$true] %s3655
          %3661 = dma.vmem_to_hbm [thread:$0]  %s3656, 256, %s3654, %s3642, 128, 128, 8
        $region172: #{dino_decoder_block.1} parent=111 // pred_fallthru
          _
      $region112: #{dino_decoder_block.1} parent=5 // pred_fallthru
        _
      %p3662 = scmp.le.s32.totalorder 2, %s40
      // Predicated region
      $region173: #{dino_decoder_block.1} parent=5 // pred_check
        %p3663 = pneg %p3662
      $region174: #{dino_decoder_block.1} parent=5 // pred_check_branch
        %3665 = sbr.rel (%p3663) target = $region176
      $region175: #{dino_decoder_block.1} parent=5 // pred_region
        %s3666 = ssub.s32 %s40, 2
        // Predicated region
        $region177: #{dino_decoder_block.1} parent=175 // pred_check
          %p3667 = pneg %p562
        $region178: #{dino_decoder_block.1} parent=175 // pred_check_branch
          %3669 = sbr.rel (%p3667) target = $region180
        $region179: #{dino_decoder_block.1} parent=175 // pred_region
          %s3670 = sand.u32 %s547, 1
          %s3671 = scalar_lea.sflag [#allocation5], %s3670
          %s3672 = sand.u32 %s547, 1
          %s3673 = smul.addr %s3672, 16
          %s3674 = scalar_lea.vmem [#allocation26], %s3673
          %3675 = dma.done %s3671, 256
        $region180: #{dino_decoder_block.1} parent=175 // pred_fallthru
          _
      $region176: #{dino_decoder_block.1} parent=5 // pred_fallthru
        _
    $region6: #{dino_decoder_block.1} parent=1 // loop_footer
      %s44 = sadd.s32 1, %s40
    $region7: #{dino_decoder_block.1} parent=1 // loop_footer_branch
      %39 = sbr.rel target = $region3
    $region8: #{dino_decoder_block.1} parent=1 // loop_exit
      _
    %3676 = vsyncpa [#allocation4], 1
    %s3677 = scalar_lea.sflag [#allocation4], 1
    %3678 = vsyncpa %s3677, 1
    %3679 = vsyncpa [#allocation7], 1
    %3680 = vsyncpa [#allocation10], 1
    %3681 = vsyncpa [#allocation13], 1
    %3682 = vsyncpa [#allocation16], 1
    %3683 = vsyncpa [#allocation19], 1
    %3684 = vsyncpa [#allocation22], 1
    %3685 = vsyncpa [#allocation25], 1
    %3686 = vsyncpa [#allocation5], 1
    %s3687 = scalar_lea.sflag [#allocation5], 1
    %3688 = vsyncpa %s3687, 1

</llo_original>
